<compile_context>
chip_gen: v7x
topology: tpu7x:2x2x1
jax: 0.10.0
libtpu: 0.0.40
codegen_flags: <defaults>
</compile_context>

<pallas_src>
import jax
import jax.numpy as jnp
from jax import lax
from jax.experimental import pallas as pl
from jax.experimental.pallas import tpu as pltpu


def _bottleneck_kernel(x_ref, w1_ref, b1_ref, w2s_ref, b2_ref, w3_ref, b3_ref,
                       out_ref, t1_ref):
    # x_ref  : (1, H, W, Cin)  bf16 — full image, resident across row tiles
    # out_ref: (1, TH, W, Cin) bf16 — one output row tile
    # t1_ref : (TH+2, W+2, P)  bf16 — conv1 output for this tile + 1-px halo
    H, W, Cin = x_ref.shape[1], x_ref.shape[2], x_ref.shape[3]
    TH = out_ref.shape[1]
    P = w1_ref.shape[1]
    Cout = w3_ref.shape[1]                       # == 4 * P == Cin

    t = pl.program_id(1)
    nt = pl.num_programs(1)
    r0 = pl.multiple_of(t * TH, TH)              # first output row of this tile

    w1 = w1_ref[...]                             # (Cin, P) bf16, BN1 folded
    b1 = b1_ref[...]                             # (1, P)   f32
    b2 = b2_ref[...]                             # (1, P)   f32

    # ---- conv1 (1x1) + BN bias + ReLU for this tile plus a 1-row halo -------
    def conv1_rows(xr):                          # (R, W, Cin) -> (R, W, P) bf16
        r = xr.shape[0]
        a = jnp.dot(xr.reshape(r * W, Cin), w1,
                    preferred_element_type=jnp.float32)
        a = jnp.maximum(a + b1, 0.0)
        return a.astype(t1_ref.dtype).reshape(r, W, P)

    # Zero the 1-pixel padding ring every tile (scratch persists across grid
    # steps / cores — do NOT gate this on program_id == 0).
    zrow = jnp.zeros((1, W + 2, P), t1_ref.dtype)
    t1_ref[0:1] = zrow
    t1_ref[TH + 1:TH + 2] = zrow
    zcol = jnp.zeros((TH + 2, 1, P), t1_ref.dtype)
    t1_ref[:, 0:1, :] = zcol
    t1_ref[:, W + 1:W + 2, :] = zcol

    # Interior rows [r0, r0+TH): always inside the image.
    t1_ref[1:TH + 1, 1:W + 1, :] = conv1_rows(x_ref[0, pl.ds(r0, TH)])

    # Halo rows r0-1 / r0+TH: recomputed from x when inside the image, left as
    # zeros (== conv2's SAME zero padding) at the image border.
    @pl.when(t > 0)
    def _():
        t1_ref[0:1, 1:W + 1, :] = conv1_rows(x_ref[0, pl.ds(r0 - 1, 1)])

    @pl.when(t < nt - 1)
    def _():
        t1_ref[TH + 1:TH + 2, 1:W + 1, :] = conv1_rows(
            x_ref[0, pl.ds(r0 + TH, 1)])

    # ---- conv2 (3x3) + BN bias + ReLU ---------------------------------------
    # Three K=3P matmuls (one per kernel row dh) accumulated in f32.  K=3P
    # still exceeds the 256-deep v6e/v7x MXU while materializing only a 3x
    # (not 9x) im2col slab.
    # TODO(synk): on v5e (128-deep MXU) nine K=P matmuls reading the shifted
    #             slices directly would avoid the concat copies entirely.
    acc2 = jnp.zeros((TH * W, P), jnp.float32)
    for dh in range(3):
        rows = t1_ref[dh:dh + TH]                # (TH, W+2, P)
        slab = jnp.concatenate(
            [rows[:, dw:dw + W, :] for dw in range(3)], axis=-1)  # (TH, W, 3P)
        acc2 = acc2 + jnp.dot(
            slab.reshape(TH * W, 3 * P),
            w2s_ref[dh * 3 * P:(dh + 1) * 3 * P, :],
            preferred_element_type=jnp.float32)
    t2 = jnp.maximum(acc2 + b2, 0.0).astype(jnp.bfloat16)         # (TH*W, P)

    # ---- conv3 (1x1) + BN bias + residual + ReLU, 128-wide output chunks ----
    ch = 128 if Cout % 128 == 0 else Cout
    for c0 in range(0, Cout, ch):
        a3 = jnp.dot(t2, w3_ref[:, c0:c0 + ch],
                     preferred_element_type=jnp.float32)           # (TH*W, ch)
        res = x_ref[0, pl.ds(r0, TH), :, c0:c0 + ch].reshape(TH * W, ch)
        y = jnp.maximum(a3 + b3_ref[:, c0:c0 + ch] + res.astype(jnp.float32),
                        0.0)
        out_ref[0, :, :, c0:c0 + ch] = (
            y.astype(out_ref.dtype).reshape(TH, W, ch))


def _pick_row_tile(H, W, row_tile=None):
    """Divisor-of-H row-tile height; never degrades to TH=1 for awkward H."""
    divisors = [d for d in range(1, H + 1) if H % d == 0]
    if row_tile is not None:
        th = max(d for d in divisors if d <= max(1, row_tile))
        return th if th >= min(4, H) else H      # avoid degenerate tiny tiles
    target = min(max(8, -(-256 // W)), 32, H)    # aim for TH*W >= 256 (MXU M)
    return min(d for d in divisors if d >= target)


def bottleneck_forward(x_nhwc, params, row_tile=None):
    N, H, W, Cin = x_nhwc.shape
    P = params["w1"].shape[1]
    assert Cin == 4 * P, "identity residual requires inplanes == planes * 4"
    # TODO(synk): stride>1 conv1 and the downsample residual branch are not
    #             implemented (module default path: stride=1, downsample=None).

    TH = _pick_row_tile(H, W, row_tile)
    NT = H // TH

    def const_spec(shape):
        zeros = (0,) * len(shape)
        return pl.BlockSpec(shape, lambda n, t, _z=zeros: _z)

    return pl.pallas_call(
        _bottleneck_kernel,
        out_shape=jax.ShapeDtypeStruct((N, H, W, Cin), jnp.bfloat16),
        grid_spec=pltpu.PrefetchScalarGridSpec(
            num_scalar_prefetch=0,
            grid=(N, NT),
            in_specs=[
                # Full image resident per n (conv1 halo rows must be readable);
                # constant index along t so it is not re-fetched per row tile.
                pl.BlockSpec((1, H, W, Cin), lambda n, t: (n, 0, 0, 0)),
                const_spec((Cin, P)),            # w1  bf16, BN1 scale folded
                const_spec((1, P)),              # b1  f32
                const_spec((9 * P, P)),          # w2s bf16, im2col-stacked
                const_spec((1, P)),              # b2  f32
                const_spec((P, 4 * P)),          # w3  bf16, BN3 scale folded
                const_spec((1, 4 * P)),          # b3  f32
            ],
            out_specs=pl.BlockSpec((1, TH, W, Cin), lambda n, t: (n, t, 0, 0)),
            scratch_shapes=[pltpu.VMEM((TH + 2, W + 2, P), jnp.bfloat16)],
        ),
        compiler_params=pltpu.CompilerParams(
            dimension_semantics=("parallel", "parallel"),
            vmem_limit_bytes=48 * 1024 * 1024),
    )(x_nhwc,
      params["w1"], params["b1"],
      params["w2s"], params["b2"],
      params["w3"], params["b3"])


def fold_bn(gamma, beta, mean, var, eps=1e-5):
    scale = gamma / jnp.sqrt(var + eps)
    bias = beta - mean * scale
    return scale, bias


def make_params(key, inplanes, planes):
    ks = jax.random.split(key, 6)
    w1 = 0.1 * jax.random.normal(ks[0], (inplanes, planes), jnp.float32)
    w2 = 0.1 * jax.random.normal(ks[1], (3, 3, planes, planes), jnp.float32)
    w3 = 0.1 * jax.random.normal(ks[2], (planes, planes * 4), jnp.float32)

    def bn_params(k, c):
        k1, k2, k3, k4 = jax.random.split(k, 4)
        gamma = 1.0 + 0.1 * jax.random.normal(k1, (c,), jnp.float32)
        beta = 0.1 * jax.random.normal(k2, (c,), jnp.float32)
        mean = 0.1 * jax.random.normal(k3, (c,), jnp.float32)
        var = jnp.abs(jax.random.normal(k4, (c,), jnp.float32)) + 0.5
        return fold_bn(gamma, beta, mean, var)

    s1, b1 = bn_params(ks[3], planes)
    s2, b2 = bn_params(ks[4], planes)
    s3, b3 = bn_params(ks[5], planes * 4)

    # Frozen (inference) BN: fold the per-channel scale into the conv weights,
    # keep only a bias vector; store weights in bf16 for the MXU fast path.
    w1f = (w1 * s1[None, :]).astype(jnp.bfloat16)
    w2f = (w2 * s2[None, None, None, :]).astype(jnp.bfloat16)
    w3f = (w3 * s3[None, :]).astype(jnp.bfloat16)
    # Stack the 3x3 taps along the contraction dim: (kh,kw,Cin,Cout)->(9*Cin,Cout)
    w2s = w2f.reshape(9 * planes, planes)

    return dict(
        w1=w1f, b1=b1[None, :].astype(jnp.float32),
        w2s=w2s, b2=b2[None, :].astype(jnp.float32),
        w3=w3f, b3=b3[None, :].astype(jnp.float32))


def reference_forward(x_bf16, p):
    """Pure-JAX NHWC reference mirroring the kernel's bf16/f32 precision."""
    planes = p["w1"].shape[1]
    t = jnp.einsum("nhwc,cd->nhwd", x_bf16, p["w1"],
                   preferred_element_type=jnp.float32)
    t = jax.nn.relu(t + p["b1"][0]).astype(jnp.bfloat16)
    w2 = p["w2s"].reshape(3, 3, planes, planes)             # HWIO
    t = lax.conv_general_dilated(
        t, w2, window_strides=(1, 1), padding="SAME",
        dimension_numbers=("NHWC", "HWIO", "NHWC"),
        preferred_element_type=jnp.float32)
    t = jax.nn.relu(t + p["b2"][0]).astype(jnp.bfloat16)
    t = jnp.einsum("nhwc,cd->nhwd", t, p["w3"],
                   preferred_element_type=jnp.float32)
    out = jax.nn.relu(t + p["b3"][0] + x_bf16.astype(jnp.float32))
    return out.astype(jnp.bfloat16)


if __name__ == "__main__":
    N, H, W = 2, 16, 16
    planes = 128
    inplanes = planes * 4      # 512 -> identity residual path (lane-dense C)

    key = jax.random.PRNGKey(0)
    kx, kp = jax.random.split(key)
    # The backbone stays NHWC end-to-end (a single NCHW->NHWC conversion would
    # happen once at network entry in a real model); generate NHWC directly.
    x_nhwc = jax.random.normal(
        kx, (N, H, W, inplanes), jnp.float32).astype(jnp.bfloat16)

    params = make_params(kp, inplanes, planes)

    # row_tile=8 -> grid (2, 2): exercises both halo branches and the row grid.
    out = jax.block_until_ready(bottleneck_forward(x_nhwc, params, row_tile=8))
    ref = reference_forward(x_nhwc, params)

    assert out.shape == x_nhwc.shape and out.dtype == jnp.bfloat16
    assert jnp.allclose(out.astype(jnp.float32), ref.astype(jnp.float32),
                        atol=1e-1, rtol=2e-2), "mismatch vs reference"

    print("KERNEL_OK")
</pallas_src>

<mosaic_0001>
module attributes {stable_mosaic.version = 11 : i64} {
  func.func @_bottleneck_kernel(%arg0: i32, %arg1: i32, %arg2: memref<1x16x16x512xbf16, #tpu.memory_space<vmem>>, %arg3: memref<512x128xbf16, #tpu.memory_space<vmem>>, %arg4: memref<1x128xf32, #tpu.memory_space<vmem>>, %arg5: memref<1152x128xbf16, #tpu.memory_space<vmem>>, %arg6: memref<1x128xf32, #tpu.memory_space<vmem>>, %arg7: memref<128x512xbf16, #tpu.memory_space<vmem>>, %arg8: memref<1x512xf32, #tpu.memory_space<vmem>>, %arg9: memref<1x8x16x512xbf16, #tpu.memory_space<vmem>>, %arg10: memref<10x18x128xbf16, #tpu.memory_space<vmem>>) attributes {dimension_semantics = [#tpu.dimension_semantics<parallel>, #tpu.dimension_semantics<parallel>], iteration_bounds = array<i64: 2, 2>, scalar_prefetch = 0 : i64, scratch_operands = 1 : i64, tpu.core_type = #tpu.core_type<tc>, window_params = [{transform_indices = @transform_0, window_bounds = array<i64: 1, 16, 16, 512>}, {pipeline_mode = #tpu.pipeline_mode<synchronous>, transform_indices = @transform_1, window_bounds = array<i64: 512, 128>}, {pipeline_mode = #tpu.pipeline_mode<synchronous>, transform_indices = @transform_2, window_bounds = array<i64: 1, 128>}, {pipeline_mode = #tpu.pipeline_mode<synchronous>, transform_indices = @transform_3, window_bounds = array<i64: 1152, 128>}, {pipeline_mode = #tpu.pipeline_mode<synchronous>, transform_indices = @transform_4, window_bounds = array<i64: 1, 128>}, {pipeline_mode = #tpu.pipeline_mode<synchronous>, transform_indices = @transform_5, window_bounds = array<i64: 128, 512>}, {pipeline_mode = #tpu.pipeline_mode<synchronous>, transform_indices = @transform_6, window_bounds = array<i64: 1, 512>}, {transform_indices = @transform_7, window_bounds = array<i64: 1, 8, 16, 512>}]} {
    %c8_i32 = arith.constant 8 : i32
    %0 = arith.muli %arg1, %c8_i32 : i32
    %1 = tpu.assume_multiple %0, 8 : i32
    %c0 = arith.constant 0 : index
    %c0_0 = arith.constant 0 : index
    %2 = vector.load %arg3[%c0, %c0_0] : memref<512x128xbf16, #tpu.memory_space<vmem>>, vector<512x128xbf16>
    %c0_1 = arith.constant 0 : index
    %c0_2 = arith.constant 0 : index
    %3 = vector.load %arg4[%c0_1, %c0_2] : memref<1x128xf32, #tpu.memory_space<vmem>>, vector<1x128xf32>
    %c0_3 = arith.constant 0 : index
    %c0_4 = arith.constant 0 : index
    %4 = vector.load %arg6[%c0_3, %c0_4] : memref<1x128xf32, #tpu.memory_space<vmem>>, vector<1x128xf32>
    %cst = arith.constant 0.000000e+00 : bf16
    %5 = vector.broadcast %cst : bf16 to vector<1x18x128xbf16>
    %c0_5 = arith.constant 0 : index
    %c0_6 = arith.constant 0 : index
    %c0_7 = arith.constant 0 : index
    %6 = vector.load %arg10[%c0_5, %c0_6, %c0_7] : memref<10x18x128xbf16, #tpu.memory_space<vmem>>, vector<1x18x128xbf16>
    tpu.vector_store %arg10[%c0_5, %c0_6, %c0_7], %5 {strides = array<i32>} : memref<10x18x128xbf16, #tpu.memory_space<vmem>>, vector<1x18x128xbf16>,
    %c9 = arith.constant 9 : index
    %c0_8 = arith.constant 0 : index
    %c0_9 = arith.constant 0 : index
    %7 = vector.load %arg10[%c9, %c0_8, %c0_9] : memref<10x18x128xbf16, #tpu.memory_space<vmem>>, vector<1x18x128xbf16>
    tpu.vector_store %arg10[%c9, %c0_8, %c0_9], %5 {strides = array<i32>} : memref<10x18x128xbf16, #tpu.memory_space<vmem>>, vector<1x18x128xbf16>,
    %cst_10 = arith.constant 0.000000e+00 : bf16
    %8 = vector.broadcast %cst_10 : bf16 to vector<10x1x128xbf16>
    %c0_11 = arith.constant 0 : index
    %c0_12 = arith.constant 0 : index
    %c0_13 = arith.constant 0 : index
    %9 = vector.load %arg10[%c0_11, %c0_12, %c0_13] : memref<10x18x128xbf16, #tpu.memory_space<vmem>>, vector<10x1x128xbf16>
    tpu.vector_store %arg10[%c0_11, %c0_12, %c0_13], %8 {strides = array<i32>} : memref<10x18x128xbf16, #tpu.memory_space<vmem>>, vector<10x1x128xbf16>,
    %c0_14 = arith.constant 0 : index
    %c17 = arith.constant 17 : index
    %c0_15 = arith.constant 0 : index
    %10 = vector.load %arg10[%c0_14, %c17, %c0_15] : memref<10x18x128xbf16, #tpu.memory_space<vmem>>, vector<10x1x128xbf16>
    tpu.vector_store %arg10[%c0_14, %c17, %c0_15], %8 {strides = array<i32>} : memref<10x18x128xbf16, #tpu.memory_space<vmem>>, vector<10x1x128xbf16>,
    %c0_16 = arith.constant 0 : index
    %11 = arith.index_cast %1 : i32 to index
    %c0_17 = arith.constant 0 : index
    %c0_18 = arith.constant 0 : index
    %12 = vector.load %arg2[%c0_16, %11, %c0_17, %c0_18] : memref<1x16x16x512xbf16, #tpu.memory_space<vmem>>, vector<1x8x16x512xbf16>
    %13 = vector.shape_cast %12 : vector<1x8x16x512xbf16> to vector<8x16x512xbf16>
    %14 = vector.shape_cast %13 : vector<8x16x512xbf16> to vector<128x512xbf16>
    %cst_19 = arith.constant dense<0.000000e+00> : vector<128x128xf32>
    %15 = tpu.matmul %14, %2, %cst_19 {dimension_numbers = #tpu.dot_dimension_numbers<[1], [0], [0], [1], [0, 0, 1, 1], [], []>} : vector<128x512xbf16>, vector<512x128xbf16>, vector<128x128xf32> -> vector<128x128xf32>
    %16 = vector.broadcast %3 : vector<1x128xf32> to vector<128x128xf32>
    %17 = arith.addf %15, %16 : vector<128x128xf32>
    %cst_20 = arith.constant 0.000000e+00 : f32
    %18 = vector.broadcast %cst_20 : f32 to vector<128x128xf32>
    %19 = arith.maximumf %17, %18 : vector<128x128xf32>
    %20 = arith.truncf %19 : vector<128x128xf32> to vector<128x128xbf16>
    %21 = vector.shape_cast %20 : vector<128x128xbf16> to vector<8x16x128xbf16>
    %c1 = arith.constant 1 : index
    %c1_21 = arith.constant 1 : index
    %c0_22 = arith.constant 0 : index
    %22 = vector.load %arg10[%c1, %c1_21, %c0_22] : memref<10x18x128xbf16, #tpu.memory_space<vmem>>, vector<8x16x128xbf16>
    tpu.vector_store %arg10[%c1, %c1_21, %c0_22], %21 {strides = array<i32>} : memref<10x18x128xbf16, #tpu.memory_space<vmem>>, vector<8x16x128xbf16>,
    %c0_i32 = arith.constant 0 : i32
    %23 = arith.cmpi sgt, %arg1, %c0_i32 : i32
    %24 = arith.extui %23 : i1 to i32
    %c0_i32_23 = arith.constant 0 : i32
    %25 = arith.cmpi ne, %24, %c0_i32_23 : i32
    scf.if %25 {
      %c1_i32_92 = arith.constant 1 : i32
      %134 = arith.subi %1, %c1_i32_92 : i32
      %c0_93 = arith.constant 0 : index
      %135 = arith.index_cast %134 : i32 to index
      %c0_94 = arith.constant 0 : index
      %c0_95 = arith.constant 0 : index
      %136 = vector.load %arg2[%c0_93, %135, %c0_94, %c0_95] : memref<1x16x16x512xbf16, #tpu.memory_space<vmem>>, vector<1x1x16x512xbf16>
      %137 = vector.shape_cast %136 : vector<1x1x16x512xbf16> to vector<1x16x512xbf16>
      %138 = vector.shape_cast %137 : vector<1x16x512xbf16> to vector<16x512xbf16>
      %cst_96 = arith.constant dense<0.000000e+00> : vector<16x128xf32>
      %139 = tpu.matmul %138, %2, %cst_96 {dimension_numbers = #tpu.dot_dimension_numbers<[1], [0], [0], [1], [0, 0, 1, 1], [], []>} : vector<16x512xbf16>, vector<512x128xbf16>, vector<16x128xf32> -> vector<16x128xf32>
      %140 = vector.broadcast %3 : vector<1x128xf32> to vector<16x128xf32>
      %141 = arith.addf %139, %140 : vector<16x128xf32>
      %cst_97 = arith.constant 0.000000e+00 : f32
      %142 = vector.broadcast %cst_97 : f32 to vector<16x128xf32>
      %143 = arith.maximumf %141, %142 : vector<16x128xf32>
      %144 = arith.truncf %143 : vector<16x128xf32> to vector<16x128xbf16>
      %145 = vector.shape_cast %144 : vector<16x128xbf16> to vector<1x16x128xbf16>
      %c0_98 = arith.constant 0 : index
      %c1_99 = arith.constant 1 : index
      %c0_100 = arith.constant 0 : index
      %146 = vector.load %arg10[%c0_98, %c1_99, %c0_100] : memref<10x18x128xbf16, #tpu.memory_space<vmem>>, vector<1x16x128xbf16>
      tpu.vector_store %arg10[%c0_98, %c1_99, %c0_100], %145 {strides = array<i32>} : memref<10x18x128xbf16, #tpu.memory_space<vmem>>, vector<1x16x128xbf16>,
    } else {
    }
    %c1_i32 = arith.constant 1 : i32
    %26 = arith.cmpi slt, %arg1, %c1_i32 : i32
    %27 = arith.extui %26 : i1 to i32
    %c0_i32_24 = arith.constant 0 : i32
    %28 = arith.cmpi ne, %27, %c0_i32_24 : i32
    scf.if %28 {
      %c8_i32_92 = arith.constant 8 : i32
      %134 = arith.addi %1, %c8_i32_92 : i32
      %c0_93 = arith.constant 0 : index
      %135 = arith.index_cast %134 : i32 to index
      %c0_94 = arith.constant 0 : index
      %c0_95 = arith.constant 0 : index
      %136 = vector.load %arg2[%c0_93, %135, %c0_94, %c0_95] : memref<1x16x16x512xbf16, #tpu.memory_space<vmem>>, vector<1x1x16x512xbf16>
      %137 = vector.shape_cast %136 : vector<1x1x16x512xbf16> to vector<1x16x512xbf16>
      %138 = vector.shape_cast %137 : vector<1x16x512xbf16> to vector<16x512xbf16>
      %cst_96 = arith.constant dense<0.000000e+00> : vector<16x128xf32>
      %139 = tpu.matmul %138, %2, %cst_96 {dimension_numbers = #tpu.dot_dimension_numbers<[1], [0], [0], [1], [0, 0, 1, 1], [], []>} : vector<16x512xbf16>, vector<512x128xbf16>, vector<16x128xf32> -> vector<16x128xf32>
      %140 = vector.broadcast %3 : vector<1x128xf32> to vector<16x128xf32>
      %141 = arith.addf %139, %140 : vector<16x128xf32>
      %cst_97 = arith.constant 0.000000e+00 : f32
      %142 = vector.broadcast %cst_97 : f32 to vector<16x128xf32>
      %143 = arith.maximumf %141, %142 : vector<16x128xf32>
      %144 = arith.truncf %143 : vector<16x128xf32> to vector<16x128xbf16>
      %145 = vector.shape_cast %144 : vector<16x128xbf16> to vector<1x16x128xbf16>
      %c9_98 = arith.constant 9 : index
      %c1_99 = arith.constant 1 : index
      %c0_100 = arith.constant 0 : index
      %146 = vector.load %arg10[%c9_98, %c1_99, %c0_100] : memref<10x18x128xbf16, #tpu.memory_space<vmem>>, vector<1x16x128xbf16>
      tpu.vector_store %arg10[%c9_98, %c1_99, %c0_100], %145 {strides = array<i32>} : memref<10x18x128xbf16, #tpu.memory_space<vmem>>, vector<1x16x128xbf16>,
    } else {
    }
    %cst_25 = arith.constant 0.000000e+00 : f32
    %29 = vector.broadcast %cst_25 : f32 to vector<128x128xf32>
    %c0_26 = arith.constant 0 : index
    %c0_27 = arith.constant 0 : index
    %c0_28 = arith.constant 0 : index
    %30 = vector.load %arg10[%c0_26, %c0_27, %c0_28] : memref<10x18x128xbf16, #tpu.memory_space<vmem>>, vector<8x18x128xbf16>
    %31 = vector.extract_strided_slice %30 {offsets = [0, 0, 0], sizes = [8, 16, 128], strides = [1, 1, 1]} : vector<8x18x128xbf16> to vector<8x16x128xbf16>
    %32 = vector.extract_strided_slice %30 {offsets = [0, 1, 0], sizes = [8, 16, 128], strides = [1, 1, 1]} : vector<8x18x128xbf16> to vector<8x16x128xbf16>
    %33 = vector.extract_strided_slice %30 {offsets = [0, 2, 0], sizes = [8, 16, 128], strides = [1, 1, 1]} : vector<8x18x128xbf16> to vector<8x16x128xbf16>
    %34 = tpu.concatenate %31, %32, %33 in 2 : vector<8x16x128xbf16>, vector<8x16x128xbf16>, vector<8x16x128xbf16> -> vector<8x16x384xbf16>
    %35 = vector.shape_cast %34 : vector<8x16x384xbf16> to vector<128x384xbf16>
    %c0_29 = arith.constant 0 : index
    %c0_30 = arith.constant 0 : index
    %36 = vector.load %arg5[%c0_29, %c0_30] : memref<1152x128xbf16, #tpu.memory_space<vmem>>, vector<384x128xbf16>
    %cst_31 = arith.constant dense<0.000000e+00> : vector<128x128xf32>
    %37 = tpu.matmul %35, %36, %cst_31 {dimension_numbers = #tpu.dot_dimension_numbers<[1], [0], [0], [1], [0, 0, 1, 1], [], []>} : vector<128x384xbf16>, vector<384x128xbf16>, vector<128x128xf32> -> vector<128x128xf32>
    %38 = arith.addf %29, %37 : vector<128x128xf32>
    %c1_32 = arith.constant 1 : index
    %c0_33 = arith.constant 0 : index
    %c0_34 = arith.constant 0 : index
    %39 = vector.load %arg10[%c1_32, %c0_33, %c0_34] : memref<10x18x128xbf16, #tpu.memory_space<vmem>>, vector<8x18x128xbf16>
    %40 = vector.extract_strided_slice %39 {offsets = [0, 0, 0], sizes = [8, 16, 128], strides = [1, 1, 1]} : vector<8x18x128xbf16> to vector<8x16x128xbf16>
    %41 = vector.extract_strided_slice %39 {offsets = [0, 1, 0], sizes = [8, 16, 128], strides = [1, 1, 1]} : vector<8x18x128xbf16> to vector<8x16x128xbf16>
    %42 = vector.extract_strided_slice %39 {offsets = [0, 2, 0], sizes = [8, 16, 128], strides = [1, 1, 1]} : vector<8x18x128xbf16> to vector<8x16x128xbf16>
    %43 = tpu.concatenate %40, %41, %42 in 2 : vector<8x16x128xbf16>, vector<8x16x128xbf16>, vector<8x16x128xbf16> -> vector<8x16x384xbf16>
    %44 = vector.shape_cast %43 : vector<8x16x384xbf16> to vector<128x384xbf16>
    %c384 = arith.constant 384 : index
    %c0_35 = arith.constant 0 : index
    %45 = vector.load %arg5[%c384, %c0_35] : memref<1152x128xbf16, #tpu.memory_space<vmem>>, vector<384x128xbf16>
    %cst_36 = arith.constant dense<0.000000e+00> : vector<128x128xf32>
    %46 = tpu.matmul %44, %45, %cst_36 {dimension_numbers = #tpu.dot_dimension_numbers<[1], [0], [0], [1], [0, 0, 1, 1], [], []>} : vector<128x384xbf16>, vector<384x128xbf16>, vector<128x128xf32> -> vector<128x128xf32>
    %47 = arith.addf %38, %46 : vector<128x128xf32>
    %c2 = arith.constant 2 : index
    %c0_37 = arith.constant 0 : index
    %c0_38 = arith.constant 0 : index
    %48 = vector.load %arg10[%c2, %c0_37, %c0_38] : memref<10x18x128xbf16, #tpu.memory_space<vmem>>, vector<8x18x128xbf16>
    %49 = vector.extract_strided_slice %48 {offsets = [0, 0, 0], sizes = [8, 16, 128], strides = [1, 1, 1]} : vector<8x18x128xbf16> to vector<8x16x128xbf16>
    %50 = vector.extract_strided_slice %48 {offsets = [0, 1, 0], sizes = [8, 16, 128], strides = [1, 1, 1]} : vector<8x18x128xbf16> to vector<8x16x128xbf16>
    %51 = vector.extract_strided_slice %48 {offsets = [0, 2, 0], sizes = [8, 16, 128], strides = [1, 1, 1]} : vector<8x18x128xbf16> to vector<8x16x128xbf16>
    %52 = tpu.concatenate %49, %50, %51 in 2 : vector<8x16x128xbf16>, vector<8x16x128xbf16>, vector<8x16x128xbf16> -> vector<8x16x384xbf16>
    %53 = vector.shape_cast %52 : vector<8x16x384xbf16> to vector<128x384xbf16>
    %c768 = arith.constant 768 : index
    %c0_39 = arith.constant 0 : index
    %54 = vector.load %arg5[%c768, %c0_39] : memref<1152x128xbf16, #tpu.memory_space<vmem>>, vector<384x128xbf16>
    %cst_40 = arith.constant dense<0.000000e+00> : vector<128x128xf32>
    %55 = tpu.matmul %53, %54, %cst_40 {dimension_numbers = #tpu.dot_dimension_numbers<[1], [0], [0], [1], [0, 0, 1, 1], [], []>} : vector<128x384xbf16>, vector<384x128xbf16>, vector<128x128xf32> -> vector<128x128xf32>
    %56 = arith.addf %47, %55 : vector<128x128xf32>
    %57 = vector.broadcast %4 : vector<1x128xf32> to vector<128x128xf32>
    %58 = arith.addf %56, %57 : vector<128x128xf32>
    %cst_41 = arith.constant 0.000000e+00 : f32
    %59 = vector.broadcast %cst_41 : f32 to vector<128x128xf32>
    %60 = arith.maximumf %58, %59 : vector<128x128xf32>
    %61 = arith.truncf %60 : vector<128x128xf32> to vector<128x128xbf16>
    %c0_42 = arith.constant 0 : index
    %c0_43 = arith.constant 0 : index
    %62 = vector.load %arg7[%c0_42, %c0_43] : memref<128x512xbf16, #tpu.memory_space<vmem>>, vector<128x128xbf16>
    %cst_44 = arith.constant dense<0.000000e+00> : vector<128x128xf32>
    %63 = tpu.matmul %61, %62, %cst_44 {dimension_numbers = #tpu.dot_dimension_numbers<[1], [0], [0], [1], [0, 0, 1, 1], [], []>} : vector<128x128xbf16>, vector<128x128xbf16>, vector<128x128xf32> -> vector<128x128xf32>
    %c0_45 = arith.constant 0 : index
    %64 = arith.index_cast %1 : i32 to index
    %c0_46 = arith.constant 0 : index
    %c0_47 = arith.constant 0 : index
    %65 = vector.load %arg2[%c0_45, %64, %c0_46, %c0_47] : memref<1x16x16x512xbf16, #tpu.memory_space<vmem>>, vector<1x8x16x128xbf16>
    %66 = vector.shape_cast %65 : vector<1x8x16x128xbf16> to vector<8x16x128xbf16>
    %67 = vector.shape_cast %66 : vector<8x16x128xbf16> to vector<128x128xbf16>
    %c0_48 = arith.constant 0 : index
    %c0_49 = arith.constant 0 : index
    %68 = vector.load %arg8[%c0_48, %c0_49] : memref<1x512xf32, #tpu.memory_space<vmem>>, vector<1x128xf32>
    %69 = vector.broadcast %68 : vector<1x128xf32> to vector<128x128xf32>
    %70 = arith.addf %63, %69 : vector<128x128xf32>
    %71 = arith.extf %67 : vector<128x128xbf16> to vector<128x128xf32>
    %72 = arith.addf %70, %71 : vector<128x128xf32>
    %cst_50 = arith.constant 0.000000e+00 : f32
    %73 = vector.broadcast %cst_50 : f32 to vector<128x128xf32>
    %74 = arith.maximumf %72, %73 : vector<128x128xf32>
    %75 = arith.truncf %74 : vector<128x128xf32> to vector<128x128xbf16>
    %76 = vector.shape_cast %75 : vector<128x128xbf16> to vector<8x16x128xbf16>
    %c0_51 = arith.constant 0 : index
    %c0_52 = arith.constant 0 : index
    %c0_53 = arith.constant 0 : index
    %c0_54 = arith.constant 0 : index
    %77 = vector.load %arg9[%c0_51, %c0_52, %c0_53, %c0_54] : memref<1x8x16x512xbf16, #tpu.memory_space<vmem>>, vector<1x8x16x128xbf16>
    %78 = vector.shape_cast %77 : vector<1x8x16x128xbf16> to vector<8x16x128xbf16>
    %79 = vector.shape_cast %76 : vector<8x16x128xbf16> to vector<1x8x16x128xbf16>
    tpu.vector_store %arg9[%c0_51, %c0_52, %c0_53, %c0_54], %79 {strides = array<i32>} : memref<1x8x16x512xbf16, #tpu.memory_space<vmem>>, vector<1x8x16x128xbf16>,
    %c0_55 = arith.constant 0 : index
    %c128 = arith.constant 128 : index
    %80 = vector.load %arg7[%c0_55, %c128] : memref<128x512xbf16, #tpu.memory_space<vmem>>, vector<128x128xbf16>
    %cst_56 = arith.constant dense<0.000000e+00> : vector<128x128xf32>
    %81 = tpu.matmul %61, %80, %cst_56 {dimension_numbers = #tpu.dot_dimension_numbers<[1], [0], [0], [1], [0, 0, 1, 1], [], []>} : vector<128x128xbf16>, vector<128x128xbf16>, vector<128x128xf32> -> vector<128x128xf32>
    %c0_57 = arith.constant 0 : index
    %82 = arith.index_cast %1 : i32 to index
    %c0_58 = arith.constant 0 : index
    %c128_59 = arith.constant 128 : index
    %83 = vector.load %arg2[%c0_57, %82, %c0_58, %c128_59] : memref<1x16x16x512xbf16, #tpu.memory_space<vmem>>, vector<1x8x16x128xbf16>
    %84 = vector.shape_cast %83 : vector<1x8x16x128xbf16> to vector<8x16x128xbf16>
    %85 = vector.shape_cast %84 : vector<8x16x128xbf16> to vector<128x128xbf16>
    %c0_60 = arith.constant 0 : index
    %c128_61 = arith.constant 128 : index
    %86 = vector.load %arg8[%c0_60, %c128_61] : memref<1x512xf32, #tpu.memory_space<vmem>>, vector<1x128xf32>
    %87 = vector.broadcast %86 : vector<1x128xf32> to vector<128x128xf32>
    %88 = arith.addf %81, %87 : vector<128x128xf32>
    %89 = arith.extf %85 : vector<128x128xbf16> to vector<128x128xf32>
    %90 = arith.addf %88, %89 : vector<128x128xf32>
    %cst_62 = arith.constant 0.000000e+00 : f32
    %91 = vector.broadcast %cst_62 : f32 to vector<128x128xf32>
    %92 = arith.maximumf %90, %91 : vector<128x128xf32>
    %93 = arith.truncf %92 : vector<128x128xf32> to vector<128x128xbf16>
    %94 = vector.shape_cast %93 : vector<128x128xbf16> to vector<8x16x128xbf16>
    %c0_63 = arith.constant 0 : index
    %c0_64 = arith.constant 0 : index
    %c0_65 = arith.constant 0 : index
    %c128_66 = arith.constant 128 : index
    %95 = vector.load %arg9[%c0_63, %c0_64, %c0_65, %c128_66] : memref<1x8x16x512xbf16, #tpu.memory_space<vmem>>, vector<1x8x16x128xbf16>
    %96 = vector.shape_cast %95 : vector<1x8x16x128xbf16> to vector<8x16x128xbf16>
    %97 = vector.shape_cast %94 : vector<8x16x128xbf16> to vector<1x8x16x128xbf16>
    tpu.vector_store %arg9[%c0_63, %c0_64, %c0_65, %c128_66], %97 {strides = array<i32>} : memref<1x8x16x512xbf16, #tpu.memory_space<vmem>>, vector<1x8x16x128xbf16>,
    %c0_67 = arith.constant 0 : index
    %c256 = arith.constant 256 : index
    %98 = vector.load %arg7[%c0_67, %c256] : memref<128x512xbf16, #tpu.memory_space<vmem>>, vector<128x128xbf16>
    %cst_68 = arith.constant dense<0.000000e+00> : vector<128x128xf32>
    %99 = tpu.matmul %61, %98, %cst_68 {dimension_numbers = #tpu.dot_dimension_numbers<[1], [0], [0], [1], [0, 0, 1, 1], [], []>} : vector<128x128xbf16>, vector<128x128xbf16>, vector<128x128xf32> -> vector<128x128xf32>
    %c0_69 = arith.constant 0 : index
    %100 = arith.index_cast %1 : i32 to index
    %c0_70 = arith.constant 0 : index
    %c256_71 = arith.constant 256 : index
    %101 = vector.load %arg2[%c0_69, %100, %c0_70, %c256_71] : memref<1x16x16x512xbf16, #tpu.memory_space<vmem>>, vector<1x8x16x128xbf16>
    %102 = vector.shape_cast %101 : vector<1x8x16x128xbf16> to vector<8x16x128xbf16>
    %103 = vector.shape_cast %102 : vector<8x16x128xbf16> to vector<128x128xbf16>
    %c0_72 = arith.constant 0 : index
    %c256_73 = arith.constant 256 : index
    %104 = vector.load %arg8[%c0_72, %c256_73] : memref<1x512xf32, #tpu.memory_space<vmem>>, vector<1x128xf32>
    %105 = vector.broadcast %104 : vector<1x128xf32> to vector<128x128xf32>
    %106 = arith.addf %99, %105 : vector<128x128xf32>
    %107 = arith.extf %103 : vector<128x128xbf16> to vector<128x128xf32>
    %108 = arith.addf %106, %107 : vector<128x128xf32>
    %cst_74 = arith.constant 0.000000e+00 : f32
    %109 = vector.broadcast %cst_74 : f32 to vector<128x128xf32>
    %110 = arith.maximumf %108, %109 : vector<128x128xf32>
    %111 = arith.truncf %110 : vector<128x128xf32> to vector<128x128xbf16>
    %112 = vector.shape_cast %111 : vector<128x128xbf16> to vector<8x16x128xbf16>
    %c0_75 = arith.constant 0 : index
    %c0_76 = arith.constant 0 : index
    %c0_77 = arith.constant 0 : index
    %c256_78 = arith.constant 256 : index
    %113 = vector.load %arg9[%c0_75, %c0_76, %c0_77, %c256_78] : memref<1x8x16x512xbf16, #tpu.memory_space<vmem>>, vector<1x8x16x128xbf16>
    %114 = vector.shape_cast %113 : vector<1x8x16x128xbf16> to vector<8x16x128xbf16>
    %115 = vector.shape_cast %112 : vector<8x16x128xbf16> to vector<1x8x16x128xbf16>
    tpu.vector_store %arg9[%c0_75, %c0_76, %c0_77, %c256_78], %115 {strides = array<i32>} : memref<1x8x16x512xbf16, #tpu.memory_space<vmem>>, vector<1x8x16x128xbf16>,
    %c0_79 = arith.constant 0 : index
    %c384_80 = arith.constant 384 : index
    %116 = vector.load %arg7[%c0_79, %c384_80] : memref<128x512xbf16, #tpu.memory_space<vmem>>, vector<128x128xbf16>
    %cst_81 = arith.constant dense<0.000000e+00> : vector<128x128xf32>
    %117 = tpu.matmul %61, %116, %cst_81 {dimension_numbers = #tpu.dot_dimension_numbers<[1], [0], [0], [1], [0, 0, 1, 1], [], []>} : vector<128x128xbf16>, vector<128x128xbf16>, vector<128x128xf32> -> vector<128x128xf32>
    %c0_82 = arith.constant 0 : index
    %118 = arith.index_cast %1 : i32 to index
    %c0_83 = arith.constant 0 : index
    %c384_84 = arith.constant 384 : index
    %119 = vector.load %arg2[%c0_82, %118, %c0_83, %c384_84] : memref<1x16x16x512xbf16, #tpu.memory_space<vmem>>, vector<1x8x16x128xbf16>
    %120 = vector.shape_cast %119 : vector<1x8x16x128xbf16> to vector<8x16x128xbf16>
    %121 = vector.shape_cast %120 : vector<8x16x128xbf16> to vector<128x128xbf16>
    %c0_85 = arith.constant 0 : index
    %c384_86 = arith.constant 384 : index
    %122 = vector.load %arg8[%c0_85, %c384_86] : memref<1x512xf32, #tpu.memory_space<vmem>>, vector<1x128xf32>
    %123 = vector.broadcast %122 : vector<1x128xf32> to vector<128x128xf32>
    %124 = arith.addf %117, %123 : vector<128x128xf32>
    %125 = arith.extf %121 : vector<128x128xbf16> to vector<128x128xf32>
    %126 = arith.addf %124, %125 : vector<128x128xf32>
    %cst_87 = arith.constant 0.000000e+00 : f32
    %127 = vector.broadcast %cst_87 : f32 to vector<128x128xf32>
    %128 = arith.maximumf %126, %127 : vector<128x128xf32>
    %129 = arith.truncf %128 : vector<128x128xf32> to vector<128x128xbf16>
    %130 = vector.shape_cast %129 : vector<128x128xbf16> to vector<8x16x128xbf16>
    %c0_88 = arith.constant 0 : index
    %c0_89 = arith.constant 0 : index
    %c0_90 = arith.constant 0 : index
    %c384_91 = arith.constant 384 : index
    %131 = vector.load %arg9[%c0_88, %c0_89, %c0_90, %c384_91] : memref<1x8x16x512xbf16, #tpu.memory_space<vmem>>, vector<1x8x16x128xbf16>
    %132 = vector.shape_cast %131 : vector<1x8x16x128xbf16> to vector<8x16x128xbf16>
    %133 = vector.shape_cast %130 : vector<8x16x128xbf16> to vector<1x8x16x128xbf16>
    tpu.vector_store %arg9[%c0_88, %c0_89, %c0_90, %c384_91], %133 {strides = array<i32>} : memref<1x8x16x512xbf16, #tpu.memory_space<vmem>>, vector<1x8x16x128xbf16>,
    return
  }
  func.func @transform_0(%arg0: i32, %arg1: i32) -> (i32, i32, i32, i32) {
    %c0_i32 = arith.constant 0 : i32
    %c0_i32_0 = arith.constant 0 : i32
    %c0_i32_1 = arith.constant 0 : i32
    %c0_i32_2 = arith.constant 0 : i32
    return %arg0, %c0_i32, %c0_i32_0, %c0_i32_1 : i32, i32, i32, i32
  }
  func.func @transform_1(%arg0: i32, %arg1: i32) -> (i32, i32) {
    %c0_i32 = arith.constant 0 : i32
    %c0_i32_0 = arith.constant 0 : i32
    %c0_i32_1 = arith.constant 0 : i32
    return %c0_i32, %c0_i32_0 : i32, i32
  }
  func.func @transform_2(%arg0: i32, %arg1: i32) -> (i32, i32) {
    %c0_i32 = arith.constant 0 : i32
    %c0_i32_0 = arith.constant 0 : i32
    %c0_i32_1 = arith.constant 0 : i32
    return %c0_i32, %c0_i32_0 : i32, i32
  }
  func.func @transform_3(%arg0: i32, %arg1: i32) -> (i32, i32) {
    %c0_i32 = arith.constant 0 : i32
    %c0_i32_0 = arith.constant 0 : i32
    %c0_i32_1 = arith.constant 0 : i32
    return %c0_i32, %c0_i32_0 : i32, i32
  }
  func.func @transform_4(%arg0: i32, %arg1: i32) -> (i32, i32) {
    %c0_i32 = arith.constant 0 : i32
    %c0_i32_0 = arith.constant 0 : i32
    %c0_i32_1 = arith.constant 0 : i32
    return %c0_i32, %c0_i32_0 : i32, i32
  }
  func.func @transform_5(%arg0: i32, %arg1: i32) -> (i32, i32) {
    %c0_i32 = arith.constant 0 : i32
    %c0_i32_0 = arith.constant 0 : i32
    %c0_i32_1 = arith.constant 0 : i32
    return %c0_i32, %c0_i32_0 : i32, i32
  }
  func.func @transform_6(%arg0: i32, %arg1: i32) -> (i32, i32) {
    %c0_i32 = arith.constant 0 : i32
    %c0_i32_0 = arith.constant 0 : i32
    %c0_i32_1 = arith.constant 0 : i32
    return %c0_i32, %c0_i32_0 : i32, i32
  }
  func.func @transform_7(%arg0: i32, %arg1: i32) -> (i32, i32, i32, i32) {
    %c0_i32 = arith.constant 0 : i32
    %c0_i32_0 = arith.constant 0 : i32
    %c0_i32_1 = arith.constant 0 : i32
    return %arg0, %arg1, %c0_i32, %c0_i32_0 : i32, i32, i32, i32
  }
}

</mosaic_0001>

<llo_original>
// kernel: tpu_custom_call.1
$region0: #{tpu_custom_call.1}
  #allocation0 [shape = 'u32[]', space=smem, size = 0x4, offset = 0x4, fixed_abs, tag = 'smem constant byte address 0x4 - core index']
  #allocation1 [shape = 'u32[144,128]{1,0:T(1,128)}', space=vmem, size = 0x12000, scoped, tag = 'internal scratch']
  #allocation2 [shape = 'bf16[10,18,128]{2,1,0:T(8,128)(2,1)}', space=vmem, size = 0xf000, scoped, tag = 'scratch operand']
  %s0 = inlined_call_operand.hbm [shape: bf16[2,16,16,512], index: 0, kind: input, shape index: {}]
  %s1 = inlined_call_operand.hbm [shape: bf16[512,128], index: 1, kind: input, shape index: {}]
  %s2 = inlined_call_operand.vmem [shape: f32[1,128], index: 2, kind: input, shape index: {}]
  %s3 = inlined_call_operand.hbm [shape: bf16[1152,128], index: 3, kind: input, shape index: {}]
  %s4 = inlined_call_operand.vmem [shape: f32[1,128], index: 4, kind: input, shape index: {}]
  %s5 = inlined_call_operand.hbm [shape: bf16[128,512], index: 5, kind: input, shape index: {}]
  %s6 = inlined_call_operand.vmem [shape: f32[1,512], index: 6, kind: input, shape index: {}]
  %s7 = inlined_call_operand.hbm [shape: bf16[2,16,16,512], index: 7, kind: output, shape index: {}]
  %s8 = sld [smem:[#allocation0]]
  $region85: #{tpu_custom_call.1} parent=0
    _
  %s10 = ssub.s32 1, %s8
  %s11 = scalar_select 0, %s10, %s8
  $region1: #{tpu_custom_call.1} parent=0
    #allocation3 [shape = 'u8[524288]{0}', space=vmem, size = 0x80000, scoped, tag = 'input window, operand 0']
    #allocation4 [shape = 's32[2]{0}', space=sflag, size = 0x8, scoped, tag = 'scoped memory for tpu_custom_call.1']
    #allocation5 [shape = 's32[2]{0}', space=sflag, size = 0x8, scoped, tag = 'scoped memory for tpu_custom_call.1']
    #allocation6 [shape = 'u8[131072]{0}', space=vmem, size = 0x20000, scoped, tag = 'input window, operand 1, single buffered']
    #allocation7 [shape = 's32[1]{0}', space=sflag, size = 0x4, scoped, tag = 'scoped memory for tpu_custom_call.1']
    #allocation8 [shape = 'u8[294912]{0}', space=vmem, size = 0x48000, scoped, tag = 'input window, operand 3, single buffered']
    #allocation9 [shape = 'u8[131072]{0}', space=vmem, size = 0x20000, scoped, tag = 'input window, operand 5, single buffered']
    #allocation10 [shape = 's32[1]{0}', space=sflag, size = 0x4, scoped, tag = 'scoped memory for tpu_custom_call.1']
    #allocation11 [shape = 'u8[262144]{0}', space=vmem, size = 0x40000, scoped, tag = 'output window, operand 0']
    %12 = vsyncpa [#allocation4], 0
    %s13 = scalar_lea.sflag [#allocation4], 1
    %14 = vsyncpa %s13, 0
    %15 = vsyncpa [#allocation7], 0
    %16 = vsyncpa [#allocation10], 0
    %17 = vsyncpa [#allocation5], 0
    %s18 = scalar_lea.sflag [#allocation5], 1
    %19 = vsyncpa %s18, 0
    loop: start=0, step=1, limit=6
    $region2: #{tpu_custom_call.1} parent=1 // loop_pre_header
      _
    $region3: #{tpu_custom_call.1} parent=1 // loop_header
      %s21 = sphi 0, %s25
      %p22 = scmp.ge.s32.totalorder %s21, 6
      %s28 = sphi 0, %s40
      %s29 = sphi 0, %s36
      %s30 = sphi 0, %s28
      %s31 = sphi 0, %s29
      %s32 = sphi 0, %s30
      %s33 = sphi 0, %s31
      %s43 = sphi 0, %s45
      %s46 = sphi 0, %s43
      %s47 = sphi 0, %s46
      %s63 = sphi 0, %s47
      %s67 = sphi 0, %s67
      %s69 = sphi 0, %s67
      %s70 = sphi 0, %s69
      %s84 = sphi 0, %s70
      %s88 = sphi 0, %s88
      %s90 = sphi 0, %s88
      %s91 = sphi 0, %s90
      %s105 = sphi 0, %s91
      %s109 = sphi 0, %s109
      %s111 = sphi 0, %s109
      %s112 = sphi 0, %s111
      %s126 = sphi 0, %s112
      %s130 = sphi 0, %s130
      %s132 = sphi 0, %s130
      %s133 = sphi 0, %s132
      %s147 = sphi 0, %s133
      %s151 = sphi 0, %s151
      %s153 = sphi 0, %s151
      %s154 = sphi 0, %s153
      %s168 = sphi 0, %s154
      %s172 = sphi 0, %s172
      %s174 = sphi 0, %s172
      %s175 = sphi 0, %s174
      %s189 = sphi 0, %s175
      %s197 = sphi 0, %s199
      %s200 = sphi 0, %s197
      %s201 = sphi 0, %s200
      %s217 = sphi 0, %s201
    $region4: #{tpu_custom_call.1} parent=1 // loop_header_branch
      %24 = sbr.rel (%p22) target = $region8
    $region5: #{tpu_custom_call.1} parent=1 // loop_body
      %s26 = ssub.s32 %s21, 1
      %s27 = ssub.s32 %s21, 2
      %s34 = sadd.s32 1, %s29
      %p35 = scmp.ge.s32.totalorder %s34, 2
      %s36 = scalar_select %p35, 0, %s34
      %s37 = sadd.s32 1, %s28
      %s38 = scalar_select %p35, %s37, %s28
      %p39 = scmp.ge.s32.totalorder %s38, 2
      %s40 = scalar_select %p39, 0, %s38
      %s41 = ssub.s32 %s28, %s40
      %p42 = scmp.eq.s32.totalorder %s41, 0
      %s44 = sadd.s32 %s43, 1
      %s45 = scalar_select %p42, %s43, %s44
      %p48 = pneg %p42
      %p49 = scmp.eq.s32.totalorder %s21, 3
      %p50 = por %p48, %p49
      %p51 = scmp.ne.s32.totalorder %s43, %s46
      %p52 = scmp.eq.s32.totalorder %s21, 0
      %p53 = por %p51, %p52
      %p54 = scmp.ne.s32.totalorder %s43, %s46
      %p55 = scmp.eq.s32.totalorder %s26, 3
      %p56 = por %p54, %p55
      %p57 = scmp.ne.s32.totalorder %s46, %s47
      %p58 = scmp.eq.s32.totalorder %s26, 0
      %p59 = por %p57, %p58
      %p60 = scmp.ne.s32.totalorder %s46, %s47
      %p61 = scmp.eq.s32.totalorder %s27, 3
      %p62 = por %p60, %p61
      %p64 = scmp.ne.s32.totalorder %s47, %s63
      %p65 = scmp.eq.s32.totalorder %s27, 0
      %p66 = por %p64, %p65
      %s68 = sadd.s32 %s67, 1
      %p71 = scmp.eq.s32.totalorder %s21, 3
      %p72 = scmp.ne.s32.totalorder %s67, %s69
      %p73 = scmp.eq.s32.totalorder %s21, 0
      %p74 = por %p72, %p73
      %p75 = scmp.ne.s32.totalorder %s67, %s69
      %p76 = scmp.eq.s32.totalorder %s26, 3
      %p77 = por %p75, %p76
      %p78 = scmp.ne.s32.totalorder %s69, %s70
      %p79 = scmp.eq.s32.totalorder %s26, 0
      %p80 = por %p78, %p79
      %p81 = scmp.ne.s32.totalorder %s69, %s70
      %p82 = scmp.eq.s32.totalorder %s27, 3
      %p83 = por %p81, %p82
      %p85 = scmp.ne.s32.totalorder %s70, %s84
      %p86 = scmp.eq.s32.totalorder %s27, 0
      %p87 = por %p85, %p86
      %s89 = sadd.s32 %s88, 1
      %p92 = scmp.eq.s32.totalorder %s21, 3
      %p93 = scmp.ne.s32.totalorder %s88, %s90
      %p94 = scmp.eq.s32.totalorder %s21, 0
      %p95 = por %p93, %p94
      %p96 = scmp.ne.s32.totalorder %s88, %s90
      %p97 = scmp.eq.s32.totalorder %s26, 3
      %p98 = por %p96, %p97
      %p99 = scmp.ne.s32.totalorder %s90, %s91
      %p100 = scmp.eq.s32.totalorder %s26, 0
      %p101 = por %p99, %p100
      %p102 = scmp.ne.s32.totalorder %s90, %s91
      %p103 = scmp.eq.s32.totalorder %s27, 3
      %p104 = por %p102, %p103
      %p106 = scmp.ne.s32.totalorder %s91, %s105
      %p107 = scmp.eq.s32.totalorder %s27, 0
      %p108 = por %p106, %p107
      %s110 = sadd.s32 %s109, 1
      %p113 = scmp.eq.s32.totalorder %s21, 3
      %p114 = scmp.ne.s32.totalorder %s109, %s111
      %p115 = scmp.eq.s32.totalorder %s21, 0
      %p116 = por %p114, %p115
      %p117 = scmp.ne.s32.totalorder %s109, %s111
      %p118 = scmp.eq.s32.totalorder %s26, 3
      %p119 = por %p117, %p118
      %p120 = scmp.ne.s32.totalorder %s111, %s112
      %p121 = scmp.eq.s32.totalorder %s26, 0
      %p122 = por %p120, %p121
      %p123 = scmp.ne.s32.totalorder %s111, %s112
      %p124 = scmp.eq.s32.totalorder %s27, 3
      %p125 = por %p123, %p124
      %p127 = scmp.ne.s32.totalorder %s112, %s126
      %p128 = scmp.eq.s32.totalorder %s27, 0
      %p129 = por %p127, %p128
      %s131 = sadd.s32 %s130, 1
      %p134 = scmp.eq.s32.totalorder %s21, 3
      %p135 = scmp.ne.s32.totalorder %s130, %s132
      %p136 = scmp.eq.s32.totalorder %s21, 0
      %p137 = por %p135, %p136
      %p138 = scmp.ne.s32.totalorder %s130, %s132
      %p139 = scmp.eq.s32.totalorder %s26, 3
      %p140 = por %p138, %p139
      %p141 = scmp.ne.s32.totalorder %s132, %s133
      %p142 = scmp.eq.s32.totalorder %s26, 0
      %p143 = por %p141, %p142
      %p144 = scmp.ne.s32.totalorder %s132, %s133
      %p145 = scmp.eq.s32.totalorder %s27, 3
      %p146 = por %p144, %p145
      %p148 = scmp.ne.s32.totalorder %s133, %s147
      %p149 = scmp.eq.s32.totalorder %s27, 0
      %p150 = por %p148, %p149
      %s152 = sadd.s32 %s151, 1
      %p155 = scmp.eq.s32.totalorder %s21, 3
      %p156 = scmp.ne.s32.totalorder %s151, %s153
      %p157 = scmp.eq.s32.totalorder %s21, 0
      %p158 = por %p156, %p157
      %p159 = scmp.ne.s32.totalorder %s151, %s153
      %p160 = scmp.eq.s32.totalorder %s26, 3
      %p161 = por %p159, %p160
      %p162 = scmp.ne.s32.totalorder %s153, %s154
      %p163 = scmp.eq.s32.totalorder %s26, 0
      %p164 = por %p162, %p163
      %p165 = scmp.ne.s32.totalorder %s153, %s154
      %p166 = scmp.eq.s32.totalorder %s27, 3
      %p167 = por %p165, %p166
      %p169 = scmp.ne.s32.totalorder %s154, %s168
      %p170 = scmp.eq.s32.totalorder %s27, 0
      %p171 = por %p169, %p170
      %s173 = sadd.s32 %s172, 1
      %p176 = scmp.eq.s32.totalorder %s21, 3
      %p177 = scmp.ne.s32.totalorder %s172, %s174
      %p178 = scmp.eq.s32.totalorder %s21, 0
      %p179 = por %p177, %p178
      %p180 = scmp.ne.s32.totalorder %s172, %s174
      %p181 = scmp.eq.s32.totalorder %s26, 3
      %p182 = por %p180, %p181
      %p183 = scmp.ne.s32.totalorder %s174, %s175
      %p184 = scmp.eq.s32.totalorder %s26, 0
      %p185 = por %p183, %p184
      %p186 = scmp.ne.s32.totalorder %s174, %s175
      %p187 = scmp.eq.s32.totalorder %s27, 3
      %p188 = por %p186, %p187
      %p190 = scmp.ne.s32.totalorder %s175, %s189
      %p191 = scmp.eq.s32.totalorder %s27, 0
      %p192 = por %p190, %p191
      %s193 = ssub.s32 %s28, %s40
      %s194 = ssub.s32 %s29, %s36
      %s195 = sor.u32 %s193, %s194
      %p196 = scmp.eq.s32.totalorder %s195, 0
      %s198 = sadd.s32 %s197, 1
      %s199 = scalar_select %p196, %s197, %s198
      %p202 = pneg %p196
      %p203 = scmp.eq.s32.totalorder %s21, 3
      %p204 = por %p202, %p203
      %p205 = scmp.ne.s32.totalorder %s197, %s200
      %p206 = scmp.eq.s32.totalorder %s21, 0
      %p207 = por %p205, %p206
      %p208 = scmp.ne.s32.totalorder %s197, %s200
      %p209 = scmp.eq.s32.totalorder %s26, 3
      %p210 = por %p208, %p209
      %p211 = scmp.ne.s32.totalorder %s200, %s201
      %p212 = scmp.eq.s32.totalorder %s26, 0
      %p213 = por %p211, %p212
      %p214 = scmp.ne.s32.totalorder %s200, %s201
      %p215 = scmp.eq.s32.totalorder %s27, 3
      %p216 = por %p214, %p215
      %p218 = scmp.ne.s32.totalorder %s201, %s217
      %p219 = scmp.eq.s32.totalorder %s27, 0
      %p220 = por %p218, %p219
      %p221 = scmp.le.s32.totalorder 1, %s21
      %p222 = scmp.lt.s32.totalorder %s21, 5
      %p223 = pnand %p221, %p222
      %p224 = pneg %p223
      // Predicated region
      $region9: #{tpu_custom_call.1} parent=5 // pred_check
        _
      $region10: #{tpu_custom_call.1} parent=5 // pred_check_branch
        %226 = sbr.rel (%p223) target = $region12
      $region11: #{tpu_custom_call.1} parent=5 // pred_region
        %s227 = ssub.s32 %s21, 1
        // Predicated region
        $region13: #{tpu_custom_call.1} parent=11 // pred_check
          %p228 = pneg %p80
        $region14: #{tpu_custom_call.1} parent=11 // pred_check_branch
          %230 = sbr.rel (%p228) target = $region16
        $region15: #{tpu_custom_call.1} parent=11 // pred_region
          %s232 = ssub.s32 4096, 4096
          %233 = vsyncadd [#allocation7], %s232
          %s234 = sshll.u32 [#allocation6], 4
          %s235 = int_to_ptr.vmem [resolvable:$true] %s234
          %240 = dma.hbm_to_vmem [thread:$0]  %s1, 4096, %s235, [#allocation7], 64, 64, 4
        $region16: #{tpu_custom_call.1} parent=11 // pred_fallthru
          _
        // Predicated region
        $region17: #{tpu_custom_call.1} parent=11 // pred_check
          %p241 = pneg %p101
        $region18: #{tpu_custom_call.1} parent=11 // pred_check_branch
          %243 = sbr.rel (%p241) target = $region20
        $region19: #{tpu_custom_call.1} parent=11 // pred_region
          _
        $region20: #{tpu_custom_call.1} parent=11 // pred_fallthru
          _
        // Predicated region
        $region21: #{tpu_custom_call.1} parent=11 // pred_check
          %p244 = pneg %p122
        $region22: #{tpu_custom_call.1} parent=11 // pred_check_branch
          %246 = sbr.rel (%p244) target = $region24
        $region23: #{tpu_custom_call.1} parent=11 // pred_region
          %s248 = ssub.s32 9216, 9216
          %249 = vsyncadd [#allocation7], %s248
          %s250 = sshll.u32 [#allocation8], 4
          %s251 = int_to_ptr.vmem [resolvable:$true] %s250
          %256 = dma.hbm_to_vmem [thread:$0]  %s3, 9216, %s251, [#allocation7], 64, 64, 4
        $region24: #{tpu_custom_call.1} parent=11 // pred_fallthru
          _
        // Predicated region
        $region25: #{tpu_custom_call.1} parent=11 // pred_check
          %p257 = pneg %p143
        $region26: #{tpu_custom_call.1} parent=11 // pred_check_branch
          %259 = sbr.rel (%p257) target = $region28
        $region27: #{tpu_custom_call.1} parent=11 // pred_region
          _
        $region28: #{tpu_custom_call.1} parent=11 // pred_fallthru
          _
        // Predicated region
        $region29: #{tpu_custom_call.1} parent=11 // pred_check
          %p260 = pneg %p164
        $region30: #{tpu_custom_call.1} parent=11 // pred_check_branch
          %262 = sbr.rel (%p260) target = $region32
        $region31: #{tpu_custom_call.1} parent=11 // pred_region
          %s264 = ssub.s32 4096, 4096
          %265 = vsyncadd [#allocation10], %s264
          %s266 = sshll.u32 [#allocation9], 4
          %s267 = int_to_ptr.vmem [resolvable:$true] %s266
          %272 = dma.hbm_to_vmem [thread:$0]  %s5, 4096, %s267, [#allocation10], 256, 256, 16
        $region32: #{tpu_custom_call.1} parent=11 // pred_fallthru
          _
        // Predicated region
        $region33: #{tpu_custom_call.1} parent=11 // pred_check
          %p273 = pneg %p185
        $region34: #{tpu_custom_call.1} parent=11 // pred_check_branch
          %275 = sbr.rel (%p273) target = $region36
        $region35: #{tpu_custom_call.1} parent=11 // pred_region
          _
        $region36: #{tpu_custom_call.1} parent=11 // pred_fallthru
          _
      $region12: #{tpu_custom_call.1} parent=5 // pred_fallthru
        _
      %p276 = scmp.lt.s32.totalorder %s21, 4
      // Predicated region
      $region37: #{tpu_custom_call.1} parent=5 // pred_check
        %p277 = pneg %p276
      $region38: #{tpu_custom_call.1} parent=5 // pred_check_branch
        %279 = sbr.rel (%p277) target = $region40
      $region39: #{tpu_custom_call.1} parent=5 // pred_region
        // Predicated region
        $region41: #{tpu_custom_call.1} parent=39 // pred_check
          %p280 = pneg %p53
        $region42: #{tpu_custom_call.1} parent=39 // pred_check_branch
          %282 = sbr.rel (%p280) target = $region44
        $region43: #{tpu_custom_call.1} parent=39 // pred_region
          %s283 = sand.u32 %s43, 1
          %s284 = scalar_lea.sflag [#allocation4], %s283
          %s285 = sand.u32 %s43, 1
          %s286 = smul.addr %s285, 512
          %s287 = scalar_lea.vmem [#allocation3], %s286
          %s289 = ssub.s32 8192, 8192
          %290 = vsyncadd %s284, %s289
          %s291 = smul.addr %s28, 128
          %s292 = smul.addr %s291, 64
          %s293 = scalar_lea.hbm %s0, %s292
          %s294 = sshll.u32 %s287, 4
          %s295 = int_to_ptr.vmem [resolvable:$true] %s294
          %300 = dma.hbm_to_vmem [thread:$0]  %s293, 8192, %s295, %s284, 256, 256, 16
        $region44: #{tpu_custom_call.1} parent=39 // pred_fallthru
          _
      $region40: #{tpu_custom_call.1} parent=5 // pred_fallthru
        _
      %p301 = scmp.le.s32.totalorder 1, %s21
      %p302 = scmp.lt.s32.totalorder %s21, 5
      %p303 = pnand %p301, %p302
      %p304 = pneg %p303
      // Predicated region
      $region45: #{tpu_custom_call.1} parent=5 // pred_check
        _
      $region46: #{tpu_custom_call.1} parent=5 // pred_check_branch
        %306 = sbr.rel (%p303) target = $region48
      $region47: #{tpu_custom_call.1} parent=5 // pred_region
        %s307 = ssub.s32 %s21, 1
        %s308 = sand.u32 %s46, 1
        %s309 = scalar_lea.sflag [#allocation4], %s308
        %s310 = sand.u32 %s46, 1
        %s311 = smul.addr %s310, 512
        %s312 = scalar_lea.vmem [#allocation3], %s311
        // Predicated region
        $region49: #{tpu_custom_call.1} parent=47 // pred_check
          %p313 = pneg %p59
        $region50: #{tpu_custom_call.1} parent=47 // pred_check_branch
          %315 = sbr.rel (%p313) target = $region52
        $region51: #{tpu_custom_call.1} parent=47 // pred_region
          %316 = dma.done %s309, 8192
        $region52: #{tpu_custom_call.1} parent=47 // pred_fallthru
          _
        // Predicated region
        $region53: #{tpu_custom_call.1} parent=47 // pred_check
          %p317 = pneg %p80
        $region54: #{tpu_custom_call.1} parent=47 // pred_check_branch
          %319 = sbr.rel (%p317) target = $region56
        $region55: #{tpu_custom_call.1} parent=47 // pred_region
          %320 = dma.done [#allocation7], 4096
        $region56: #{tpu_custom_call.1} parent=47 // pred_fallthru
          _
        // Predicated region
        $region57: #{tpu_custom_call.1} parent=47 // pred_check
          %p321 = pneg %p122
        $region58: #{tpu_custom_call.1} parent=47 // pred_check_branch
          %323 = sbr.rel (%p321) target = $region60
        $region59: #{tpu_custom_call.1} parent=47 // pred_region
          %324 = dma.done [#allocation7], 9216
        $region60: #{tpu_custom_call.1} parent=47 // pred_fallthru
          _
        // Predicated region
        $region61: #{tpu_custom_call.1} parent=47 // pred_check
          %p325 = pneg %p164
        $region62: #{tpu_custom_call.1} parent=47 // pred_check_branch
          %327 = sbr.rel (%p325) target = $region64
        $region63: #{tpu_custom_call.1} parent=47 // pred_region
          %328 = dma.done [#allocation10], 4096
        $region64: #{tpu_custom_call.1} parent=47 // pred_fallthru
          _
        %s329 = sand.u32 %s46, 1
        %s330 = scalar_lea.sflag [#allocation4], %s329
        %s331 = sand.u32 %s46, 1
        %s332 = smul.addr %s331, 512
        %s333 = scalar_lea.vmem [#allocation3], %s332
        %p334 = pneg %p59
        %p335 = pneg %p56
        %p336 = pneg %p80
        %p337 = pneg %p77
        %p338 = pneg %p101
        %p339 = pneg %p98
        %p340 = pneg %p122
        %p341 = pneg %p119
        %p342 = pneg %p143
        %p343 = pneg %p140
        %p344 = pneg %p164
        %p345 = pneg %p161
        %p346 = pneg %p185
        %p347 = pneg %p182
        %p348 = pneg %p213
        %p349 = pneg %p210
        %s350 = sand.u32 %s200, 1
        %s351 = scalar_lea.sflag [#allocation5], %s350
        %s352 = sand.u32 %s200, 1
        %s353 = smul.addr %s352, 256
        %s354 = scalar_lea.vmem [#allocation11], %s353
        %s355 = smul.u32 8, %s31
        %s357 = smul.u32 %s31, 8
        %v358 = vld [vmem:[#allocation6] sm:$0xf]
        %v359 = vld [vmem:[#allocation6 + $0x4] sm:$0xf]
        %v360 = vld [vmem:[#allocation6 + $0x8] sm:$0xf]
        %v361 = vld [vmem:[#allocation6 + $0xc] sm:$0xf]
        %v362 = vld [vmem:[#allocation6 + $0x10] sm:$0xf]
        %v363 = vld [vmem:[#allocation6 + $0x14] sm:$0xf]
        %v364 = vld [vmem:[#allocation6 + $0x18] sm:$0xf]
        %v365 = vld [vmem:[#allocation6 + $0x1c] sm:$0xf]
        %v366 = vld [vmem:[#allocation6 + $0x20] sm:$0xf]
        %v367 = vld [vmem:[#allocation6 + $0x24] sm:$0xf]
        %v368 = vld [vmem:[#allocation6 + $0x28] sm:$0xf]
        %v369 = vld [vmem:[#allocation6 + $0x2c] sm:$0xf]
        %v370 = vld [vmem:[#allocation6 + $0x30] sm:$0xf]
        %v371 = vld [vmem:[#allocation6 + $0x34] sm:$0xf]
        %v372 = vld [vmem:[#allocation6 + $0x38] sm:$0xf]
        %v373 = vld [vmem:[#allocation6 + $0x3c] sm:$0xf]
        %v374 = vld [vmem:[#allocation6 + $0x40] sm:$0xf]
        %v375 = vld [vmem:[#allocation6 + $0x44] sm:$0xf]
        %v376 = vld [vmem:[#allocation6 + $0x48] sm:$0xf]
        %v377 = vld [vmem:[#allocation6 + $0x4c] sm:$0xf]
        %v378 = vld [vmem:[#allocation6 + $0x50] sm:$0xf]
        %v379 = vld [vmem:[#allocation6 + $0x54] sm:$0xf]
        %v380 = vld [vmem:[#allocation6 + $0x58] sm:$0xf]
        %v381 = vld [vmem:[#allocation6 + $0x5c] sm:$0xf]
        %v382 = vld [vmem:[#allocation6 + $0x60] sm:$0xf]
        %v383 = vld [vmem:[#allocation6 + $0x64] sm:$0xf]
        %v384 = vld [vmem:[#allocation6 + $0x68] sm:$0xf]
        %v385 = vld [vmem:[#allocation6 + $0x6c] sm:$0xf]
        %v386 = vld [vmem:[#allocation6 + $0x70] sm:$0xf]
        %v387 = vld [vmem:[#allocation6 + $0x74] sm:$0xf]
        %v388 = vld [vmem:[#allocation6 + $0x78] sm:$0xf]
        %v389 = vld [vmem:[#allocation6 + $0x7c] sm:$0xf]
        %v390 = vld [vmem:[#allocation6 + $0x80] sm:$0xf]
        %v391 = vld [vmem:[#allocation6 + $0x84] sm:$0xf]
        %v392 = vld [vmem:[#allocation6 + $0x88] sm:$0xf]
        %v393 = vld [vmem:[#allocation6 + $0x8c] sm:$0xf]
        %v394 = vld [vmem:[#allocation6 + $0x90] sm:$0xf]
        %v395 = vld [vmem:[#allocation6 + $0x94] sm:$0xf]
        %v396 = vld [vmem:[#allocation6 + $0x98] sm:$0xf]
        %v397 = vld [vmem:[#allocation6 + $0x9c] sm:$0xf]
        %v398 = vld [vmem:[#allocation6 + $0xa0] sm:$0xf]
        %v399 = vld [vmem:[#allocation6 + $0xa4] sm:$0xf]
        %v400 = vld [vmem:[#allocation6 + $0xa8] sm:$0xf]
        %v401 = vld [vmem:[#allocation6 + $0xac] sm:$0xf]
        %v402 = vld [vmem:[#allocation6 + $0xb0] sm:$0xf]
        %v403 = vld [vmem:[#allocation6 + $0xb4] sm:$0xf]
        %v404 = vld [vmem:[#allocation6 + $0xb8] sm:$0xf]
        %v405 = vld [vmem:[#allocation6 + $0xbc] sm:$0xf]
        %v406 = vld [vmem:[#allocation6 + $0xc0] sm:$0xf]
        %v407 = vld [vmem:[#allocation6 + $0xc4] sm:$0xf]
        %v408 = vld [vmem:[#allocation6 + $0xc8] sm:$0xf]
        %v409 = vld [vmem:[#allocation6 + $0xcc] sm:$0xf]
        %v410 = vld [vmem:[#allocation6 + $0xd0] sm:$0xf]
        %v411 = vld [vmem:[#allocation6 + $0xd4] sm:$0xf]
        %v412 = vld [vmem:[#allocation6 + $0xd8] sm:$0xf]
        %v413 = vld [vmem:[#allocation6 + $0xdc] sm:$0xf]
        %v414 = vld [vmem:[#allocation6 + $0xe0] sm:$0xf]
        %v415 = vld [vmem:[#allocation6 + $0xe4] sm:$0xf]
        %v416 = vld [vmem:[#allocation6 + $0xe8] sm:$0xf]
        %v417 = vld [vmem:[#allocation6 + $0xec] sm:$0xf]
        %v418 = vld [vmem:[#allocation6 + $0xf0] sm:$0xf]
        %v419 = vld [vmem:[#allocation6 + $0xf4] sm:$0xf]
        %v420 = vld [vmem:[#allocation6 + $0xf8] sm:$0xf]
        %v421 = vld [vmem:[#allocation6 + $0xfc] sm:$0xf]
        %v422 = vld [vmem:[%s2] sm:$0x1]
        %v423 = vld [vmem:[%s4] sm:$0x1]
        %424 = vst [vmem:[#allocation2] sm:$0xf] 0
        %425 = vst [vmem:[#allocation2 + $0x4] sm:$0xf] 0
        %426 = vst [vmem:[#allocation2 + $0x8] sm:$0x1] 0
        %s427 = scalar_lea.vmem [#allocation2], 108
        %428 = vst [vmem:[%s427] sm:$0xf] 0
        %429 = vst [vmem:[%s427 + $0x4] sm:$0xf] 0
        %430 = vst [vmem:[%s427 + $0x8] sm:$0x1] 0
        %vm431 = vcmask 1040384
        %vm432 = vsmask.f32 256
        %vm433 = vmand %vm431, %vm432
        %v434 = vld [vmem:[#allocation2] sm:$0x1]
        %v435 = vsel %vm433, 0, %v434
        %436 = vst [vmem:[#allocation2] sm:$0x1] %v435
        %v437 = vld [vmem:[#allocation2 + $0xc] sm:$0x1]
        %v438 = vsel %vm433, 0, %v437
        %439 = vst [vmem:[#allocation2 + $0xc] sm:$0x1] %v438
        %v440 = vld [vmem:[#allocation2 + $0x18] sm:$0x1]
        %v441 = vsel %vm433, 0, %v440
        %442 = vst [vmem:[#allocation2 + $0x18] sm:$0x1] %v441
        %v443 = vld [vmem:[#allocation2 + $0x24] sm:$0x1]
        %v444 = vsel %vm433, 0, %v443
        %445 = vst [vmem:[#allocation2 + $0x24] sm:$0x1] %v444
        %v446 = vld [vmem:[#allocation2 + $0x30] sm:$0x1]
        %v447 = vsel %vm433, 0, %v446
        %448 = vst [vmem:[#allocation2 + $0x30] sm:$0x1] %v447
        %v449 = vld [vmem:[#allocation2 + $0x3c] sm:$0x1]
        %v450 = vsel %vm433, 0, %v449
        %451 = vst [vmem:[#allocation2 + $0x3c] sm:$0x1] %v450
        %v452 = vld [vmem:[#allocation2 + $0x48] sm:$0x1]
        %v453 = vsel %vm433, 0, %v452
        %454 = vst [vmem:[#allocation2 + $0x48] sm:$0x1] %v453
        %v455 = vld [vmem:[#allocation2 + $0x54] sm:$0x1]
        %v456 = vsel %vm433, 0, %v455
        %457 = vst [vmem:[#allocation2 + $0x54] sm:$0x1] %v456
        %v458 = vld [vmem:[#allocation2 + $0x60] sm:$0x1]
        %v459 = vsel %vm433, 0, %v458
        %460 = vst [vmem:[#allocation2 + $0x60] sm:$0x1] %v459
        %v461 = vld [vmem:[#allocation2 + $0x6c] sm:$0x1]
        %v462 = vsel %vm433, 0, %v461
        %463 = vst [vmem:[#allocation2 + $0x6c] sm:$0x1] %v462
        %vm464 = vsmask.f32 7938
        %vm465 = vmand %vm431, %vm464
        %v466 = vld [vmem:[#allocation2 + $0x8] sm:$0x1]
        %v467 = vsel %vm465, 0, %v466
        %468 = vst [vmem:[#allocation2 + $0x8] sm:$0x1] %v467
        %v469 = vld [vmem:[#allocation2 + $0x14] sm:$0x1]
        %v470 = vsel %vm465, 0, %v469
        %471 = vst [vmem:[#allocation2 + $0x14] sm:$0x1] %v470
        %v472 = vld [vmem:[#allocation2 + $0x20] sm:$0x1]
        %v473 = vsel %vm465, 0, %v472
        %474 = vst [vmem:[#allocation2 + $0x20] sm:$0x1] %v473
        %v475 = vld [vmem:[#allocation2 + $0x2c] sm:$0x1]
        %v476 = vsel %vm465, 0, %v475
        %477 = vst [vmem:[#allocation2 + $0x2c] sm:$0x1] %v476
        %v478 = vld [vmem:[#allocation2 + $0x38] sm:$0x1]
        %v479 = vsel %vm465, 0, %v478
        %480 = vst [vmem:[#allocation2 + $0x38] sm:$0x1] %v479
        %v481 = vld [vmem:[#allocation2 + $0x44] sm:$0x1]
        %v482 = vsel %vm465, 0, %v481
        %483 = vst [vmem:[#allocation2 + $0x44] sm:$0x1] %v482
        %v484 = vld [vmem:[#allocation2 + $0x50] sm:$0x1]
        %v485 = vsel %vm465, 0, %v484
        %486 = vst [vmem:[#allocation2 + $0x50] sm:$0x1] %v485
        %v487 = vld [vmem:[#allocation2 + $0x5c] sm:$0x1]
        %v488 = vsel %vm465, 0, %v487
        %489 = vst [vmem:[#allocation2 + $0x5c] sm:$0x1] %v488
        %v490 = vld [vmem:[#allocation2 + $0x68] sm:$0x1]
        %v491 = vsel %vm465, 0, %v490
        %492 = vst [vmem:[#allocation2 + $0x68] sm:$0x1] %v491
        %v493 = vld [vmem:[#allocation2 + $0x74] sm:$0x1]
        %v494 = vsel %vm465, 0, %v493
        %495 = vst [vmem:[#allocation2 + $0x74] sm:$0x1] %v494
        %s496 = smul.u32 %s357, 8
        %s497 = smul.addr %s496, 4
        %s498 = scalar_lea.vmem %s312, %s497 [#allocation3]
        %v499 = vld [vmem:[%s498] sm:$0xff]
        %v500 = vld [vmem:[%s498 + $0x8] sm:$0xff]
        %v501 = vld [vmem:[%s498 + $0x10] sm:$0xff]
        %v502 = vld [vmem:[%s498 + $0x18] sm:$0xff]
        %v503 = vld [vmem:[%s498 + $0x20] sm:$0xff]
        %v504 = vld [vmem:[%s498 + $0x28] sm:$0xff]
        %v505 = vld [vmem:[%s498 + $0x30] sm:$0xff]
        %v506 = vld [vmem:[%s498 + $0x38] sm:$0xff]
        %v507 = vld [vmem:[%s498 + $0x40] sm:$0xff]
        %v508 = vld [vmem:[%s498 + $0x48] sm:$0xff]
        %v509 = vld [vmem:[%s498 + $0x50] sm:$0xff]
        %v510 = vld [vmem:[%s498 + $0x58] sm:$0xff]
        %v511 = vld [vmem:[%s498 + $0x60] sm:$0xff]
        %v512 = vld [vmem:[%s498 + $0x68] sm:$0xff]
        %v513 = vld [vmem:[%s498 + $0x70] sm:$0xff]
        %v514 = vld [vmem:[%s498 + $0x78] sm:$0xff]
        %v515 = vld [vmem:[%s498 + $0x80] sm:$0xff]
        %v516 = vld [vmem:[%s498 + $0x88] sm:$0xff]
        %v517 = vld [vmem:[%s498 + $0x90] sm:$0xff]
        %v518 = vld [vmem:[%s498 + $0x98] sm:$0xff]
        %v519 = vld [vmem:[%s498 + $0xa0] sm:$0xff]
        %v520 = vld [vmem:[%s498 + $0xa8] sm:$0xff]
        %v521 = vld [vmem:[%s498 + $0xb0] sm:$0xff]
        %v522 = vld [vmem:[%s498 + $0xb8] sm:$0xff]
        %v523 = vld [vmem:[%s498 + $0xc0] sm:$0xff]
        %v524 = vld [vmem:[%s498 + $0xc8] sm:$0xff]
        %v525 = vld [vmem:[%s498 + $0xd0] sm:$0xff]
        %v526 = vld [vmem:[%s498 + $0xd8] sm:$0xff]
        %v527 = vld [vmem:[%s498 + $0xe0] sm:$0xff]
        %v528 = vld [vmem:[%s498 + $0xe8] sm:$0xff]
        %v529 = vld [vmem:[%s498 + $0xf0] sm:$0xff]
        %v530 = vld [vmem:[%s498 + $0xf8] sm:$0xff]
        %v532 = vlaneseq
        %v533 = vshrl.u32 %v532, 7
        %v534 = vsub.s32 0, %v533
        %v535 = vrot.slane %v422, %v534
        %v569 = vunpack.c.l.b16 %v499
        %v570 = vunpack.c.h.b16 %v499
        %v571 = vunpack.c.l.b16 %v500
        %v572 = vunpack.c.h.b16 %v500
        %v573 = vunpack.c.l.b16 %v501
        %v574 = vunpack.c.h.b16 %v501
        %v575 = vunpack.c.l.b16 %v502
        %v576 = vunpack.c.h.b16 %v502
        %v577 = vunpack.c.l.b16 %v503
        %v578 = vunpack.c.h.b16 %v503
        %v579 = vunpack.c.l.b16 %v504
        %v580 = vunpack.c.h.b16 %v504
        %v581 = vunpack.c.l.b16 %v505
        %v582 = vunpack.c.h.b16 %v505
        %v583 = vunpack.c.l.b16 %v506
        %v584 = vunpack.c.h.b16 %v506
        %v585 = vunpack.c.l.b16 %v507
        %v586 = vunpack.c.h.b16 %v507
        %v587 = vunpack.c.l.b16 %v508
        %v588 = vunpack.c.h.b16 %v508
        %v589 = vunpack.c.l.b16 %v509
        %v590 = vunpack.c.h.b16 %v509
        %v591 = vunpack.c.l.b16 %v510
        %v592 = vunpack.c.h.b16 %v510
        %v593 = vunpack.c.l.b16 %v511
        %v594 = vunpack.c.h.b16 %v511
        %v595 = vunpack.c.l.b16 %v512
        %v596 = vunpack.c.h.b16 %v512
        %v597 = vunpack.c.l.b16 %v513
        %v598 = vunpack.c.h.b16 %v513
        %v599 = vunpack.c.l.b16 %v514
        %v600 = vunpack.c.h.b16 %v514
        %v601 = vunpack.c.l.b16 %v515
        %v602 = vunpack.c.h.b16 %v515
        %v603 = vunpack.c.l.b16 %v516
        %v604 = vunpack.c.h.b16 %v516
        %v605 = vunpack.c.l.b16 %v517
        %v606 = vunpack.c.h.b16 %v517
        %v607 = vunpack.c.l.b16 %v518
        %v608 = vunpack.c.h.b16 %v518
        %v609 = vunpack.c.l.b16 %v519
        %v610 = vunpack.c.h.b16 %v519
        %v611 = vunpack.c.l.b16 %v520
        %v612 = vunpack.c.h.b16 %v520
        %v613 = vunpack.c.l.b16 %v521
        %v614 = vunpack.c.h.b16 %v521
        %v615 = vunpack.c.l.b16 %v522
        %v616 = vunpack.c.h.b16 %v522
        %v617 = vunpack.c.l.b16 %v523
        %v618 = vunpack.c.h.b16 %v523
        %v619 = vunpack.c.l.b16 %v524
        %v620 = vunpack.c.h.b16 %v524
        %v621 = vunpack.c.l.b16 %v525
        %v622 = vunpack.c.h.b16 %v525
        %v623 = vunpack.c.l.b16 %v526
        %v624 = vunpack.c.h.b16 %v526
        %v625 = vunpack.c.l.b16 %v527
        %v626 = vunpack.c.h.b16 %v527
        %v627 = vunpack.c.l.b16 %v528
        %v628 = vunpack.c.h.b16 %v528
        %v629 = vunpack.c.l.b16 %v529
        %v630 = vunpack.c.h.b16 %v529
        %v631 = vunpack.c.l.b16 %v530
        %v632 = vunpack.c.h.b16 %v530
        %v633 = vpack.c.b16 %v573, %v569
        %v634 = vpack.c.b16 %v574, %v570
        %v635 = vpack.c.b16 %v575, %v571
        %v636 = vpack.c.b16 %v576, %v572
        %v637 = vpack.c.b16 %v581, %v577
        %v638 = vpack.c.b16 %v582, %v578
        %v639 = vpack.c.b16 %v583, %v579
        %v640 = vpack.c.b16 %v584, %v580
        %v641 = vpack.c.b16 %v589, %v585
        %v642 = vpack.c.b16 %v590, %v586
        %v643 = vpack.c.b16 %v591, %v587
        %v644 = vpack.c.b16 %v592, %v588
        %v645 = vpack.c.b16 %v597, %v593
        %v646 = vpack.c.b16 %v598, %v594
        %v647 = vpack.c.b16 %v599, %v595
        %v648 = vpack.c.b16 %v600, %v596
        %v649 = vpack.c.b16 %v605, %v601
        %v650 = vpack.c.b16 %v606, %v602
        %v651 = vpack.c.b16 %v607, %v603
        %v652 = vpack.c.b16 %v608, %v604
        %v653 = vpack.c.b16 %v613, %v609
        %v654 = vpack.c.b16 %v614, %v610
        %v655 = vpack.c.b16 %v615, %v611
        %v656 = vpack.c.b16 %v616, %v612
        %v657 = vpack.c.b16 %v621, %v617
        %v658 = vpack.c.b16 %v622, %v618
        %v659 = vpack.c.b16 %v623, %v619
        %v660 = vpack.c.b16 %v624, %v620
        %v661 = vpack.c.b16 %v629, %v625
        %v662 = vpack.c.b16 %v630, %v626
        %v663 = vpack.c.b16 %v631, %v627
        %v664 = vpack.c.b16 %v632, %v628
        %v761 = vunpack.c.l.b16 %v358
        %v762 = vunpack.c.l.b16 %v359
        %v763 = vunpack.c.l.b16 %v360
        %v764 = vunpack.c.l.b16 %v361
        %v765 = vunpack.c.l.b16 %v362
        %v766 = vunpack.c.l.b16 %v363
        %v767 = vunpack.c.l.b16 %v364
        %v768 = vunpack.c.l.b16 %v365
        %v769 = vunpack.c.l.b16 %v366
        %v770 = vunpack.c.l.b16 %v367
        %v771 = vunpack.c.l.b16 %v368
        %v772 = vunpack.c.l.b16 %v369
        %v773 = vunpack.c.l.b16 %v370
        %v774 = vunpack.c.l.b16 %v371
        %v775 = vunpack.c.l.b16 %v372
        %v776 = vunpack.c.l.b16 %v373
        %v777 = vunpack.c.l.b16 %v374
        %v778 = vunpack.c.l.b16 %v375
        %v779 = vunpack.c.l.b16 %v376
        %v780 = vunpack.c.l.b16 %v377
        %v781 = vunpack.c.l.b16 %v378
        %v782 = vunpack.c.l.b16 %v379
        %v783 = vunpack.c.l.b16 %v380
        %v784 = vunpack.c.l.b16 %v381
        %v785 = vunpack.c.l.b16 %v382
        %v786 = vunpack.c.l.b16 %v383
        %v787 = vunpack.c.l.b16 %v384
        %v788 = vunpack.c.l.b16 %v385
        %v789 = vunpack.c.l.b16 %v386
        %v790 = vunpack.c.l.b16 %v387
        %v791 = vunpack.c.l.b16 %v388
        %v792 = vunpack.c.l.b16 %v389
        %v793 = vunpack.c.l.b16 %v390
        %v794 = vunpack.c.l.b16 %v391
        %v795 = vunpack.c.l.b16 %v392
        %v796 = vunpack.c.l.b16 %v393
        %v797 = vunpack.c.l.b16 %v394
        %v798 = vunpack.c.l.b16 %v395
        %v799 = vunpack.c.l.b16 %v396
        %v800 = vunpack.c.l.b16 %v397
        %v801 = vunpack.c.l.b16 %v398
        %v802 = vunpack.c.l.b16 %v399
        %v803 = vunpack.c.l.b16 %v400
        %v804 = vunpack.c.l.b16 %v401
        %v805 = vunpack.c.l.b16 %v402
        %v806 = vunpack.c.l.b16 %v403
        %v807 = vunpack.c.l.b16 %v404
        %v808 = vunpack.c.l.b16 %v405
        %v809 = vunpack.c.l.b16 %v406
        %v810 = vunpack.c.l.b16 %v407
        %v811 = vunpack.c.l.b16 %v408
        %v812 = vunpack.c.l.b16 %v409
        %v813 = vunpack.c.l.b16 %v410
        %v814 = vunpack.c.l.b16 %v411
        %v815 = vunpack.c.l.b16 %v412
        %v816 = vunpack.c.l.b16 %v413
        %v817 = vunpack.c.l.b16 %v414
        %v818 = vunpack.c.l.b16 %v415
        %v819 = vunpack.c.l.b16 %v416
        %v820 = vunpack.c.l.b16 %v417
        %v821 = vunpack.c.l.b16 %v418
        %v822 = vunpack.c.l.b16 %v419
        %v823 = vunpack.c.l.b16 %v420
        %v824 = vunpack.c.l.b16 %v421
        %v825 = vpack.c.b16 %v762, %v761
        %v826 = vpack.c.b16 %v764, %v763
        %v827 = vpack.c.b16 %v766, %v765
        %v828 = vpack.c.b16 %v768, %v767
        %v829 = vpack.c.b16 %v770, %v769
        %v830 = vpack.c.b16 %v772, %v771
        %v831 = vpack.c.b16 %v774, %v773
        %v832 = vpack.c.b16 %v776, %v775
        %v833 = vpack.c.b16 %v778, %v777
        %v834 = vpack.c.b16 %v780, %v779
        %v835 = vpack.c.b16 %v782, %v781
        %v836 = vpack.c.b16 %v784, %v783
        %v837 = vpack.c.b16 %v786, %v785
        %v838 = vpack.c.b16 %v788, %v787
        %v839 = vpack.c.b16 %v790, %v789
        %v840 = vpack.c.b16 %v792, %v791
        %v841 = vpack.c.b16 %v794, %v793
        %v842 = vpack.c.b16 %v796, %v795
        %v843 = vpack.c.b16 %v798, %v797
        %v844 = vpack.c.b16 %v800, %v799
        %v845 = vpack.c.b16 %v802, %v801
        %v846 = vpack.c.b16 %v804, %v803
        %v847 = vpack.c.b16 %v806, %v805
        %v848 = vpack.c.b16 %v808, %v807
        %v849 = vpack.c.b16 %v810, %v809
        %v850 = vpack.c.b16 %v812, %v811
        %v851 = vpack.c.b16 %v814, %v813
        %v852 = vpack.c.b16 %v816, %v815
        %v853 = vpack.c.b16 %v818, %v817
        %v854 = vpack.c.b16 %v820, %v819
        %v855 = vpack.c.b16 %v822, %v821
        %v856 = vpack.c.b16 %v824, %v823
        %889 = vmatprep.subr.bf16.mxu0 0
        %890 = vmatpush1.bf16.msra.mxu0 %v825
        %891 = vmatprep.subr.bf16.mxu0 0
        %892 = vmatpush1.bf16.msra.mxu0 %v826
        %893 = vmatprep.subr.bf16.mxu0 0
        %894 = vmatpush1.bf16.msra.mxu0 %v827
        %895 = vmatprep.subr.bf16.mxu0 0
        %896 = vmatpush1.bf16.msra.mxu0 %v828
        %897 = vmatprep.subr.bf16.mxu0 0
        %898 = vmatpush1.bf16.msra.mxu0 %v829
        %899 = vmatprep.subr.bf16.mxu0 0
        %900 = vmatpush1.bf16.msra.mxu0 %v830
        %901 = vmatprep.subr.bf16.mxu0 0
        %902 = vmatpush1.bf16.msra.mxu0 %v831
        %903 = vmatprep.subr.bf16.mxu0 0
        %904 = vmatpush1.bf16.msra.mxu0 %v832
        %905 = vmatprep.subr.bf16.mxu0 0
        %906 = vmatpush1.bf16.msra.mxu0 %v833
        %907 = vmatprep.subr.bf16.mxu0 0
        %908 = vmatpush1.bf16.msra.mxu0 %v834
        %909 = vmatprep.subr.bf16.mxu0 0
        %910 = vmatpush1.bf16.msra.mxu0 %v835
        %911 = vmatprep.subr.bf16.mxu0 0
        %912 = vmatpush1.bf16.msra.mxu0 %v836
        %913 = vmatprep.subr.bf16.mxu0 0
        %914 = vmatpush1.bf16.msra.mxu0 %v837
        %915 = vmatprep.subr.bf16.mxu0 0
        %916 = vmatpush1.bf16.msra.mxu0 %v838
        %917 = vmatprep.subr.bf16.mxu0 0
        %918 = vmatpush1.bf16.msra.mxu0 %v839
        %919 = vmatprep.subr.bf16.mxu0 0
        %920 = vmatpush1.bf16.msra.mxu0 %v840
        %921 = vmatprep.mubr.bf16.mxu0 %v634
        %922 = vmatmul.mubr.bf16.gmra.mrb[0].mxu0 %v633
        %v923 = vpop.f32.mrb[0].mxu0
        %v924 = vadd.f32 %v535, %v923
        %v925 = vpop.f32.mrb[0].mxu0
        %v926 = vpop.f32.mrb[0].mxu0
        %v927 = vadd.f32 %v535, %v926
        %v928 = vpop.f32.mrb[0].mxu0
        %929 = vmatprep.mubr.bf16.mxu0 %v638
        %930 = vmatmul.mubr.bf16.gmra.mrb[0].mxu0 %v637
        %v931 = vpop.f32.mrb[0].mxu0
        %v932 = vadd.f32 %v535, %v931
        %v933 = vpop.f32.mrb[0].mxu0
        %v934 = vpop.f32.mrb[0].mxu0
        %v935 = vadd.f32 %v535, %v934
        %v936 = vpop.f32.mrb[0].mxu0
        %937 = vmatprep.mubr.bf16.mxu0 %v642
        %938 = vmatmul.mubr.bf16.gmra.mrb[0].mxu0 %v641
        %v939 = vpop.f32.mrb[0].mxu0
        %v940 = vadd.f32 %v535, %v939
        %v941 = vpop.f32.mrb[0].mxu0
        %v942 = vpop.f32.mrb[0].mxu0
        %v943 = vadd.f32 %v535, %v942
        %v944 = vpop.f32.mrb[0].mxu0
        %945 = vmatprep.mubr.bf16.mxu0 %v646
        %946 = vmatmul.mubr.bf16.gmra.mrb[0].mxu0 %v645
        %v947 = vpop.f32.mrb[0].mxu0
        %v948 = vadd.f32 %v535, %v947
        %v949 = vpop.f32.mrb[0].mxu0
        %v950 = vpop.f32.mrb[0].mxu0
        %v951 = vadd.f32 %v535, %v950
        %v952 = vpop.f32.mrb[0].mxu0
        %953 = vmatprep.mubr.bf16.mxu0 %v650
        %954 = vmatmul.mubr.bf16.gmra.mrb[0].mxu0 %v649
        %v955 = vpop.f32.mrb[0].mxu0
        %v956 = vadd.f32 %v535, %v955
        %v957 = vpop.f32.mrb[0].mxu0
        %v958 = vpop.f32.mrb[0].mxu0
        %v959 = vadd.f32 %v535, %v958
        %v960 = vpop.f32.mrb[0].mxu0
        %961 = vmatprep.mubr.bf16.mxu0 %v654
        %962 = vmatmul.mubr.bf16.gmra.mrb[0].mxu0 %v653
        %v963 = vpop.f32.mrb[0].mxu0
        %v964 = vadd.f32 %v535, %v963
        %v965 = vpop.f32.mrb[0].mxu0
        %v966 = vpop.f32.mrb[0].mxu0
        %v967 = vadd.f32 %v535, %v966
        %v968 = vpop.f32.mrb[0].mxu0
        %969 = vmatprep.mubr.bf16.mxu0 %v658
        %970 = vmatmul.mubr.bf16.gmra.mrb[0].mxu0 %v657
        %v971 = vpop.f32.mrb[0].mxu0
        %v972 = vadd.f32 %v535, %v971
        %v973 = vpop.f32.mrb[0].mxu0
        %v974 = vpop.f32.mrb[0].mxu0
        %v975 = vadd.f32 %v535, %v974
        %v976 = vpop.f32.mrb[0].mxu0
        %977 = vmatprep.mubr.bf16.mxu0 %v662
        %978 = vmatmul.mubr.bf16.gmra.mrb[0].mxu0 %v661
        %v979 = vpop.f32.mrb[0].mxu0
        %v980 = vadd.f32 %v535, %v979
        %v981 = vpop.f32.mrb[0].mxu0
        %v982 = vpop.f32.mrb[0].mxu0
        %v983 = vadd.f32 %v535, %v982
        %v984 = vpop.f32.mrb[0].mxu0
        %985 = vdwg.mxu0
        %986 = vmatprep.subr.bf16.mxu0 0
        %987 = vmatpush1.bf16.msra.mxu0 %v841
        %988 = vmatprep.subr.bf16.mxu0 0
        %989 = vmatpush1.bf16.msra.mxu0 %v842
        %990 = vmatprep.subr.bf16.mxu0 0
        %991 = vmatpush1.bf16.msra.mxu0 %v843
        %992 = vmatprep.subr.bf16.mxu0 0
        %993 = vmatpush1.bf16.msra.mxu0 %v844
        %994 = vmatprep.subr.bf16.mxu0 0
        %995 = vmatpush1.bf16.msra.mxu0 %v845
        %996 = vmatprep.subr.bf16.mxu0 0
        %997 = vmatpush1.bf16.msra.mxu0 %v846
        %998 = vmatprep.subr.bf16.mxu0 0
        %999 = vmatpush1.bf16.msra.mxu0 %v847
        %1000 = vmatprep.subr.bf16.mxu0 0
        %1001 = vmatpush1.bf16.msra.mxu0 %v848
        %1002 = vmatprep.subr.bf16.mxu0 0
        %1003 = vmatpush1.bf16.msra.mxu0 %v849
        %1004 = vmatprep.subr.bf16.mxu0 0
        %1005 = vmatpush1.bf16.msra.mxu0 %v850
        %1006 = vmatprep.subr.bf16.mxu0 0
        %1007 = vmatpush1.bf16.msra.mxu0 %v851
        %1008 = vmatprep.subr.bf16.mxu0 0
        %1009 = vmatpush1.bf16.msra.mxu0 %v852
        %1010 = vmatprep.subr.bf16.mxu0 0
        %1011 = vmatpush1.bf16.msra.mxu0 %v853
        %1012 = vmatprep.subr.bf16.mxu0 0
        %1013 = vmatpush1.bf16.msra.mxu0 %v854
        %1014 = vmatprep.subr.bf16.mxu0 0
        %1015 = vmatpush1.bf16.msra.mxu0 %v855
        %1016 = vmatprep.subr.bf16.mxu0 0
        %1017 = vmatpush1.bf16.msra.mxu0 %v856
        %1018 = vmatprep.mubr.bf16.mxu0 %v636
        %1019 = vmatmul.mubr.bf16.gmra.mrb[0].mxu0 %v635
        %v1020 = vpop.f32.mrb[0].mxu0
        %v1021 = vadd.f32 %v924, %v1020
        %v1022 = vpop.f32.mrb[0].mxu0
        %v1023 = vpop.f32.mrb[0].mxu0
        %v1024 = vadd.f32 %v927, %v1023
        %v1025 = vpop.f32.mrb[0].mxu0
        %1026 = vmatprep.mubr.bf16.mxu0 %v640
        %1027 = vmatmul.mubr.bf16.gmra.mrb[0].mxu0 %v639
        %v1028 = vpop.f32.mrb[0].mxu0
        %v1029 = vadd.f32 %v932, %v1028
        %v1030 = vpop.f32.mrb[0].mxu0
        %v1031 = vpop.f32.mrb[0].mxu0
        %v1032 = vadd.f32 %v935, %v1031
        %v1033 = vpop.f32.mrb[0].mxu0
        %1034 = vmatprep.mubr.bf16.mxu0 %v644
        %1035 = vmatmul.mubr.bf16.gmra.mrb[0].mxu0 %v643
        %v1036 = vpop.f32.mrb[0].mxu0
        %v1037 = vadd.f32 %v940, %v1036
        %v1038 = vpop.f32.mrb[0].mxu0
        %v1039 = vpop.f32.mrb[0].mxu0
        %v1040 = vadd.f32 %v943, %v1039
        %v1041 = vpop.f32.mrb[0].mxu0
        %1042 = vmatprep.mubr.bf16.mxu0 %v648
        %1043 = vmatmul.mubr.bf16.gmra.mrb[0].mxu0 %v647
        %v1044 = vpop.f32.mrb[0].mxu0
        %v1045 = vadd.f32 %v948, %v1044
        %v1046 = vpop.f32.mrb[0].mxu0
        %v1047 = vpop.f32.mrb[0].mxu0
        %v1048 = vadd.f32 %v951, %v1047
        %v1049 = vpop.f32.mrb[0].mxu0
        %1050 = vmatprep.mubr.bf16.mxu0 %v652
        %1051 = vmatmul.mubr.bf16.gmra.mrb[0].mxu0 %v651
        %v1052 = vpop.f32.mrb[0].mxu0
        %v1053 = vadd.f32 %v956, %v1052
        %v1054 = vpop.f32.mrb[0].mxu0
        %v1055 = vpop.f32.mrb[0].mxu0
        %v1056 = vadd.f32 %v959, %v1055
        %v1057 = vpop.f32.mrb[0].mxu0
        %1058 = vmatprep.mubr.bf16.mxu0 %v656
        %1059 = vmatmul.mubr.bf16.gmra.mrb[0].mxu0 %v655
        %v1060 = vpop.f32.mrb[0].mxu0
        %v1061 = vadd.f32 %v964, %v1060
        %v1062 = vpop.f32.mrb[0].mxu0
        %v1063 = vpop.f32.mrb[0].mxu0
        %v1064 = vadd.f32 %v967, %v1063
        %v1065 = vpop.f32.mrb[0].mxu0
        %1066 = vmatprep.mubr.bf16.mxu0 %v660
        %1067 = vmatmul.mubr.bf16.gmra.mrb[0].mxu0 %v659
        %v1068 = vpop.f32.mrb[0].mxu0
        %v1069 = vadd.f32 %v972, %v1068
        %v1070 = vpop.f32.mrb[0].mxu0
        %v1071 = vpop.f32.mrb[0].mxu0
        %v1072 = vadd.f32 %v975, %v1071
        %v1073 = vpop.f32.mrb[0].mxu0
        %1074 = vmatprep.mubr.bf16.mxu0 %v664
        %1075 = vmatmul.mubr.bf16.gmra.mrb[0].mxu0 %v663
        %v1076 = vpop.f32.mrb[0].mxu0
        %v1077 = vadd.f32 %v980, %v1076
        %v1078 = vpop.f32.mrb[0].mxu0
        %v1079 = vpop.f32.mrb[0].mxu0
        %v1080 = vadd.f32 %v983, %v1079
        %v1081 = vpop.f32.mrb[0].mxu0
        %1082 = vdwg.mxu0
        %v1083 = vmax.f32 %v1021, 0.0
        %v1084 = vmax.f32 %v1024, 0.0
        %v1085 = vmax.f32 %v1029, 0.0
        %v1086 = vmax.f32 %v1032, 0.0
        %v1087 = vmax.f32 %v1037, 0.0
        %v1088 = vmax.f32 %v1040, 0.0
        %v1089 = vmax.f32 %v1045, 0.0
        %v1090 = vmax.f32 %v1048, 0.0
        %v1091 = vmax.f32 %v1053, 0.0
        %v1092 = vmax.f32 %v1056, 0.0
        %v1093 = vmax.f32 %v1061, 0.0
        %v1094 = vmax.f32 %v1064, 0.0
        %v1095 = vmax.f32 %v1069, 0.0
        %v1096 = vmax.f32 %v1072, 0.0
        %v1097 = vmax.f32 %v1077, 0.0
        %v1098 = vmax.f32 %v1080, 0.0
        %v1099 = vpack.c.bf16 %v1084, %v1083
        %v1100 = vpack.c.bf16 %v1086, %v1085
        %v1101 = vpack.c.bf16 %v1088, %v1087
        %v1102 = vpack.c.bf16 %v1090, %v1089
        %v1103 = vpack.c.bf16 %v1092, %v1091
        %v1104 = vpack.c.bf16 %v1094, %v1093
        %v1105 = vpack.c.bf16 %v1096, %v1095
        %v1106 = vpack.c.bf16 %v1098, %v1097
        %v1115 = vunpack.c.l.b16 %v1099
        %v1116 = vunpack.c.h.b16 %v1099
        %v1117 = vunpack.c.l.b16 %v1100
        %v1118 = vunpack.c.h.b16 %v1100
        %v1119 = vunpack.c.l.b16 %v1101
        %v1120 = vunpack.c.h.b16 %v1101
        %v1121 = vunpack.c.l.b16 %v1102
        %v1122 = vunpack.c.h.b16 %v1102
        %v1123 = vunpack.c.l.b16 %v1103
        %v1124 = vunpack.c.h.b16 %v1103
        %v1125 = vunpack.c.l.b16 %v1104
        %v1126 = vunpack.c.h.b16 %v1104
        %v1127 = vunpack.c.l.b16 %v1105
        %v1128 = vunpack.c.h.b16 %v1105
        %v1129 = vunpack.c.l.b16 %v1106
        %v1130 = vunpack.c.h.b16 %v1106
        %v1131 = vpack.c.b16 %v1115, %v1115
        %v1132 = vpack.c.b16 %v1116, %v1116
        %v1133 = vpack.c.b16 %v1117, %v1117
        %v1134 = vpack.c.b16 %v1118, %v1118
        %v1135 = vpack.c.b16 %v1119, %v1119
        %v1136 = vpack.c.b16 %v1120, %v1120
        %v1137 = vpack.c.b16 %v1121, %v1121
        %v1138 = vpack.c.b16 %v1122, %v1122
        %v1139 = vpack.c.b16 %v1123, %v1123
        %v1140 = vpack.c.b16 %v1124, %v1124
        %v1141 = vpack.c.b16 %v1125, %v1125
        %v1142 = vpack.c.b16 %v1126, %v1126
        %v1143 = vpack.c.b16 %v1127, %v1127
        %v1144 = vpack.c.b16 %v1128, %v1128
        %v1145 = vpack.c.b16 %v1129, %v1129
        %v1146 = vpack.c.b16 %v1130, %v1130
        %vm1147 = vsmask.f32 4368
        %vm1148 = vmor %vm432, %vm1147
        %v1150 = vshrl.u32 %v1131, 16
        %v1152 = vrot.slane %v1150, 7
        %v1153 = vshll.u32 %v1131, 16
        %v1155 = vor.u32 %v1152, %v1153
        %v1156 = vrot.slane %v1152, 4
        %v1158 = vshrl.u32 %v1132, 16
        %v1160 = vrot.slane %v1158, 7
        %v1161 = vshll.u32 %v1132, 16
        %v1163 = vor.u32 %v1160, %v1161
        %v1164 = vsel %vm1148, %v1156, %v1163
        %v1165 = vrot.slane %v1160, 4
        %v1167 = vshrl.u32 %v1133, 16
        %v1169 = vrot.slane %v1167, 7
        %v1170 = vshll.u32 %v1133, 16
        %v1172 = vor.u32 %v1169, %v1170
        %v1173 = vrot.slane %v1169, 4
        %v1175 = vshrl.u32 %v1134, 16
        %v1177 = vrot.slane %v1175, 7
        %v1178 = vshll.u32 %v1134, 16
        %v1180 = vor.u32 %v1177, %v1178
        %v1181 = vsel %vm1148, %v1173, %v1180
        %v1182 = vrot.slane %v1177, 4
        %v1184 = vshrl.u32 %v1135, 16
        %v1186 = vrot.slane %v1184, 7
        %v1187 = vshll.u32 %v1135, 16
        %v1189 = vor.u32 %v1186, %v1187
        %v1190 = vrot.slane %v1186, 4
        %v1192 = vshrl.u32 %v1136, 16
        %v1194 = vrot.slane %v1192, 7
        %v1195 = vshll.u32 %v1136, 16
        %v1197 = vor.u32 %v1194, %v1195
        %v1198 = vsel %vm1148, %v1190, %v1197
        %v1199 = vrot.slane %v1194, 4
        %v1201 = vshrl.u32 %v1137, 16
        %v1203 = vrot.slane %v1201, 7
        %v1204 = vshll.u32 %v1137, 16
        %v1206 = vor.u32 %v1203, %v1204
        %v1207 = vrot.slane %v1203, 4
        %v1209 = vshrl.u32 %v1138, 16
        %v1211 = vrot.slane %v1209, 7
        %v1212 = vshll.u32 %v1138, 16
        %v1214 = vor.u32 %v1211, %v1212
        %v1215 = vsel %vm1148, %v1207, %v1214
        %v1216 = vrot.slane %v1211, 4
        %v1218 = vshrl.u32 %v1139, 16
        %v1220 = vrot.slane %v1218, 7
        %v1221 = vshll.u32 %v1139, 16
        %v1223 = vor.u32 %v1220, %v1221
        %v1224 = vrot.slane %v1220, 4
        %v1226 = vshrl.u32 %v1140, 16
        %v1228 = vrot.slane %v1226, 7
        %v1229 = vshll.u32 %v1140, 16
        %v1231 = vor.u32 %v1228, %v1229
        %v1232 = vsel %vm1148, %v1224, %v1231
        %v1233 = vrot.slane %v1228, 4
        %v1235 = vshrl.u32 %v1141, 16
        %v1237 = vrot.slane %v1235, 7
        %v1238 = vshll.u32 %v1141, 16
        %v1240 = vor.u32 %v1237, %v1238
        %v1241 = vrot.slane %v1237, 4
        %v1243 = vshrl.u32 %v1142, 16
        %v1245 = vrot.slane %v1243, 7
        %v1246 = vshll.u32 %v1142, 16
        %v1248 = vor.u32 %v1245, %v1246
        %v1249 = vsel %vm1148, %v1241, %v1248
        %v1250 = vrot.slane %v1245, 4
        %v1252 = vshrl.u32 %v1143, 16
        %v1254 = vrot.slane %v1252, 7
        %v1255 = vshll.u32 %v1143, 16
        %v1257 = vor.u32 %v1254, %v1255
        %v1258 = vrot.slane %v1254, 4
        %v1260 = vshrl.u32 %v1144, 16
        %v1262 = vrot.slane %v1260, 7
        %v1263 = vshll.u32 %v1144, 16
        %v1265 = vor.u32 %v1262, %v1263
        %v1266 = vsel %vm1148, %v1258, %v1265
        %v1267 = vrot.slane %v1262, 4
        %v1269 = vshrl.u32 %v1145, 16
        %v1271 = vrot.slane %v1269, 7
        %v1272 = vshll.u32 %v1145, 16
        %v1274 = vor.u32 %v1271, %v1272
        %v1275 = vrot.slane %v1271, 4
        %v1277 = vshrl.u32 %v1146, 16
        %v1279 = vrot.slane %v1277, 7
        %v1280 = vshll.u32 %v1146, 16
        %v1282 = vor.u32 %v1279, %v1280
        %v1283 = vsel %vm1148, %v1275, %v1282
        %v1284 = vrot.slane %v1279, 4
        %s1309 = scalar_lea.vmem [#allocation2], 12
        %vm1310 = vcmask 1043456
        %vm1311 = vmand %vm1310, %vm464
        %v1312 = vld [vmem:[%s1309] sm:$0xf]
        %v1313 = vsel %vm1311, %v1155, %v1312
        %1314 = vst [vmem:[%s1309] sm:$0xf] %v1313
        %1315 = vst [vmem:[%s1309 + $0x4] sm:$0xf] %v1164
        %v1316 = vld [vmem:[%s1309 + $0x8] sm:$0x1]
        %v1317 = vsel %vm433, %v1165, %v1316
        %1318 = vst [vmem:[%s1309 + $0x8] sm:$0x1] %v1317
        %v1319 = vld [vmem:[%s1309 + $0xc] sm:$0xf]
        %v1320 = vsel %vm1311, %v1172, %v1319
        %1321 = vst [vmem:[%s1309 + $0xc] sm:$0xf] %v1320
        %1322 = vst [vmem:[%s1309 + $0x10] sm:$0xf] %v1181
        %v1323 = vld [vmem:[%s1309 + $0x14] sm:$0x1]
        %v1324 = vsel %vm433, %v1182, %v1323
        %1325 = vst [vmem:[%s1309 + $0x14] sm:$0x1] %v1324
        %v1326 = vld [vmem:[%s1309 + $0x18] sm:$0xf]
        %v1327 = vsel %vm1311, %v1189, %v1326
        %1328 = vst [vmem:[%s1309 + $0x18] sm:$0xf] %v1327
        %1329 = vst [vmem:[%s1309 + $0x1c] sm:$0xf] %v1198
        %v1330 = vld [vmem:[%s1309 + $0x20] sm:$0x1]
        %v1331 = vsel %vm433, %v1199, %v1330
        %1332 = vst [vmem:[%s1309 + $0x20] sm:$0x1] %v1331
        %v1333 = vld [vmem:[%s1309 + $0x24] sm:$0xf]
        %v1334 = vsel %vm1311, %v1206, %v1333
        %1335 = vst [vmem:[%s1309 + $0x24] sm:$0xf] %v1334
        %1336 = vst [vmem:[%s1309 + $0x28] sm:$0xf] %v1215
        %v1337 = vld [vmem:[%s1309 + $0x2c] sm:$0x1]
        %v1338 = vsel %vm433, %v1216, %v1337
        %1339 = vst [vmem:[%s1309 + $0x2c] sm:$0x1] %v1338
        %v1340 = vld [vmem:[%s1309 + $0x30] sm:$0xf]
        %v1341 = vsel %vm1311, %v1223, %v1340
        %1342 = vst [vmem:[%s1309 + $0x30] sm:$0xf] %v1341
        %1343 = vst [vmem:[%s1309 + $0x34] sm:$0xf] %v1232
        %v1344 = vld [vmem:[%s1309 + $0x38] sm:$0x1]
        %v1345 = vsel %vm433, %v1233, %v1344
        %1346 = vst [vmem:[%s1309 + $0x38] sm:$0x1] %v1345
        %v1347 = vld [vmem:[%s1309 + $0x3c] sm:$0xf]
        %v1348 = vsel %vm1311, %v1240, %v1347
        %1349 = vst [vmem:[%s1309 + $0x3c] sm:$0xf] %v1348
        %1350 = vst [vmem:[%s1309 + $0x40] sm:$0xf] %v1249
        %v1351 = vld [vmem:[%s1309 + $0x44] sm:$0x1]
        %v1352 = vsel %vm433, %v1250, %v1351
        %1353 = vst [vmem:[%s1309 + $0x44] sm:$0x1] %v1352
        %v1354 = vld [vmem:[%s1309 + $0x48] sm:$0xf]
        %v1355 = vsel %vm1311, %v1257, %v1354
        %1356 = vst [vmem:[%s1309 + $0x48] sm:$0xf] %v1355
        %1357 = vst [vmem:[%s1309 + $0x4c] sm:$0xf] %v1266
        %v1358 = vld [vmem:[%s1309 + $0x50] sm:$0x1]
        %v1359 = vsel %vm433, %v1267, %v1358
        %1360 = vst [vmem:[%s1309 + $0x50] sm:$0x1] %v1359
        %v1361 = vld [vmem:[%s1309 + $0x54] sm:$0xf]
        %v1362 = vsel %vm1311, %v1274, %v1361
        %1363 = vst [vmem:[%s1309 + $0x54] sm:$0xf] %v1362
        %1364 = vst [vmem:[%s1309 + $0x58] sm:$0xf] %v1283
        %v1365 = vld [vmem:[%s1309 + $0x5c] sm:$0x1]
        %v1366 = vsel %vm433, %v1284, %v1365
        %1367 = vst [vmem:[%s1309 + $0x5c] sm:$0x1] %v1366
        %p1368 = scmp.gt.s32.totalorder %s31, 0
        // Predicated region
        $region65: #{tpu_custom_call.1} parent=47 // pred_check
          %p1369 = pneg %p1368
        $region66: #{tpu_custom_call.1} parent=47 // pred_check_branch
          %1371 = sbr.rel (%p1369) target = $region68
        $region67: #{tpu_custom_call.1} parent=47 // pred_region
          %s1372 = ssub.s32 %s357, 1
          %s1373 = smul.u32 %s1372, 8
          %s1374 = smul.addr %s1373, 4
          %s1375 = scalar_lea.vmem %s312, %s1374 [#allocation3]
          %v1376 = vld [vmem:[%s1375] sm:$0xff]
          %v1377 = vld [vmem:[%s1375 + $0x8] sm:$0xff]
          %v1378 = vld [vmem:[%s1375 + $0x10] sm:$0xff]
          %v1379 = vld [vmem:[%s1375 + $0x18] sm:$0xff]
          %v1384 = vunpack.c.l.b16 %v1376
          %v1385 = vunpack.c.h.b16 %v1376
          %v1386 = vunpack.c.l.b16 %v1377
          %v1387 = vunpack.c.h.b16 %v1377
          %v1388 = vunpack.c.l.b16 %v1378
          %v1389 = vunpack.c.h.b16 %v1378
          %v1390 = vunpack.c.l.b16 %v1379
          %v1391 = vunpack.c.h.b16 %v1379
          %v1392 = vpack.c.b16 %v1388, %v1384
          %v1393 = vpack.c.b16 %v1389, %v1385
          %v1394 = vpack.c.b16 %v1390, %v1386
          %v1395 = vpack.c.b16 %v1391, %v1387
          %1400 = vmatprep.subr.bf16.mxu0 0
          %1401 = vmatpush1.bf16.msra.mxu0 %v825
          %1402 = vmatprep.subr.bf16.mxu0 0
          %1403 = vmatpush1.bf16.msra.mxu0 %v826
          %1404 = vmatprep.subr.bf16.mxu0 0
          %1405 = vmatpush1.bf16.msra.mxu0 %v827
          %1406 = vmatprep.subr.bf16.mxu0 0
          %1407 = vmatpush1.bf16.msra.mxu0 %v828
          %1408 = vmatprep.subr.bf16.mxu0 0
          %1409 = vmatpush1.bf16.msra.mxu0 %v829
          %1410 = vmatprep.subr.bf16.mxu0 0
          %1411 = vmatpush1.bf16.msra.mxu0 %v830
          %1412 = vmatprep.subr.bf16.mxu0 0
          %1413 = vmatpush1.bf16.msra.mxu0 %v831
          %1414 = vmatprep.subr.bf16.mxu0 0
          %1415 = vmatpush1.bf16.msra.mxu0 %v832
          %1416 = vmatprep.subr.bf16.mxu0 0
          %1417 = vmatpush1.bf16.msra.mxu0 %v833
          %1418 = vmatprep.subr.bf16.mxu0 0
          %1419 = vmatpush1.bf16.msra.mxu0 %v834
          %1420 = vmatprep.subr.bf16.mxu0 0
          %1421 = vmatpush1.bf16.msra.mxu0 %v835
          %1422 = vmatprep.subr.bf16.mxu0 0
          %1423 = vmatpush1.bf16.msra.mxu0 %v836
          %1424 = vmatprep.subr.bf16.mxu0 0
          %1425 = vmatpush1.bf16.msra.mxu0 %v837
          %1426 = vmatprep.subr.bf16.mxu0 0
          %1427 = vmatpush1.bf16.msra.mxu0 %v838
          %1428 = vmatprep.subr.bf16.mxu0 0
          %1429 = vmatpush1.bf16.msra.mxu0 %v839
          %1430 = vmatprep.subr.bf16.mxu0 0
          %1431 = vmatpush1.bf16.msra.mxu0 %v840
          %1432 = vmatprep.mubr.bf16.mxu0 %v1393
          %1433 = vmatmul.mubr.bf16.gmra.mrb[0].mxu0 %v1392
          %v1434 = vpop.f32.mrb[0].mxu0
          %v1435 = vadd.f32 %v535, %v1434
          %v1436 = vpop.f32.mrb[0].mxu0
          %v1437 = vpop.f32.mrb[0].mxu0
          %v1438 = vadd.f32 %v535, %v1437
          %v1439 = vpop.f32.mrb[0].mxu0
          %1440 = vdwg.mxu0
          %1441 = vmatprep.subr.bf16.mxu0 0
          %1442 = vmatpush1.bf16.msra.mxu0 %v841
          %1443 = vmatprep.subr.bf16.mxu0 0
          %1444 = vmatpush1.bf16.msra.mxu0 %v842
          %1445 = vmatprep.subr.bf16.mxu0 0
          %1446 = vmatpush1.bf16.msra.mxu0 %v843
          %1447 = vmatprep.subr.bf16.mxu0 0
          %1448 = vmatpush1.bf16.msra.mxu0 %v844
          %1449 = vmatprep.subr.bf16.mxu0 0
          %1450 = vmatpush1.bf16.msra.mxu0 %v845
          %1451 = vmatprep.subr.bf16.mxu0 0
          %1452 = vmatpush1.bf16.msra.mxu0 %v846
          %1453 = vmatprep.subr.bf16.mxu0 0
          %1454 = vmatpush1.bf16.msra.mxu0 %v847
          %1455 = vmatprep.subr.bf16.mxu0 0
          %1456 = vmatpush1.bf16.msra.mxu0 %v848
          %1457 = vmatprep.subr.bf16.mxu0 0
          %1458 = vmatpush1.bf16.msra.mxu0 %v849
          %1459 = vmatprep.subr.bf16.mxu0 0
          %1460 = vmatpush1.bf16.msra.mxu0 %v850
          %1461 = vmatprep.subr.bf16.mxu0 0
          %1462 = vmatpush1.bf16.msra.mxu0 %v851
          %1463 = vmatprep.subr.bf16.mxu0 0
          %1464 = vmatpush1.bf16.msra.mxu0 %v852
          %1465 = vmatprep.subr.bf16.mxu0 0
          %1466 = vmatpush1.bf16.msra.mxu0 %v853
          %1467 = vmatprep.subr.bf16.mxu0 0
          %1468 = vmatpush1.bf16.msra.mxu0 %v854
          %1469 = vmatprep.subr.bf16.mxu0 0
          %1470 = vmatpush1.bf16.msra.mxu0 %v855
          %1471 = vmatprep.subr.bf16.mxu0 0
          %1472 = vmatpush1.bf16.msra.mxu0 %v856
          %1473 = vmatprep.mubr.bf16.mxu0 %v1395
          %1474 = vmatmul.mubr.bf16.gmra.mrb[0].mxu0 %v1394
          %v1475 = vpop.f32.mrb[0].mxu0
          %v1476 = vadd.f32 %v1435, %v1475
          %v1477 = vpop.f32.mrb[0].mxu0
          %v1478 = vpop.f32.mrb[0].mxu0
          %v1479 = vadd.f32 %v1438, %v1478
          %v1480 = vpop.f32.mrb[0].mxu0
          %1481 = vdwg.mxu0
          %v1482 = vmax.f32 %v1476, 0.0
          %v1483 = vmax.f32 %v1479, 0.0
          %v1484 = vpack.c.bf16 %v1483, %v1482
          %v1486 = vunpack.c.l.b16 %v1484
          %v1487 = vunpack.c.h.b16 %v1484
          %v1488 = vpack.c.b16 %v1486, %v1486
          %v1489 = vpack.c.b16 %v1487, %v1487
          %v1491 = vshrl.u32 %v1488, 16
          %v1493 = vrot.slane %v1491, 7
          %v1494 = vshll.u32 %v1488, 16
          %v1496 = vor.u32 %v1493, %v1494
          %v1497 = vrot.slane %v1493, 4
          %v1499 = vshrl.u32 %v1489, 16
          %v1501 = vrot.slane %v1499, 7
          %v1502 = vshll.u32 %v1489, 16
          %v1504 = vor.u32 %v1501, %v1502
          %v1505 = vsel %vm1148, %v1497, %v1504
          %v1506 = vrot.slane %v1501, 4
          %v1510 = vld [vmem:[#allocation2] sm:$0xf]
          %v1511 = vsel %vm1311, %v1496, %v1510
          %1512 = vst [vmem:[#allocation2] sm:$0xf] %v1511
          %1513 = vst [vmem:[#allocation2 + $0x4] sm:$0xf] %v1505
          %v1514 = vld [vmem:[#allocation2 + $0x8] sm:$0x1]
          %v1515 = vsel %vm433, %v1506, %v1514
          %1516 = vst [vmem:[#allocation2 + $0x8] sm:$0x1] %v1515
        $region68: #{tpu_custom_call.1} parent=47 // pred_fallthru
          _
        %p1517 = scmp.lt.s32.totalorder %s31, 1
        // Predicated region
        $region69: #{tpu_custom_call.1} parent=47 // pred_check
          %p1518 = pneg %p1517
        $region70: #{tpu_custom_call.1} parent=47 // pred_check_branch
          %1520 = sbr.rel (%p1518) target = $region72
        $region71: #{tpu_custom_call.1} parent=47 // pred_region
          %s1521 = sadd.s32 %s357, 8
          %s1522 = smul.u32 %s1521, 8
          %s1523 = smul.addr %s1522, 4
          %s1524 = scalar_lea.vmem %s312, %s1523 [#allocation3]
          %v1525 = vld [vmem:[%s1524] sm:$0xff]
          %v1526 = vld [vmem:[%s1524 + $0x8] sm:$0xff]
          %v1527 = vld [vmem:[%s1524 + $0x10] sm:$0xff]
          %v1528 = vld [vmem:[%s1524 + $0x18] sm:$0xff]
          %v1533 = vunpack.c.l.b16 %v1525
          %v1534 = vunpack.c.h.b16 %v1525
          %v1535 = vunpack.c.l.b16 %v1526
          %v1536 = vunpack.c.h.b16 %v1526
          %v1537 = vunpack.c.l.b16 %v1527
          %v1538 = vunpack.c.h.b16 %v1527
          %v1539 = vunpack.c.l.b16 %v1528
          %v1540 = vunpack.c.h.b16 %v1528
          %v1541 = vpack.c.b16 %v1537, %v1533
          %v1542 = vpack.c.b16 %v1538, %v1534
          %v1543 = vpack.c.b16 %v1539, %v1535
          %v1544 = vpack.c.b16 %v1540, %v1536
          %1549 = vmatprep.subr.bf16.mxu0 0
          %1550 = vmatpush1.bf16.msra.mxu0 %v825
          %1551 = vmatprep.subr.bf16.mxu0 0
          %1552 = vmatpush1.bf16.msra.mxu0 %v826
          %1553 = vmatprep.subr.bf16.mxu0 0
          %1554 = vmatpush1.bf16.msra.mxu0 %v827
          %1555 = vmatprep.subr.bf16.mxu0 0
          %1556 = vmatpush1.bf16.msra.mxu0 %v828
          %1557 = vmatprep.subr.bf16.mxu0 0
          %1558 = vmatpush1.bf16.msra.mxu0 %v829
          %1559 = vmatprep.subr.bf16.mxu0 0
          %1560 = vmatpush1.bf16.msra.mxu0 %v830
          %1561 = vmatprep.subr.bf16.mxu0 0
          %1562 = vmatpush1.bf16.msra.mxu0 %v831
          %1563 = vmatprep.subr.bf16.mxu0 0
          %1564 = vmatpush1.bf16.msra.mxu0 %v832
          %1565 = vmatprep.subr.bf16.mxu0 0
          %1566 = vmatpush1.bf16.msra.mxu0 %v833
          %1567 = vmatprep.subr.bf16.mxu0 0
          %1568 = vmatpush1.bf16.msra.mxu0 %v834
          %1569 = vmatprep.subr.bf16.mxu0 0
          %1570 = vmatpush1.bf16.msra.mxu0 %v835
          %1571 = vmatprep.subr.bf16.mxu0 0
          %1572 = vmatpush1.bf16.msra.mxu0 %v836
          %1573 = vmatprep.subr.bf16.mxu0 0
          %1574 = vmatpush1.bf16.msra.mxu0 %v837
          %1575 = vmatprep.subr.bf16.mxu0 0
          %1576 = vmatpush1.bf16.msra.mxu0 %v838
          %1577 = vmatprep.subr.bf16.mxu0 0
          %1578 = vmatpush1.bf16.msra.mxu0 %v839
          %1579 = vmatprep.subr.bf16.mxu0 0
          %1580 = vmatpush1.bf16.msra.mxu0 %v840
          %1581 = vmatprep.mubr.bf16.mxu0 %v1542
          %1582 = vmatmul.mubr.bf16.gmra.mrb[0].mxu0 %v1541
          %v1583 = vpop.f32.mrb[0].mxu0
          %v1584 = vadd.f32 %v535, %v1583
          %v1585 = vpop.f32.mrb[0].mxu0
          %v1586 = vpop.f32.mrb[0].mxu0
          %v1587 = vadd.f32 %v535, %v1586
          %v1588 = vpop.f32.mrb[0].mxu0
          %1589 = vdwg.mxu0
          %1590 = vmatprep.subr.bf16.mxu0 0
          %1591 = vmatpush1.bf16.msra.mxu0 %v841
          %1592 = vmatprep.subr.bf16.mxu0 0
          %1593 = vmatpush1.bf16.msra.mxu0 %v842
          %1594 = vmatprep.subr.bf16.mxu0 0
          %1595 = vmatpush1.bf16.msra.mxu0 %v843
          %1596 = vmatprep.subr.bf16.mxu0 0
          %1597 = vmatpush1.bf16.msra.mxu0 %v844
          %1598 = vmatprep.subr.bf16.mxu0 0
          %1599 = vmatpush1.bf16.msra.mxu0 %v845
          %1600 = vmatprep.subr.bf16.mxu0 0
          %1601 = vmatpush1.bf16.msra.mxu0 %v846
          %1602 = vmatprep.subr.bf16.mxu0 0
          %1603 = vmatpush1.bf16.msra.mxu0 %v847
          %1604 = vmatprep.subr.bf16.mxu0 0
          %1605 = vmatpush1.bf16.msra.mxu0 %v848
          %1606 = vmatprep.subr.bf16.mxu0 0
          %1607 = vmatpush1.bf16.msra.mxu0 %v849
          %1608 = vmatprep.subr.bf16.mxu0 0
          %1609 = vmatpush1.bf16.msra.mxu0 %v850
          %1610 = vmatprep.subr.bf16.mxu0 0
          %1611 = vmatpush1.bf16.msra.mxu0 %v851
          %1612 = vmatprep.subr.bf16.mxu0 0
          %1613 = vmatpush1.bf16.msra.mxu0 %v852
          %1614 = vmatprep.subr.bf16.mxu0 0
          %1615 = vmatpush1.bf16.msra.mxu0 %v853
          %1616 = vmatprep.subr.bf16.mxu0 0
          %1617 = vmatpush1.bf16.msra.mxu0 %v854
          %1618 = vmatprep.subr.bf16.mxu0 0
          %1619 = vmatpush1.bf16.msra.mxu0 %v855
          %1620 = vmatprep.subr.bf16.mxu0 0
          %1621 = vmatpush1.bf16.msra.mxu0 %v856
          %1622 = vmatprep.mubr.bf16.mxu0 %v1544
          %1623 = vmatmul.mubr.bf16.gmra.mrb[0].mxu0 %v1543
          %v1624 = vpop.f32.mrb[0].mxu0
          %v1625 = vadd.f32 %v1584, %v1624
          %v1626 = vpop.f32.mrb[0].mxu0
          %v1627 = vpop.f32.mrb[0].mxu0
          %v1628 = vadd.f32 %v1587, %v1627
          %v1629 = vpop.f32.mrb[0].mxu0
          %1630 = vdwg.mxu0
          %v1631 = vmax.f32 %v1625, 0.0
          %v1632 = vmax.f32 %v1628, 0.0
          %v1633 = vpack.c.bf16 %v1632, %v1631
          %v1635 = vunpack.c.l.b16 %v1633
          %v1636 = vunpack.c.h.b16 %v1633
          %v1637 = vpack.c.b16 %v1635, %v1635
          %v1638 = vpack.c.b16 %v1636, %v1636
          %v1640 = vshrl.u32 %v1637, 16
          %v1642 = vrot.slane %v1640, 7
          %v1643 = vshll.u32 %v1637, 16
          %v1645 = vor.u32 %v1642, %v1643
          %v1646 = vrot.slane %v1642, 4
          %v1648 = vshrl.u32 %v1638, 16
          %v1650 = vrot.slane %v1648, 7
          %v1651 = vshll.u32 %v1638, 16
          %v1653 = vor.u32 %v1650, %v1651
          %v1654 = vsel %vm1148, %v1646, %v1653
          %v1655 = vrot.slane %v1650, 4
          %v1659 = vld [vmem:[%s427] sm:$0xf]
          %v1660 = vsel %vm1311, %v1645, %v1659
          %1661 = vst [vmem:[%s427] sm:$0xf] %v1660
          %1662 = vst [vmem:[%s427 + $0x4] sm:$0xf] %v1654
          %v1663 = vld [vmem:[%s427 + $0x8] sm:$0x1]
          %v1664 = vsel %vm433, %v1655, %v1663
          %1665 = vst [vmem:[%s427 + $0x8] sm:$0x1] %v1664
        $region72: #{tpu_custom_call.1} parent=47 // pred_fallthru
          _
        %v1666 = vld [vmem:[#allocation2] sm:$0xf]
        %v1667 = vld [vmem:[#allocation2 + $0x4] sm:$0xf]
        %v1668 = vld [vmem:[#allocation2 + $0x8] sm:$0x1]
        %v1669 = vld [vmem:[#allocation2 + $0xc] sm:$0xf]
        %v1670 = vld [vmem:[#allocation2 + $0x10] sm:$0xf]
        %v1671 = vld [vmem:[#allocation2 + $0x14] sm:$0x1]
        %v1672 = vld [vmem:[#allocation2 + $0x18] sm:$0xf]
        %v1673 = vld [vmem:[#allocation2 + $0x1c] sm:$0xf]
        %v1674 = vld [vmem:[#allocation2 + $0x20] sm:$0x1]
        %v1675 = vld [vmem:[#allocation2 + $0x24] sm:$0xf]
        %v1676 = vld [vmem:[#allocation2 + $0x28] sm:$0xf]
        %v1677 = vld [vmem:[#allocation2 + $0x2c] sm:$0x1]
        %v1678 = vld [vmem:[#allocation2 + $0x30] sm:$0xf]
        %v1679 = vld [vmem:[#allocation2 + $0x34] sm:$0xf]
        %v1680 = vld [vmem:[#allocation2 + $0x38] sm:$0x1]
        %v1681 = vld [vmem:[#allocation2 + $0x3c] sm:$0xf]
        %v1682 = vld [vmem:[#allocation2 + $0x40] sm:$0xf]
        %v1683 = vld [vmem:[#allocation2 + $0x44] sm:$0x1]
        %v1684 = vld [vmem:[#allocation2 + $0x48] sm:$0xf]
        %v1685 = vld [vmem:[#allocation2 + $0x4c] sm:$0xf]
        %v1686 = vld [vmem:[#allocation2 + $0x50] sm:$0x1]
        %v1687 = vld [vmem:[#allocation2 + $0x54] sm:$0xf]
        %v1688 = vld [vmem:[#allocation2 + $0x58] sm:$0xf]
        %v1689 = vld [vmem:[#allocation2 + $0x5c] sm:$0x1]
        %v1706 = vunpack.c.l.b16 %v1666
        %v1707 = vunpack.c.l.b16 %v1667
        %v1708 = vunpack.c.l.b16 %v1669
        %v1709 = vunpack.c.l.b16 %v1670
        %v1710 = vunpack.c.l.b16 %v1672
        %v1711 = vunpack.c.l.b16 %v1673
        %v1712 = vunpack.c.l.b16 %v1675
        %v1713 = vunpack.c.l.b16 %v1676
        %v1714 = vunpack.c.l.b16 %v1678
        %v1715 = vunpack.c.l.b16 %v1679
        %v1716 = vunpack.c.l.b16 %v1681
        %v1717 = vunpack.c.l.b16 %v1682
        %v1718 = vunpack.c.l.b16 %v1684
        %v1719 = vunpack.c.l.b16 %v1685
        %v1720 = vunpack.c.l.b16 %v1687
        %v1721 = vunpack.c.l.b16 %v1688
        %v1722 = vpack.c.b16 %v1707, %v1706
        %v1723 = vpack.c.b16 %v1709, %v1708
        %v1724 = vpack.c.b16 %v1711, %v1710
        %v1725 = vpack.c.b16 %v1713, %v1712
        %v1726 = vpack.c.b16 %v1715, %v1714
        %v1727 = vpack.c.b16 %v1717, %v1716
        %v1728 = vpack.c.b16 %v1719, %v1718
        %v1729 = vpack.c.b16 %v1721, %v1720
        %v1746 = vunpack.c.l.b16 %v1668
        %v1747 = vunpack.c.l.b16 %v1671
        %v1748 = vunpack.c.l.b16 %v1674
        %v1749 = vunpack.c.l.b16 %v1677
        %v1750 = vunpack.c.l.b16 %v1680
        %v1751 = vunpack.c.l.b16 %v1683
        %v1752 = vunpack.c.l.b16 %v1686
        %v1753 = vunpack.c.l.b16 %v1689
        %v1754 = vpack.c.b16 %v1746, %v1746
        %v1755 = vpack.c.b16 %v1747, %v1747
        %v1756 = vpack.c.b16 %v1748, %v1748
        %v1757 = vpack.c.b16 %v1749, %v1749
        %v1758 = vpack.c.b16 %v1750, %v1750
        %v1759 = vpack.c.b16 %v1751, %v1751
        %v1760 = vpack.c.b16 %v1752, %v1752
        %v1761 = vpack.c.b16 %v1753, %v1753
        %vm1762 = vsmask.f32 7424
        %v1764 = vshrl.u32 %v1722, 16
        %v1766 = vshll.u32 %v1722, 16
        %v1768 = vrot.slane %v1766, 1
        %v1769 = vor.u32 %v1764, %v1768
        %v1771 = vshll.u32 %v1754, 16
        %v1773 = vrot.slane %v1771, 1
        %v1774 = vsel %vm1762, %v1769, %v1773
        %v1776 = vshrl.u32 %v1723, 16
        %v1778 = vshll.u32 %v1723, 16
        %v1780 = vrot.slane %v1778, 1
        %v1781 = vor.u32 %v1776, %v1780
        %v1783 = vshll.u32 %v1755, 16
        %v1785 = vrot.slane %v1783, 1
        %v1786 = vsel %vm1762, %v1781, %v1785
        %v1788 = vshrl.u32 %v1724, 16
        %v1790 = vshll.u32 %v1724, 16
        %v1792 = vrot.slane %v1790, 1
        %v1793 = vor.u32 %v1788, %v1792
        %v1795 = vshll.u32 %v1756, 16
        %v1797 = vrot.slane %v1795, 1
        %v1798 = vsel %vm1762, %v1793, %v1797
        %v1800 = vshrl.u32 %v1725, 16
        %v1802 = vshll.u32 %v1725, 16
        %v1804 = vrot.slane %v1802, 1
        %v1805 = vor.u32 %v1800, %v1804
        %v1807 = vshll.u32 %v1757, 16
        %v1809 = vrot.slane %v1807, 1
        %v1810 = vsel %vm1762, %v1805, %v1809
        %v1812 = vshrl.u32 %v1726, 16
        %v1814 = vshll.u32 %v1726, 16
        %v1816 = vrot.slane %v1814, 1
        %v1817 = vor.u32 %v1812, %v1816
        %v1819 = vshll.u32 %v1758, 16
        %v1821 = vrot.slane %v1819, 1
        %v1822 = vsel %vm1762, %v1817, %v1821
        %v1824 = vshrl.u32 %v1727, 16
        %v1826 = vshll.u32 %v1727, 16
        %v1828 = vrot.slane %v1826, 1
        %v1829 = vor.u32 %v1824, %v1828
        %v1831 = vshll.u32 %v1759, 16
        %v1833 = vrot.slane %v1831, 1
        %v1834 = vsel %vm1762, %v1829, %v1833
        %v1836 = vshrl.u32 %v1728, 16
        %v1838 = vshll.u32 %v1728, 16
        %v1840 = vrot.slane %v1838, 1
        %v1841 = vor.u32 %v1836, %v1840
        %v1843 = vshll.u32 %v1760, 16
        %v1845 = vrot.slane %v1843, 1
        %v1846 = vsel %vm1762, %v1841, %v1845
        %v1848 = vshrl.u32 %v1729, 16
        %v1850 = vshll.u32 %v1729, 16
        %v1852 = vrot.slane %v1850, 1
        %v1853 = vor.u32 %v1848, %v1852
        %v1855 = vshll.u32 %v1761, 16
        %v1857 = vrot.slane %v1855, 1
        %v1858 = vsel %vm1762, %v1853, %v1857
        %vm1867 = vcmask 1046528
        %v1868 = vrot.slane %v1722, 1
        %v1869 = vrot.slane %v1754, 1
        %v1870 = vsel %vm1867, %v1868, %v1869
        %v1871 = vrot.slane %v1723, 1
        %v1872 = vrot.slane %v1755, 1
        %v1873 = vsel %vm1867, %v1871, %v1872
        %v1874 = vrot.slane %v1724, 1
        %v1875 = vrot.slane %v1756, 1
        %v1876 = vsel %vm1867, %v1874, %v1875
        %v1877 = vrot.slane %v1725, 1
        %v1878 = vrot.slane %v1757, 1
        %v1879 = vsel %vm1867, %v1877, %v1878
        %v1880 = vrot.slane %v1726, 1
        %v1881 = vrot.slane %v1758, 1
        %v1882 = vsel %vm1867, %v1880, %v1881
        %v1883 = vrot.slane %v1727, 1
        %v1884 = vrot.slane %v1759, 1
        %v1885 = vsel %vm1867, %v1883, %v1884
        %v1886 = vrot.slane %v1728, 1
        %v1887 = vrot.slane %v1760, 1
        %v1888 = vsel %vm1867, %v1886, %v1887
        %v1889 = vrot.slane %v1729, 1
        %v1890 = vrot.slane %v1761, 1
        %v1891 = vsel %vm1867, %v1889, %v1890
        %v1900 = vld [vmem:[#allocation8] sm:$0xf]
        %v1901 = vld [vmem:[#allocation8 + $0x4] sm:$0xf]
        %v1902 = vld [vmem:[#allocation8 + $0x8] sm:$0xf]
        %v1903 = vld [vmem:[#allocation8 + $0xc] sm:$0xf]
        %v1904 = vld [vmem:[#allocation8 + $0x10] sm:$0xf]
        %v1905 = vld [vmem:[#allocation8 + $0x14] sm:$0xf]
        %v1906 = vld [vmem:[#allocation8 + $0x18] sm:$0xf]
        %v1907 = vld [vmem:[#allocation8 + $0x1c] sm:$0xf]
        %v1908 = vld [vmem:[#allocation8 + $0x20] sm:$0xf]
        %v1909 = vld [vmem:[#allocation8 + $0x24] sm:$0xf]
        %v1910 = vld [vmem:[#allocation8 + $0x28] sm:$0xf]
        %v1911 = vld [vmem:[#allocation8 + $0x2c] sm:$0xf]
        %v1912 = vld [vmem:[#allocation8 + $0x30] sm:$0xf]
        %v1913 = vld [vmem:[#allocation8 + $0x34] sm:$0xf]
        %v1914 = vld [vmem:[#allocation8 + $0x38] sm:$0xf]
        %v1915 = vld [vmem:[#allocation8 + $0x3c] sm:$0xf]
        %v1916 = vld [vmem:[#allocation8 + $0x40] sm:$0xf]
        %v1917 = vld [vmem:[#allocation8 + $0x44] sm:$0xf]
        %v1918 = vld [vmem:[#allocation8 + $0x48] sm:$0xf]
        %v1919 = vld [vmem:[#allocation8 + $0x4c] sm:$0xf]
        %v1920 = vld [vmem:[#allocation8 + $0x50] sm:$0xf]
        %v1921 = vld [vmem:[#allocation8 + $0x54] sm:$0xf]
        %v1922 = vld [vmem:[#allocation8 + $0x58] sm:$0xf]
        %v1923 = vld [vmem:[#allocation8 + $0x5c] sm:$0xf]
        %v1924 = vld [vmem:[#allocation8 + $0x60] sm:$0xf]
        %v1925 = vld [vmem:[#allocation8 + $0x64] sm:$0xf]
        %v1926 = vld [vmem:[#allocation8 + $0x68] sm:$0xf]
        %v1927 = vld [vmem:[#allocation8 + $0x6c] sm:$0xf]
        %v1928 = vld [vmem:[#allocation8 + $0x70] sm:$0xf]
        %v1929 = vld [vmem:[#allocation8 + $0x74] sm:$0xf]
        %v1930 = vld [vmem:[#allocation8 + $0x78] sm:$0xf]
        %v1931 = vld [vmem:[#allocation8 + $0x7c] sm:$0xf]
        %v1932 = vld [vmem:[#allocation8 + $0x80] sm:$0xf]
        %v1933 = vld [vmem:[#allocation8 + $0x84] sm:$0xf]
        %v1934 = vld [vmem:[#allocation8 + $0x88] sm:$0xf]
        %v1935 = vld [vmem:[#allocation8 + $0x8c] sm:$0xf]
        %v1936 = vld [vmem:[#allocation8 + $0x90] sm:$0xf]
        %v1937 = vld [vmem:[#allocation8 + $0x94] sm:$0xf]
        %v1938 = vld [vmem:[#allocation8 + $0x98] sm:$0xf]
        %v1939 = vld [vmem:[#allocation8 + $0x9c] sm:$0xf]
        %v1940 = vld [vmem:[#allocation8 + $0xa0] sm:$0xf]
        %v1941 = vld [vmem:[#allocation8 + $0xa4] sm:$0xf]
        %v1942 = vld [vmem:[#allocation8 + $0xa8] sm:$0xf]
        %v1943 = vld [vmem:[#allocation8 + $0xac] sm:$0xf]
        %v1944 = vld [vmem:[#allocation8 + $0xb0] sm:$0xf]
        %v1945 = vld [vmem:[#allocation8 + $0xb4] sm:$0xf]
        %v1946 = vld [vmem:[#allocation8 + $0xb8] sm:$0xf]
        %v1947 = vld [vmem:[#allocation8 + $0xbc] sm:$0xf]
        %v1948 = vld [vmem:[%s1309] sm:$0xf]
        %v1949 = vld [vmem:[%s1309 + $0x4] sm:$0xf]
        %v1950 = vld [vmem:[%s1309 + $0x8] sm:$0x1]
        %v1951 = vld [vmem:[%s1309 + $0xc] sm:$0xf]
        %v1952 = vld [vmem:[%s1309 + $0x10] sm:$0xf]
        %v1953 = vld [vmem:[%s1309 + $0x14] sm:$0x1]
        %v1954 = vld [vmem:[%s1309 + $0x18] sm:$0xf]
        %v1955 = vld [vmem:[%s1309 + $0x1c] sm:$0xf]
        %v1956 = vld [vmem:[%s1309 + $0x20] sm:$0x1]
        %v1957 = vld [vmem:[%s1309 + $0x24] sm:$0xf]
        %v1958 = vld [vmem:[%s1309 + $0x28] sm:$0xf]
        %v1959 = vld [vmem:[%s1309 + $0x2c] sm:$0x1]
        %v1960 = vld [vmem:[%s1309 + $0x30] sm:$0xf]
        %v1961 = vld [vmem:[%s1309 + $0x34] sm:$0xf]
        %v1962 = vld [vmem:[%s1309 + $0x38] sm:$0x1]
        %v1963 = vld [vmem:[%s1309 + $0x3c] sm:$0xf]
        %v1964 = vld [vmem:[%s1309 + $0x40] sm:$0xf]
        %v1965 = vld [vmem:[%s1309 + $0x44] sm:$0x1]
        %v1966 = vld [vmem:[%s1309 + $0x48] sm:$0xf]
        %v1967 = vld [vmem:[%s1309 + $0x4c] sm:$0xf]
        %v1968 = vld [vmem:[%s1309 + $0x50] sm:$0x1]
        %v1969 = vld [vmem:[%s1309 + $0x54] sm:$0xf]
        %v1970 = vld [vmem:[%s1309 + $0x58] sm:$0xf]
        %v1971 = vld [vmem:[%s1309 + $0x5c] sm:$0x1]
        %v1988 = vunpack.c.l.b16 %v1948
        %v1989 = vunpack.c.l.b16 %v1949
        %v1990 = vunpack.c.l.b16 %v1951
        %v1991 = vunpack.c.l.b16 %v1952
        %v1992 = vunpack.c.l.b16 %v1954
        %v1993 = vunpack.c.l.b16 %v1955
        %v1994 = vunpack.c.l.b16 %v1957
        %v1995 = vunpack.c.l.b16 %v1958
        %v1996 = vunpack.c.l.b16 %v1960
        %v1997 = vunpack.c.l.b16 %v1961
        %v1998 = vunpack.c.l.b16 %v1963
        %v1999 = vunpack.c.l.b16 %v1964
        %v2000 = vunpack.c.l.b16 %v1966
        %v2001 = vunpack.c.l.b16 %v1967
        %v2002 = vunpack.c.l.b16 %v1969
        %v2003 = vunpack.c.l.b16 %v1970
        %v2004 = vpack.c.b16 %v1989, %v1988
        %v2005 = vpack.c.b16 %v1991, %v1990
        %v2006 = vpack.c.b16 %v1993, %v1992
        %v2007 = vpack.c.b16 %v1995, %v1994
        %v2008 = vpack.c.b16 %v1997, %v1996
        %v2009 = vpack.c.b16 %v1999, %v1998
        %v2010 = vpack.c.b16 %v2001, %v2000
        %v2011 = vpack.c.b16 %v2003, %v2002
        %v2028 = vunpack.c.l.b16 %v1950
        %v2029 = vunpack.c.l.b16 %v1953
        %v2030 = vunpack.c.l.b16 %v1956
        %v2031 = vunpack.c.l.b16 %v1959
        %v2032 = vunpack.c.l.b16 %v1962
        %v2033 = vunpack.c.l.b16 %v1965
        %v2034 = vunpack.c.l.b16 %v1968
        %v2035 = vunpack.c.l.b16 %v1971
        %v2036 = vpack.c.b16 %v2028, %v2028
        %v2037 = vpack.c.b16 %v2029, %v2029
        %v2038 = vpack.c.b16 %v2030, %v2030
        %v2039 = vpack.c.b16 %v2031, %v2031
        %v2040 = vpack.c.b16 %v2032, %v2032
        %v2041 = vpack.c.b16 %v2033, %v2033
        %v2042 = vpack.c.b16 %v2034, %v2034
        %v2043 = vpack.c.b16 %v2035, %v2035
        %v2045 = vshrl.u32 %v2004, 16
        %v2047 = vshll.u32 %v2004, 16
        %v2049 = vrot.slane %v2047, 1
        %v2050 = vor.u32 %v2045, %v2049
        %v2052 = vshll.u32 %v2036, 16
        %v2054 = vrot.slane %v2052, 1
        %v2055 = vsel %vm1762, %v2050, %v2054
        %v2057 = vshrl.u32 %v2005, 16
        %v2059 = vshll.u32 %v2005, 16
        %v2061 = vrot.slane %v2059, 1
        %v2062 = vor.u32 %v2057, %v2061
        %v2064 = vshll.u32 %v2037, 16
        %v2066 = vrot.slane %v2064, 1
        %v2067 = vsel %vm1762, %v2062, %v2066
        %v2069 = vshrl.u32 %v2006, 16
        %v2071 = vshll.u32 %v2006, 16
        %v2073 = vrot.slane %v2071, 1
        %v2074 = vor.u32 %v2069, %v2073
        %v2076 = vshll.u32 %v2038, 16
        %v2078 = vrot.slane %v2076, 1
        %v2079 = vsel %vm1762, %v2074, %v2078
        %v2081 = vshrl.u32 %v2007, 16
        %v2083 = vshll.u32 %v2007, 16
        %v2085 = vrot.slane %v2083, 1
        %v2086 = vor.u32 %v2081, %v2085
        %v2088 = vshll.u32 %v2039, 16
        %v2090 = vrot.slane %v2088, 1
        %v2091 = vsel %vm1762, %v2086, %v2090
        %v2093 = vshrl.u32 %v2008, 16
        %v2095 = vshll.u32 %v2008, 16
        %v2097 = vrot.slane %v2095, 1
        %v2098 = vor.u32 %v2093, %v2097
        %v2100 = vshll.u32 %v2040, 16
        %v2102 = vrot.slane %v2100, 1
        %v2103 = vsel %vm1762, %v2098, %v2102
        %v2105 = vshrl.u32 %v2009, 16
        %v2107 = vshll.u32 %v2009, 16
        %v2109 = vrot.slane %v2107, 1
        %v2110 = vor.u32 %v2105, %v2109
        %v2112 = vshll.u32 %v2041, 16
        %v2114 = vrot.slane %v2112, 1
        %v2115 = vsel %vm1762, %v2110, %v2114
        %v2117 = vshrl.u32 %v2010, 16
        %v2119 = vshll.u32 %v2010, 16
        %v2121 = vrot.slane %v2119, 1
        %v2122 = vor.u32 %v2117, %v2121
        %v2124 = vshll.u32 %v2042, 16
        %v2126 = vrot.slane %v2124, 1
        %v2127 = vsel %vm1762, %v2122, %v2126
        %v2129 = vshrl.u32 %v2011, 16
        %v2131 = vshll.u32 %v2011, 16
        %v2133 = vrot.slane %v2131, 1
        %v2134 = vor.u32 %v2129, %v2133
        %v2136 = vshll.u32 %v2043, 16
        %v2138 = vrot.slane %v2136, 1
        %v2139 = vsel %vm1762, %v2134, %v2138
        %v2148 = vrot.slane %v2004, 1
        %v2149 = vrot.slane %v2036, 1
        %v2150 = vsel %vm1867, %v2148, %v2149
        %v2151 = vrot.slane %v2005, 1
        %v2152 = vrot.slane %v2037, 1
        %v2153 = vsel %vm1867, %v2151, %v2152
        %v2154 = vrot.slane %v2006, 1
        %v2155 = vrot.slane %v2038, 1
        %v2156 = vsel %vm1867, %v2154, %v2155
        %v2157 = vrot.slane %v2007, 1
        %v2158 = vrot.slane %v2039, 1
        %v2159 = vsel %vm1867, %v2157, %v2158
        %v2160 = vrot.slane %v2008, 1
        %v2161 = vrot.slane %v2040, 1
        %v2162 = vsel %vm1867, %v2160, %v2161
        %v2163 = vrot.slane %v2009, 1
        %v2164 = vrot.slane %v2041, 1
        %v2165 = vsel %vm1867, %v2163, %v2164
        %v2166 = vrot.slane %v2010, 1
        %v2167 = vrot.slane %v2042, 1
        %v2168 = vsel %vm1867, %v2166, %v2167
        %v2169 = vrot.slane %v2011, 1
        %v2170 = vrot.slane %v2043, 1
        %v2171 = vsel %vm1867, %v2169, %v2170
        %v2180 = vld [vmem:[#allocation8 + $0xc0] sm:$0xf]
        %v2181 = vld [vmem:[#allocation8 + $0xc4] sm:$0xf]
        %v2182 = vld [vmem:[#allocation8 + $0xc8] sm:$0xf]
        %v2183 = vld [vmem:[#allocation8 + $0xcc] sm:$0xf]
        %v2184 = vld [vmem:[#allocation8 + $0xd0] sm:$0xf]
        %v2185 = vld [vmem:[#allocation8 + $0xd4] sm:$0xf]
        %v2186 = vld [vmem:[#allocation8 + $0xd8] sm:$0xf]
        %v2187 = vld [vmem:[#allocation8 + $0xdc] sm:$0xf]
        %v2188 = vld [vmem:[#allocation8 + $0xe0] sm:$0xf]
        %v2189 = vld [vmem:[#allocation8 + $0xe4] sm:$0xf]
        %v2190 = vld [vmem:[#allocation8 + $0xe8] sm:$0xf]
        %v2191 = vld [vmem:[#allocation8 + $0xec] sm:$0xf]
        %v2192 = vld [vmem:[#allocation8 + $0xf0] sm:$0xf]
        %v2193 = vld [vmem:[#allocation8 + $0xf4] sm:$0xf]
        %v2194 = vld [vmem:[#allocation8 + $0xf8] sm:$0xf]
        %v2195 = vld [vmem:[#allocation8 + $0xfc] sm:$0xf]
        %v2196 = vld [vmem:[#allocation8 + $0x100] sm:$0xf]
        %v2197 = vld [vmem:[#allocation8 + $0x104] sm:$0xf]
        %v2198 = vld [vmem:[#allocation8 + $0x108] sm:$0xf]
        %v2199 = vld [vmem:[#allocation8 + $0x10c] sm:$0xf]
        %v2200 = vld [vmem:[#allocation8 + $0x110] sm:$0xf]
        %v2201 = vld [vmem:[#allocation8 + $0x114] sm:$0xf]
        %v2202 = vld [vmem:[#allocation8 + $0x118] sm:$0xf]
        %v2203 = vld [vmem:[#allocation8 + $0x11c] sm:$0xf]
        %v2204 = vld [vmem:[#allocation8 + $0x120] sm:$0xf]
        %v2205 = vld [vmem:[#allocation8 + $0x124] sm:$0xf]
        %v2206 = vld [vmem:[#allocation8 + $0x128] sm:$0xf]
        %v2207 = vld [vmem:[#allocation8 + $0x12c] sm:$0xf]
        %v2208 = vld [vmem:[#allocation8 + $0x130] sm:$0xf]
        %v2209 = vld [vmem:[#allocation8 + $0x134] sm:$0xf]
        %v2210 = vld [vmem:[#allocation8 + $0x138] sm:$0xf]
        %v2211 = vld [vmem:[#allocation8 + $0x13c] sm:$0xf]
        %v2212 = vld [vmem:[#allocation8 + $0x140] sm:$0xf]
        %v2213 = vld [vmem:[#allocation8 + $0x144] sm:$0xf]
        %v2214 = vld [vmem:[#allocation8 + $0x148] sm:$0xf]
        %v2215 = vld [vmem:[#allocation8 + $0x14c] sm:$0xf]
        %v2216 = vld [vmem:[#allocation8 + $0x150] sm:$0xf]
        %v2217 = vld [vmem:[#allocation8 + $0x154] sm:$0xf]
        %v2218 = vld [vmem:[#allocation8 + $0x158] sm:$0xf]
        %v2219 = vld [vmem:[#allocation8 + $0x15c] sm:$0xf]
        %v2220 = vld [vmem:[#allocation8 + $0x160] sm:$0xf]
        %v2221 = vld [vmem:[#allocation8 + $0x164] sm:$0xf]
        %v2222 = vld [vmem:[#allocation8 + $0x168] sm:$0xf]
        %v2223 = vld [vmem:[#allocation8 + $0x16c] sm:$0xf]
        %v2224 = vld [vmem:[#allocation8 + $0x170] sm:$0xf]
        %v2225 = vld [vmem:[#allocation8 + $0x174] sm:$0xf]
        %v2226 = vld [vmem:[#allocation8 + $0x178] sm:$0xf]
        %v2227 = vld [vmem:[#allocation8 + $0x17c] sm:$0xf]
        %v2276 = vunpack.c.l.b16 %v2180
        %v2277 = vunpack.c.l.b16 %v2181
        %v2278 = vunpack.c.l.b16 %v2182
        %v2279 = vunpack.c.l.b16 %v2183
        %v2280 = vunpack.c.l.b16 %v2184
        %v2281 = vunpack.c.l.b16 %v2185
        %v2282 = vunpack.c.l.b16 %v2186
        %v2283 = vunpack.c.l.b16 %v2187
        %v2284 = vunpack.c.l.b16 %v2188
        %v2285 = vunpack.c.l.b16 %v2189
        %v2286 = vunpack.c.l.b16 %v2190
        %v2287 = vunpack.c.l.b16 %v2191
        %v2288 = vunpack.c.l.b16 %v2192
        %v2289 = vunpack.c.l.b16 %v2193
        %v2290 = vunpack.c.l.b16 %v2194
        %v2291 = vunpack.c.l.b16 %v2195
        %v2292 = vunpack.c.l.b16 %v2196
        %v2293 = vunpack.c.l.b16 %v2197
        %v2294 = vunpack.c.l.b16 %v2198
        %v2295 = vunpack.c.l.b16 %v2199
        %v2296 = vunpack.c.l.b16 %v2200
        %v2297 = vunpack.c.l.b16 %v2201
        %v2298 = vunpack.c.l.b16 %v2202
        %v2299 = vunpack.c.l.b16 %v2203
        %v2300 = vunpack.c.l.b16 %v2204
        %v2301 = vunpack.c.l.b16 %v2205
        %v2302 = vunpack.c.l.b16 %v2206
        %v2303 = vunpack.c.l.b16 %v2207
        %v2304 = vunpack.c.l.b16 %v2208
        %v2305 = vunpack.c.l.b16 %v2209
        %v2306 = vunpack.c.l.b16 %v2210
        %v2307 = vunpack.c.l.b16 %v2211
        %v2308 = vunpack.c.l.b16 %v2212
        %v2309 = vunpack.c.l.b16 %v2213
        %v2310 = vunpack.c.l.b16 %v2214
        %v2311 = vunpack.c.l.b16 %v2215
        %v2312 = vunpack.c.l.b16 %v2216
        %v2313 = vunpack.c.l.b16 %v2217
        %v2314 = vunpack.c.l.b16 %v2218
        %v2315 = vunpack.c.l.b16 %v2219
        %v2316 = vunpack.c.l.b16 %v2220
        %v2317 = vunpack.c.l.b16 %v2221
        %v2318 = vunpack.c.l.b16 %v2222
        %v2319 = vunpack.c.l.b16 %v2223
        %v2320 = vunpack.c.l.b16 %v2224
        %v2321 = vunpack.c.l.b16 %v2225
        %v2322 = vunpack.c.l.b16 %v2226
        %v2323 = vunpack.c.l.b16 %v2227
        %v2324 = vpack.c.b16 %v2277, %v2276
        %v2325 = vpack.c.b16 %v2279, %v2278
        %v2326 = vpack.c.b16 %v2281, %v2280
        %v2327 = vpack.c.b16 %v2283, %v2282
        %v2328 = vpack.c.b16 %v2285, %v2284
        %v2329 = vpack.c.b16 %v2287, %v2286
        %v2330 = vpack.c.b16 %v2289, %v2288
        %v2331 = vpack.c.b16 %v2291, %v2290
        %v2332 = vpack.c.b16 %v2293, %v2292
        %v2333 = vpack.c.b16 %v2295, %v2294
        %v2334 = vpack.c.b16 %v2297, %v2296
        %v2335 = vpack.c.b16 %v2299, %v2298
        %v2336 = vpack.c.b16 %v2301, %v2300
        %v2337 = vpack.c.b16 %v2303, %v2302
        %v2338 = vpack.c.b16 %v2305, %v2304
        %v2339 = vpack.c.b16 %v2307, %v2306
        %v2340 = vpack.c.b16 %v2309, %v2308
        %v2341 = vpack.c.b16 %v2311, %v2310
        %v2342 = vpack.c.b16 %v2313, %v2312
        %v2343 = vpack.c.b16 %v2315, %v2314
        %v2344 = vpack.c.b16 %v2317, %v2316
        %v2345 = vpack.c.b16 %v2319, %v2318
        %v2346 = vpack.c.b16 %v2321, %v2320
        %v2347 = vpack.c.b16 %v2323, %v2322
        %2372 = vmatprep.subr.bf16.mxu0 0
        %2373 = vmatpush1.bf16.msra.mxu0 %v2324
        %2374 = vmatprep.subr.bf16.mxu0 0
        %2375 = vmatpush1.bf16.msra.mxu0 %v2325
        %2376 = vmatprep.subr.bf16.mxu0 0
        %2377 = vmatpush1.bf16.msra.mxu0 %v2326
        %2378 = vmatprep.subr.bf16.mxu0 0
        %2379 = vmatpush1.bf16.msra.mxu0 %v2327
        %2380 = vmatprep.subr.bf16.mxu0 0
        %2381 = vmatpush1.bf16.msra.mxu0 %v2328
        %2382 = vmatprep.subr.bf16.mxu0 0
        %2383 = vmatpush1.bf16.msra.mxu0 %v2329
        %2384 = vmatprep.subr.bf16.mxu0 0
        %2385 = vmatpush1.bf16.msra.mxu0 %v2330
        %2386 = vmatprep.subr.bf16.mxu0 0
        %2387 = vmatpush1.bf16.msra.mxu0 %v2331
        %2388 = vmatprep.subr.bf16.mxu0 0
        %2389 = vmatpush1.bf16.msra.mxu0 %v2332
        %2390 = vmatprep.subr.bf16.mxu0 0
        %2391 = vmatpush1.bf16.msra.mxu0 %v2333
        %2392 = vmatprep.subr.bf16.mxu0 0
        %2393 = vmatpush1.bf16.msra.mxu0 %v2334
        %2394 = vmatprep.subr.bf16.mxu0 0
        %2395 = vmatpush1.bf16.msra.mxu0 %v2335
        %2396 = vmatprep.subr.bf16.mxu0 0
        %2397 = vmatpush1.bf16.msra.mxu0 %v2336
        %2398 = vmatprep.subr.bf16.mxu0 0
        %2399 = vmatpush1.bf16.msra.mxu0 %v2337
        %2400 = vmatprep.subr.bf16.mxu0 0
        %2401 = vmatpush1.bf16.msra.mxu0 %v2338
        %2402 = vmatprep.subr.bf16.mxu0 0
        %2403 = vmatpush1.bf16.msra.mxu0 %v2339
        %2404 = vmatprep.mubr.bf16.mxu0 %v2055
        %2405 = vmatmul.mubr.bf16.gmra.mrb[0].mxu0 %v2004
        %v2406 = vpop.f32.mrb[0].mxu0
        %v2407 = vadd.f32 0.0, %v2406
        %v2408 = vpop.f32.mrb[0].mxu0
        %v2409 = vpop.f32.mrb[0].mxu0
        %v2410 = vadd.f32 0.0, %v2409
        %v2411 = vpop.f32.mrb[0].mxu0
        %2412 = vmatprep.mubr.bf16.mxu0 %v2067
        %2413 = vmatmul.mubr.bf16.gmra.mrb[0].mxu0 %v2005
        %v2414 = vpop.f32.mrb[0].mxu0
        %v2415 = vadd.f32 0.0, %v2414
        %v2416 = vpop.f32.mrb[0].mxu0
        %v2417 = vpop.f32.mrb[0].mxu0
        %v2418 = vadd.f32 0.0, %v2417
        %v2419 = vpop.f32.mrb[0].mxu0
        %2420 = vmatprep.mubr.bf16.mxu0 %v2079
        %2421 = vmatmul.mubr.bf16.gmra.mrb[0].mxu0 %v2006
        %v2422 = vpop.f32.mrb[0].mxu0
        %v2423 = vadd.f32 0.0, %v2422
        %v2424 = vpop.f32.mrb[0].mxu0
        %v2425 = vpop.f32.mrb[0].mxu0
        %v2426 = vadd.f32 0.0, %v2425
        %v2427 = vpop.f32.mrb[0].mxu0
        %2428 = vmatprep.mubr.bf16.mxu0 %v2091
        %2429 = vmatmul.mubr.bf16.gmra.mrb[0].mxu0 %v2007
        %v2430 = vpop.f32.mrb[0].mxu0
        %v2431 = vadd.f32 0.0, %v2430
        %v2432 = vpop.f32.mrb[0].mxu0
        %v2433 = vpop.f32.mrb[0].mxu0
        %v2434 = vadd.f32 0.0, %v2433
        %v2435 = vpop.f32.mrb[0].mxu0
        %2436 = vmatprep.mubr.bf16.mxu0 %v2103
        %2437 = vmatmul.mubr.bf16.gmra.mrb[0].mxu0 %v2008
        %v2438 = vpop.f32.mrb[0].mxu0
        %v2439 = vadd.f32 0.0, %v2438
        %v2440 = vpop.f32.mrb[0].mxu0
        %v2441 = vpop.f32.mrb[0].mxu0
        %v2442 = vadd.f32 0.0, %v2441
        %v2443 = vpop.f32.mrb[0].mxu0
        %2444 = vmatprep.mubr.bf16.mxu0 %v2115
        %2445 = vmatmul.mubr.bf16.gmra.mrb[0].mxu0 %v2009
        %v2446 = vpop.f32.mrb[0].mxu0
        %v2447 = vadd.f32 0.0, %v2446
        %v2448 = vpop.f32.mrb[0].mxu0
        %v2449 = vpop.f32.mrb[0].mxu0
        %v2450 = vadd.f32 0.0, %v2449
        %v2451 = vpop.f32.mrb[0].mxu0
        %2452 = vmatprep.mubr.bf16.mxu0 %v2127
        %2453 = vmatmul.mubr.bf16.gmra.mrb[0].mxu0 %v2010
        %v2454 = vpop.f32.mrb[0].mxu0
        %v2455 = vadd.f32 0.0, %v2454
        %v2456 = vpop.f32.mrb[0].mxu0
        %v2457 = vpop.f32.mrb[0].mxu0
        %v2458 = vadd.f32 0.0, %v2457
        %v2459 = vpop.f32.mrb[0].mxu0
        %2460 = vmatprep.mubr.bf16.mxu0 %v2139
        %2461 = vmatmul.mubr.bf16.gmra.mrb[0].mxu0 %v2011
        %v2462 = vpop.f32.mrb[0].mxu0
        %v2463 = vadd.f32 0.0, %v2462
        %v2464 = vpop.f32.mrb[0].mxu0
        %v2465 = vpop.f32.mrb[0].mxu0
        %v2466 = vadd.f32 0.0, %v2465
        %v2467 = vpop.f32.mrb[0].mxu0
        %2468 = vdwg.mxu0
        %2469 = vmatprep.subr.bf16.mxu0 0
        %2470 = vmatpush1.bf16.msra.mxu0 %v2340
        %2471 = vmatprep.subr.bf16.mxu0 0
        %2472 = vmatpush1.bf16.msra.mxu0 %v2341
        %2473 = vmatprep.subr.bf16.mxu0 0
        %2474 = vmatpush1.bf16.msra.mxu0 %v2342
        %2475 = vmatprep.subr.bf16.mxu0 0
        %2476 = vmatpush1.bf16.msra.mxu0 %v2343
        %2477 = vmatprep.subr.bf16.mxu0 0
        %2478 = vmatpush1.bf16.msra.mxu0 %v2344
        %2479 = vmatprep.subr.bf16.mxu0 0
        %2480 = vmatpush1.bf16.msra.mxu0 %v2345
        %2481 = vmatprep.subr.bf16.mxu0 0
        %2482 = vmatpush1.bf16.msra.mxu0 %v2346
        %2483 = vmatprep.subr.bf16.mxu0 0
        %2484 = vmatpush1.bf16.msra.mxu0 %v2347
        %2485 = vmatprep.subr.bf16.mxu0 0
        %2486 = vmatpush1.bf16.msra.mxu0 0
        %2487 = vmatprep.subr.bf16.mxu0 0
        %2488 = vmatpush1.bf16.msra.mxu0 0
        %2489 = vmatprep.subr.bf16.mxu0 0
        %2490 = vmatpush1.bf16.msra.mxu0 0
        %2491 = vmatprep.subr.bf16.mxu0 0
        %2492 = vmatpush1.bf16.msra.mxu0 0
        %2493 = vmatprep.subr.bf16.mxu0 0
        %2494 = vmatpush1.bf16.msra.mxu0 0
        %2495 = vmatprep.subr.bf16.mxu0 0
        %2496 = vmatpush1.bf16.msra.mxu0 0
        %2497 = vmatprep.subr.bf16.mxu0 0
        %2498 = vmatpush1.bf16.msra.mxu0 0
        %2499 = vmatprep.subr.bf16.mxu0 0
        %2500 = vmatpush1.bf16.msra.mxu0 0
        %2501 = vmatprep.mubr.bf16.mxu0 0
        %2502 = vmatmul.mubr.bf16.gmra.mrb[0].mxu0 %v2150
        %v2503 = vpop.f32.mrb[0].mxu0
        %v2504 = vadd.f32 %v2407, %v2503
        %v2505 = vpop.f32.mrb[0].mxu0
        %v2506 = vpop.f32.mrb[0].mxu0
        %v2507 = vadd.f32 %v2410, %v2506
        %v2508 = vpop.f32.mrb[0].mxu0
        %2509 = vmatprep.mubr.bf16.mxu0 0
        %2510 = vmatmul.mubr.bf16.gmra.mrb[0].mxu0 %v2153
        %v2511 = vpop.f32.mrb[0].mxu0
        %v2512 = vadd.f32 %v2415, %v2511
        %v2513 = vpop.f32.mrb[0].mxu0
        %v2514 = vpop.f32.mrb[0].mxu0
        %v2515 = vadd.f32 %v2418, %v2514
        %v2516 = vpop.f32.mrb[0].mxu0
        %2517 = vmatprep.mubr.bf16.mxu0 0
        %2518 = vmatmul.mubr.bf16.gmra.mrb[0].mxu0 %v2156
        %v2519 = vpop.f32.mrb[0].mxu0
        %v2520 = vadd.f32 %v2423, %v2519
        %v2521 = vpop.f32.mrb[0].mxu0
        %v2522 = vpop.f32.mrb[0].mxu0
        %v2523 = vadd.f32 %v2426, %v2522
        %v2524 = vpop.f32.mrb[0].mxu0
        %2525 = vmatprep.mubr.bf16.mxu0 0
        %2526 = vmatmul.mubr.bf16.gmra.mrb[0].mxu0 %v2159
        %v2527 = vpop.f32.mrb[0].mxu0
        %v2528 = vadd.f32 %v2431, %v2527
        %v2529 = vpop.f32.mrb[0].mxu0
        %v2530 = vpop.f32.mrb[0].mxu0
        %v2531 = vadd.f32 %v2434, %v2530
        %v2532 = vpop.f32.mrb[0].mxu0
        %2533 = vmatprep.mubr.bf16.mxu0 0
        %2534 = vmatmul.mubr.bf16.gmra.mrb[0].mxu0 %v2162
        %v2535 = vpop.f32.mrb[0].mxu0
        %v2536 = vadd.f32 %v2439, %v2535
        %v2537 = vpop.f32.mrb[0].mxu0
        %v2538 = vpop.f32.mrb[0].mxu0
        %v2539 = vadd.f32 %v2442, %v2538
        %v2540 = vpop.f32.mrb[0].mxu0
        %2541 = vmatprep.mubr.bf16.mxu0 0
        %2542 = vmatmul.mubr.bf16.gmra.mrb[0].mxu0 %v2165
        %v2543 = vpop.f32.mrb[0].mxu0
        %v2544 = vadd.f32 %v2447, %v2543
        %v2545 = vpop.f32.mrb[0].mxu0
        %v2546 = vpop.f32.mrb[0].mxu0
        %v2547 = vadd.f32 %v2450, %v2546
        %v2548 = vpop.f32.mrb[0].mxu0
        %2549 = vmatprep.mubr.bf16.mxu0 0
        %2550 = vmatmul.mubr.bf16.gmra.mrb[0].mxu0 %v2168
        %v2551 = vpop.f32.mrb[0].mxu0
        %v2552 = vadd.f32 %v2455, %v2551
        %v2553 = vpop.f32.mrb[0].mxu0
        %v2554 = vpop.f32.mrb[0].mxu0
        %v2555 = vadd.f32 %v2458, %v2554
        %v2556 = vpop.f32.mrb[0].mxu0
        %2557 = vmatprep.mubr.bf16.mxu0 0
        %2558 = vmatmul.mubr.bf16.gmra.mrb[0].mxu0 %v2171
        %v2559 = vpop.f32.mrb[0].mxu0
        %v2560 = vadd.f32 %v2463, %v2559
        %v2561 = vpop.f32.mrb[0].mxu0
        %v2562 = vpop.f32.mrb[0].mxu0
        %v2563 = vadd.f32 %v2466, %v2562
        %v2564 = vpop.f32.mrb[0].mxu0
        %2565 = vdwg.mxu0
        %v2614 = vunpack.c.l.b16 %v1900
        %v2615 = vunpack.c.l.b16 %v1901
        %v2616 = vunpack.c.l.b16 %v1902
        %v2617 = vunpack.c.l.b16 %v1903
        %v2618 = vunpack.c.l.b16 %v1904
        %v2619 = vunpack.c.l.b16 %v1905
        %v2620 = vunpack.c.l.b16 %v1906
        %v2621 = vunpack.c.l.b16 %v1907
        %v2622 = vunpack.c.l.b16 %v1908
        %v2623 = vunpack.c.l.b16 %v1909
        %v2624 = vunpack.c.l.b16 %v1910
        %v2625 = vunpack.c.l.b16 %v1911
        %v2626 = vunpack.c.l.b16 %v1912
        %v2627 = vunpack.c.l.b16 %v1913
        %v2628 = vunpack.c.l.b16 %v1914
        %v2629 = vunpack.c.l.b16 %v1915
        %v2630 = vunpack.c.l.b16 %v1916
        %v2631 = vunpack.c.l.b16 %v1917
        %v2632 = vunpack.c.l.b16 %v1918
        %v2633 = vunpack.c.l.b16 %v1919
        %v2634 = vunpack.c.l.b16 %v1920
        %v2635 = vunpack.c.l.b16 %v1921
        %v2636 = vunpack.c.l.b16 %v1922
        %v2637 = vunpack.c.l.b16 %v1923
        %v2638 = vunpack.c.l.b16 %v1924
        %v2639 = vunpack.c.l.b16 %v1925
        %v2640 = vunpack.c.l.b16 %v1926
        %v2641 = vunpack.c.l.b16 %v1927
        %v2642 = vunpack.c.l.b16 %v1928
        %v2643 = vunpack.c.l.b16 %v1929
        %v2644 = vunpack.c.l.b16 %v1930
        %v2645 = vunpack.c.l.b16 %v1931
        %v2646 = vunpack.c.l.b16 %v1932
        %v2647 = vunpack.c.l.b16 %v1933
        %v2648 = vunpack.c.l.b16 %v1934
        %v2649 = vunpack.c.l.b16 %v1935
        %v2650 = vunpack.c.l.b16 %v1936
        %v2651 = vunpack.c.l.b16 %v1937
        %v2652 = vunpack.c.l.b16 %v1938
        %v2653 = vunpack.c.l.b16 %v1939
        %v2654 = vunpack.c.l.b16 %v1940
        %v2655 = vunpack.c.l.b16 %v1941
        %v2656 = vunpack.c.l.b16 %v1942
        %v2657 = vunpack.c.l.b16 %v1943
        %v2658 = vunpack.c.l.b16 %v1944
        %v2659 = vunpack.c.l.b16 %v1945
        %v2660 = vunpack.c.l.b16 %v1946
        %v2661 = vunpack.c.l.b16 %v1947
        %v2662 = vpack.c.b16 %v2615, %v2614
        %v2663 = vpack.c.b16 %v2617, %v2616
        %v2664 = vpack.c.b16 %v2619, %v2618
        %v2665 = vpack.c.b16 %v2621, %v2620
        %v2666 = vpack.c.b16 %v2623, %v2622
        %v2667 = vpack.c.b16 %v2625, %v2624
        %v2668 = vpack.c.b16 %v2627, %v2626
        %v2669 = vpack.c.b16 %v2629, %v2628
        %v2670 = vpack.c.b16 %v2631, %v2630
        %v2671 = vpack.c.b16 %v2633, %v2632
        %v2672 = vpack.c.b16 %v2635, %v2634
        %v2673 = vpack.c.b16 %v2637, %v2636
        %v2674 = vpack.c.b16 %v2639, %v2638
        %v2675 = vpack.c.b16 %v2641, %v2640
        %v2676 = vpack.c.b16 %v2643, %v2642
        %v2677 = vpack.c.b16 %v2645, %v2644
        %v2678 = vpack.c.b16 %v2647, %v2646
        %v2679 = vpack.c.b16 %v2649, %v2648
        %v2680 = vpack.c.b16 %v2651, %v2650
        %v2681 = vpack.c.b16 %v2653, %v2652
        %v2682 = vpack.c.b16 %v2655, %v2654
        %v2683 = vpack.c.b16 %v2657, %v2656
        %v2684 = vpack.c.b16 %v2659, %v2658
        %v2685 = vpack.c.b16 %v2661, %v2660
        %2710 = vmatprep.subr.bf16.mxu0 0
        %2711 = vmatpush1.bf16.msra.mxu0 %v2662
        %2712 = vmatprep.subr.bf16.mxu0 0
        %2713 = vmatpush1.bf16.msra.mxu0 %v2663
        %2714 = vmatprep.subr.bf16.mxu0 0
        %2715 = vmatpush1.bf16.msra.mxu0 %v2664
        %2716 = vmatprep.subr.bf16.mxu0 0
        %2717 = vmatpush1.bf16.msra.mxu0 %v2665
        %2718 = vmatprep.subr.bf16.mxu0 0
        %2719 = vmatpush1.bf16.msra.mxu0 %v2666
        %2720 = vmatprep.subr.bf16.mxu0 0
        %2721 = vmatpush1.bf16.msra.mxu0 %v2667
        %2722 = vmatprep.subr.bf16.mxu0 0
        %2723 = vmatpush1.bf16.msra.mxu0 %v2668
        %2724 = vmatprep.subr.bf16.mxu0 0
        %2725 = vmatpush1.bf16.msra.mxu0 %v2669
        %2726 = vmatprep.subr.bf16.mxu0 0
        %2727 = vmatpush1.bf16.msra.mxu0 %v2670
        %2728 = vmatprep.subr.bf16.mxu0 0
        %2729 = vmatpush1.bf16.msra.mxu0 %v2671
        %2730 = vmatprep.subr.bf16.mxu0 0
        %2731 = vmatpush1.bf16.msra.mxu0 %v2672
        %2732 = vmatprep.subr.bf16.mxu0 0
        %2733 = vmatpush1.bf16.msra.mxu0 %v2673
        %2734 = vmatprep.subr.bf16.mxu0 0
        %2735 = vmatpush1.bf16.msra.mxu0 %v2674
        %2736 = vmatprep.subr.bf16.mxu0 0
        %2737 = vmatpush1.bf16.msra.mxu0 %v2675
        %2738 = vmatprep.subr.bf16.mxu0 0
        %2739 = vmatpush1.bf16.msra.mxu0 %v2676
        %2740 = vmatprep.subr.bf16.mxu0 0
        %2741 = vmatpush1.bf16.msra.mxu0 %v2677
        %2742 = vmatprep.mubr.bf16.mxu0 %v1774
        %2743 = vmatmul.mubr.bf16.gmra.mrb[0].mxu0 %v1722
        %v2744 = vpop.f32.mrb[0].mxu0
        %v2745 = vadd.f32 %v2504, %v2744
        %v2746 = vpop.f32.mrb[0].mxu0
        %v2747 = vpop.f32.mrb[0].mxu0
        %v2748 = vadd.f32 %v2507, %v2747
        %v2749 = vpop.f32.mrb[0].mxu0
        %2750 = vmatprep.mubr.bf16.mxu0 %v1786
        %2751 = vmatmul.mubr.bf16.gmra.mrb[0].mxu0 %v1723
        %v2752 = vpop.f32.mrb[0].mxu0
        %v2753 = vadd.f32 %v2512, %v2752
        %v2754 = vpop.f32.mrb[0].mxu0
        %v2755 = vpop.f32.mrb[0].mxu0
        %v2756 = vadd.f32 %v2515, %v2755
        %v2757 = vpop.f32.mrb[0].mxu0
        %2758 = vmatprep.mubr.bf16.mxu0 %v1798
        %2759 = vmatmul.mubr.bf16.gmra.mrb[0].mxu0 %v1724
        %v2760 = vpop.f32.mrb[0].mxu0
        %v2761 = vadd.f32 %v2520, %v2760
        %v2762 = vpop.f32.mrb[0].mxu0
        %v2763 = vpop.f32.mrb[0].mxu0
        %v2764 = vadd.f32 %v2523, %v2763
        %v2765 = vpop.f32.mrb[0].mxu0
        %2766 = vmatprep.mubr.bf16.mxu0 %v1810
        %2767 = vmatmul.mubr.bf16.gmra.mrb[0].mxu0 %v1725
        %v2768 = vpop.f32.mrb[0].mxu0
        %v2769 = vadd.f32 %v2528, %v2768
        %v2770 = vpop.f32.mrb[0].mxu0
        %v2771 = vpop.f32.mrb[0].mxu0
        %v2772 = vadd.f32 %v2531, %v2771
        %v2773 = vpop.f32.mrb[0].mxu0
        %2774 = vmatprep.mubr.bf16.mxu0 %v1822
        %2775 = vmatmul.mubr.bf16.gmra.mrb[0].mxu0 %v1726
        %v2776 = vpop.f32.mrb[0].mxu0
        %v2777 = vadd.f32 %v2536, %v2776
        %v2778 = vpop.f32.mrb[0].mxu0
        %v2779 = vpop.f32.mrb[0].mxu0
        %v2780 = vadd.f32 %v2539, %v2779
        %v2781 = vpop.f32.mrb[0].mxu0
        %2782 = vmatprep.mubr.bf16.mxu0 %v1834
        %2783 = vmatmul.mubr.bf16.gmra.mrb[0].mxu0 %v1727
        %v2784 = vpop.f32.mrb[0].mxu0
        %v2785 = vadd.f32 %v2544, %v2784
        %v2786 = vpop.f32.mrb[0].mxu0
        %v2787 = vpop.f32.mrb[0].mxu0
        %v2788 = vadd.f32 %v2547, %v2787
        %v2789 = vpop.f32.mrb[0].mxu0
        %2790 = vmatprep.mubr.bf16.mxu0 %v1846
        %2791 = vmatmul.mubr.bf16.gmra.mrb[0].mxu0 %v1728
        %v2792 = vpop.f32.mrb[0].mxu0
        %v2793 = vadd.f32 %v2552, %v2792
        %v2794 = vpop.f32.mrb[0].mxu0
        %v2795 = vpop.f32.mrb[0].mxu0
        %v2796 = vadd.f32 %v2555, %v2795
        %v2797 = vpop.f32.mrb[0].mxu0
        %2798 = vmatprep.mubr.bf16.mxu0 %v1858
        %2799 = vmatmul.mubr.bf16.gmra.mrb[0].mxu0 %v1729
        %v2800 = vpop.f32.mrb[0].mxu0
        %v2801 = vadd.f32 %v2560, %v2800
        %v2802 = vpop.f32.mrb[0].mxu0
        %v2803 = vpop.f32.mrb[0].mxu0
        %v2804 = vadd.f32 %v2563, %v2803
        %v2805 = vpop.f32.mrb[0].mxu0
        %2806 = vdwg.mxu0
        %2807 = vmatprep.subr.bf16.mxu0 0
        %2808 = vmatpush1.bf16.msra.mxu0 %v2678
        %2809 = vmatprep.subr.bf16.mxu0 0
        %2810 = vmatpush1.bf16.msra.mxu0 %v2679
        %2811 = vmatprep.subr.bf16.mxu0 0
        %2812 = vmatpush1.bf16.msra.mxu0 %v2680
        %2813 = vmatprep.subr.bf16.mxu0 0
        %2814 = vmatpush1.bf16.msra.mxu0 %v2681
        %2815 = vmatprep.subr.bf16.mxu0 0
        %2816 = vmatpush1.bf16.msra.mxu0 %v2682
        %2817 = vmatprep.subr.bf16.mxu0 0
        %2818 = vmatpush1.bf16.msra.mxu0 %v2683
        %2819 = vmatprep.subr.bf16.mxu0 0
        %2820 = vmatpush1.bf16.msra.mxu0 %v2684
        %2821 = vmatprep.subr.bf16.mxu0 0
        %2822 = vmatpush1.bf16.msra.mxu0 %v2685
        %2823 = vmatprep.subr.bf16.mxu0 0
        %2824 = vmatpush1.bf16.msra.mxu0 0
        %2825 = vmatprep.subr.bf16.mxu0 0
        %2826 = vmatpush1.bf16.msra.mxu0 0
        %2827 = vmatprep.subr.bf16.mxu0 0
        %2828 = vmatpush1.bf16.msra.mxu0 0
        %2829 = vmatprep.subr.bf16.mxu0 0
        %2830 = vmatpush1.bf16.msra.mxu0 0
        %2831 = vmatprep.subr.bf16.mxu0 0
        %2832 = vmatpush1.bf16.msra.mxu0 0
        %2833 = vmatprep.subr.bf16.mxu0 0
        %2834 = vmatpush1.bf16.msra.mxu0 0
        %2835 = vmatprep.subr.bf16.mxu0 0
        %2836 = vmatpush1.bf16.msra.mxu0 0
        %2837 = vmatprep.subr.bf16.mxu0 0
        %2838 = vmatpush1.bf16.msra.mxu0 0
        %2839 = vmatprep.mubr.bf16.mxu0 0
        %2840 = vmatmul.mubr.bf16.gmra.mrb[0].mxu0 %v1870
        %v2841 = vpop.f32.mrb[0].mxu0
        %v2842 = vadd.f32 %v2745, %v2841
        %v2843 = vpop.f32.mrb[0].mxu0
        %v2844 = vpop.f32.mrb[0].mxu0
        %v2845 = vadd.f32 %v2748, %v2844
        %v2846 = vpop.f32.mrb[0].mxu0
        %2847 = vmatprep.mubr.bf16.mxu0 0
        %2848 = vmatmul.mubr.bf16.gmra.mrb[0].mxu0 %v1873
        %v2849 = vpop.f32.mrb[0].mxu0
        %v2850 = vadd.f32 %v2753, %v2849
        %v2851 = vpop.f32.mrb[0].mxu0
        %v2852 = vpop.f32.mrb[0].mxu0
        %v2853 = vadd.f32 %v2756, %v2852
        %v2854 = vpop.f32.mrb[0].mxu0
        %2855 = vmatprep.mubr.bf16.mxu0 0
        %2856 = vmatmul.mubr.bf16.gmra.mrb[0].mxu0 %v1876
        %v2857 = vpop.f32.mrb[0].mxu0
        %v2858 = vadd.f32 %v2761, %v2857
        %v2859 = vpop.f32.mrb[0].mxu0
        %v2860 = vpop.f32.mrb[0].mxu0
        %v2861 = vadd.f32 %v2764, %v2860
        %v2862 = vpop.f32.mrb[0].mxu0
        %2863 = vmatprep.mubr.bf16.mxu0 0
        %2864 = vmatmul.mubr.bf16.gmra.mrb[0].mxu0 %v1879
        %v2865 = vpop.f32.mrb[0].mxu0
        %v2866 = vadd.f32 %v2769, %v2865
        %v2867 = vpop.f32.mrb[0].mxu0
        %v2868 = vpop.f32.mrb[0].mxu0
        %v2869 = vadd.f32 %v2772, %v2868
        %v2870 = vpop.f32.mrb[0].mxu0
        %2871 = vmatprep.mubr.bf16.mxu0 0
        %2872 = vmatmul.mubr.bf16.gmra.mrb[0].mxu0 %v1882
        %v2873 = vpop.f32.mrb[0].mxu0
        %v2874 = vadd.f32 %v2777, %v2873
        %v2875 = vpop.f32.mrb[0].mxu0
        %v2876 = vpop.f32.mrb[0].mxu0
        %v2877 = vadd.f32 %v2780, %v2876
        %v2878 = vpop.f32.mrb[0].mxu0
        %2879 = vmatprep.mubr.bf16.mxu0 0
        %2880 = vmatmul.mubr.bf16.gmra.mrb[0].mxu0 %v1885
        %v2881 = vpop.f32.mrb[0].mxu0
        %v2882 = vadd.f32 %v2785, %v2881
        %v2883 = vpop.f32.mrb[0].mxu0
        %v2884 = vpop.f32.mrb[0].mxu0
        %v2885 = vadd.f32 %v2788, %v2884
        %v2886 = vpop.f32.mrb[0].mxu0
        %2887 = vmatprep.mubr.bf16.mxu0 0
        %2888 = vmatmul.mubr.bf16.gmra.mrb[0].mxu0 %v1888
        %v2889 = vpop.f32.mrb[0].mxu0
        %v2890 = vadd.f32 %v2793, %v2889
        %v2891 = vpop.f32.mrb[0].mxu0
        %v2892 = vpop.f32.mrb[0].mxu0
        %v2893 = vadd.f32 %v2796, %v2892
        %v2894 = vpop.f32.mrb[0].mxu0
        %2895 = vmatprep.mubr.bf16.mxu0 0
        %2896 = vmatmul.mubr.bf16.gmra.mrb[0].mxu0 %v1891
        %v2897 = vpop.f32.mrb[0].mxu0
        %v2898 = vadd.f32 %v2801, %v2897
        %v2899 = vpop.f32.mrb[0].mxu0
        %v2900 = vpop.f32.mrb[0].mxu0
        %v2901 = vadd.f32 %v2804, %v2900
        %v2902 = vpop.f32.mrb[0].mxu0
        %2903 = vdwg.mxu0
        %s2904 = scalar_lea.vmem [#allocation2], 24
        %v2905 = vld [vmem:[%s2904] sm:$0xf]
        %v2906 = vld [vmem:[%s2904 + $0x4] sm:$0xf]
        %v2907 = vld [vmem:[%s2904 + $0x8] sm:$0x1]
        %v2908 = vld [vmem:[%s2904 + $0xc] sm:$0xf]
        %v2909 = vld [vmem:[%s2904 + $0x10] sm:$0xf]
        %v2910 = vld [vmem:[%s2904 + $0x14] sm:$0x1]
        %v2911 = vld [vmem:[%s2904 + $0x18] sm:$0xf]
        %v2912 = vld [vmem:[%s2904 + $0x1c] sm:$0xf]
        %v2913 = vld [vmem:[%s2904 + $0x20] sm:$0x1]
        %v2914 = vld [vmem:[%s2904 + $0x24] sm:$0xf]
        %v2915 = vld [vmem:[%s2904 + $0x28] sm:$0xf]
        %v2916 = vld [vmem:[%s2904 + $0x2c] sm:$0x1]
        %v2917 = vld [vmem:[%s2904 + $0x30] sm:$0xf]
        %v2918 = vld [vmem:[%s2904 + $0x34] sm:$0xf]
        %v2919 = vld [vmem:[%s2904 + $0x38] sm:$0x1]
        %v2920 = vld [vmem:[%s2904 + $0x3c] sm:$0xf]
        %v2921 = vld [vmem:[%s2904 + $0x40] sm:$0xf]
        %v2922 = vld [vmem:[%s2904 + $0x44] sm:$0x1]
        %v2923 = vld [vmem:[%s2904 + $0x48] sm:$0xf]
        %v2924 = vld [vmem:[%s2904 + $0x4c] sm:$0xf]
        %v2925 = vld [vmem:[%s2904 + $0x50] sm:$0x1]
        %v2926 = vld [vmem:[%s2904 + $0x54] sm:$0xf]
        %v2927 = vld [vmem:[%s2904 + $0x58] sm:$0xf]
        %v2928 = vld [vmem:[%s2904 + $0x5c] sm:$0x1]
        %v2945 = vunpack.c.l.b16 %v2905
        %v2946 = vunpack.c.l.b16 %v2906
        %v2947 = vunpack.c.l.b16 %v2908
        %v2948 = vunpack.c.l.b16 %v2909
        %v2949 = vunpack.c.l.b16 %v2911
        %v2950 = vunpack.c.l.b16 %v2912
        %v2951 = vunpack.c.l.b16 %v2914
        %v2952 = vunpack.c.l.b16 %v2915
        %v2953 = vunpack.c.l.b16 %v2917
        %v2954 = vunpack.c.l.b16 %v2918
        %v2955 = vunpack.c.l.b16 %v2920
        %v2956 = vunpack.c.l.b16 %v2921
        %v2957 = vunpack.c.l.b16 %v2923
        %v2958 = vunpack.c.l.b16 %v2924
        %v2959 = vunpack.c.l.b16 %v2926
        %v2960 = vunpack.c.l.b16 %v2927
        %v2961 = vpack.c.b16 %v2946, %v2945
        %v2962 = vpack.c.b16 %v2948, %v2947
        %v2963 = vpack.c.b16 %v2950, %v2949
        %v2964 = vpack.c.b16 %v2952, %v2951
        %v2965 = vpack.c.b16 %v2954, %v2953
        %v2966 = vpack.c.b16 %v2956, %v2955
        %v2967 = vpack.c.b16 %v2958, %v2957
        %v2968 = vpack.c.b16 %v2960, %v2959
        %v2985 = vunpack.c.l.b16 %v2907
        %v2986 = vunpack.c.l.b16 %v2910
        %v2987 = vunpack.c.l.b16 %v2913
        %v2988 = vunpack.c.l.b16 %v2916
        %v2989 = vunpack.c.l.b16 %v2919
        %v2990 = vunpack.c.l.b16 %v2922
        %v2991 = vunpack.c.l.b16 %v2925
        %v2992 = vunpack.c.l.b16 %v2928
        %v2993 = vpack.c.b16 %v2985, %v2985
        %v2994 = vpack.c.b16 %v2986, %v2986
        %v2995 = vpack.c.b16 %v2987, %v2987
        %v2996 = vpack.c.b16 %v2988, %v2988
        %v2997 = vpack.c.b16 %v2989, %v2989
        %v2998 = vpack.c.b16 %v2990, %v2990
        %v2999 = vpack.c.b16 %v2991, %v2991
        %v3000 = vpack.c.b16 %v2992, %v2992
        %v3002 = vshrl.u32 %v2961, 16
        %v3004 = vshll.u32 %v2961, 16
        %v3006 = vrot.slane %v3004, 1
        %v3007 = vor.u32 %v3002, %v3006
        %v3009 = vshll.u32 %v2993, 16
        %v3011 = vrot.slane %v3009, 1
        %v3012 = vsel %vm1762, %v3007, %v3011
        %v3014 = vshrl.u32 %v2962, 16
        %v3016 = vshll.u32 %v2962, 16
        %v3018 = vrot.slane %v3016, 1
        %v3019 = vor.u32 %v3014, %v3018
        %v3021 = vshll.u32 %v2994, 16
        %v3023 = vrot.slane %v3021, 1
        %v3024 = vsel %vm1762, %v3019, %v3023
        %v3026 = vshrl.u32 %v2963, 16
        %v3028 = vshll.u32 %v2963, 16
        %v3030 = vrot.slane %v3028, 1
        %v3031 = vor.u32 %v3026, %v3030
        %v3033 = vshll.u32 %v2995, 16
        %v3035 = vrot.slane %v3033, 1
        %v3036 = vsel %vm1762, %v3031, %v3035
        %v3038 = vshrl.u32 %v2964, 16
        %v3040 = vshll.u32 %v2964, 16
        %v3042 = vrot.slane %v3040, 1
        %v3043 = vor.u32 %v3038, %v3042
        %v3045 = vshll.u32 %v2996, 16
        %v3047 = vrot.slane %v3045, 1
        %v3048 = vsel %vm1762, %v3043, %v3047
        %v3050 = vshrl.u32 %v2965, 16
        %v3052 = vshll.u32 %v2965, 16
        %v3054 = vrot.slane %v3052, 1
        %v3055 = vor.u32 %v3050, %v3054
        %v3057 = vshll.u32 %v2997, 16
        %v3059 = vrot.slane %v3057, 1
        %v3060 = vsel %vm1762, %v3055, %v3059
        %v3062 = vshrl.u32 %v2966, 16
        %v3064 = vshll.u32 %v2966, 16
        %v3066 = vrot.slane %v3064, 1
        %v3067 = vor.u32 %v3062, %v3066
        %v3069 = vshll.u32 %v2998, 16
        %v3071 = vrot.slane %v3069, 1
        %v3072 = vsel %vm1762, %v3067, %v3071
        %v3074 = vshrl.u32 %v2967, 16
        %v3076 = vshll.u32 %v2967, 16
        %v3078 = vrot.slane %v3076, 1
        %v3079 = vor.u32 %v3074, %v3078
        %v3081 = vshll.u32 %v2999, 16
        %v3083 = vrot.slane %v3081, 1
        %v3084 = vsel %vm1762, %v3079, %v3083
        %v3086 = vshrl.u32 %v2968, 16
        %v3088 = vshll.u32 %v2968, 16
        %v3090 = vrot.slane %v3088, 1
        %v3091 = vor.u32 %v3086, %v3090
        %v3093 = vshll.u32 %v3000, 16
        %v3095 = vrot.slane %v3093, 1
        %v3096 = vsel %vm1762, %v3091, %v3095
        %v3105 = vrot.slane %v2961, 1
        %v3106 = vrot.slane %v2993, 1
        %v3107 = vsel %vm1867, %v3105, %v3106
        %v3108 = vrot.slane %v2962, 1
        %v3109 = vrot.slane %v2994, 1
        %v3110 = vsel %vm1867, %v3108, %v3109
        %v3111 = vrot.slane %v2963, 1
        %v3112 = vrot.slane %v2995, 1
        %v3113 = vsel %vm1867, %v3111, %v3112
        %v3114 = vrot.slane %v2964, 1
        %v3115 = vrot.slane %v2996, 1
        %v3116 = vsel %vm1867, %v3114, %v3115
        %v3117 = vrot.slane %v2965, 1
        %v3118 = vrot.slane %v2997, 1
        %v3119 = vsel %vm1867, %v3117, %v3118
        %v3120 = vrot.slane %v2966, 1
        %v3121 = vrot.slane %v2998, 1
        %v3122 = vsel %vm1867, %v3120, %v3121
        %v3123 = vrot.slane %v2967, 1
        %v3124 = vrot.slane %v2999, 1
        %v3125 = vsel %vm1867, %v3123, %v3124
        %v3126 = vrot.slane %v2968, 1
        %v3127 = vrot.slane %v3000, 1
        %v3128 = vsel %vm1867, %v3126, %v3127
        %v3137 = vld [vmem:[#allocation8 + $0x180] sm:$0xf]
        %v3138 = vld [vmem:[#allocation8 + $0x184] sm:$0xf]
        %v3139 = vld [vmem:[#allocation8 + $0x188] sm:$0xf]
        %v3140 = vld [vmem:[#allocation8 + $0x18c] sm:$0xf]
        %v3141 = vld [vmem:[#allocation8 + $0x190] sm:$0xf]
        %v3142 = vld [vmem:[#allocation8 + $0x194] sm:$0xf]
        %v3143 = vld [vmem:[#allocation8 + $0x198] sm:$0xf]
        %v3144 = vld [vmem:[#allocation8 + $0x19c] sm:$0xf]
        %v3145 = vld [vmem:[#allocation8 + $0x1a0] sm:$0xf]
        %v3146 = vld [vmem:[#allocation8 + $0x1a4] sm:$0xf]
        %v3147 = vld [vmem:[#allocation8 + $0x1a8] sm:$0xf]
        %v3148 = vld [vmem:[#allocation8 + $0x1ac] sm:$0xf]
        %v3149 = vld [vmem:[#allocation8 + $0x1b0] sm:$0xf]
        %v3150 = vld [vmem:[#allocation8 + $0x1b4] sm:$0xf]
        %v3151 = vld [vmem:[#allocation8 + $0x1b8] sm:$0xf]
        %v3152 = vld [vmem:[#allocation8 + $0x1bc] sm:$0xf]
        %v3153 = vld [vmem:[#allocation8 + $0x1c0] sm:$0xf]
        %v3154 = vld [vmem:[#allocation8 + $0x1c4] sm:$0xf]
        %v3155 = vld [vmem:[#allocation8 + $0x1c8] sm:$0xf]
        %v3156 = vld [vmem:[#allocation8 + $0x1cc] sm:$0xf]
        %v3157 = vld [vmem:[#allocation8 + $0x1d0] sm:$0xf]
        %v3158 = vld [vmem:[#allocation8 + $0x1d4] sm:$0xf]
        %v3159 = vld [vmem:[#allocation8 + $0x1d8] sm:$0xf]
        %v3160 = vld [vmem:[#allocation8 + $0x1dc] sm:$0xf]
        %v3161 = vld [vmem:[#allocation8 + $0x1e0] sm:$0xf]
        %v3162 = vld [vmem:[#allocation8 + $0x1e4] sm:$0xf]
        %v3163 = vld [vmem:[#allocation8 + $0x1e8] sm:$0xf]
        %v3164 = vld [vmem:[#allocation8 + $0x1ec] sm:$0xf]
        %v3165 = vld [vmem:[#allocation8 + $0x1f0] sm:$0xf]
        %v3166 = vld [vmem:[#allocation8 + $0x1f4] sm:$0xf]
        %v3167 = vld [vmem:[#allocation8 + $0x1f8] sm:$0xf]
        %v3168 = vld [vmem:[#allocation8 + $0x1fc] sm:$0xf]
        %v3169 = vld [vmem:[#allocation8 + $0x200] sm:$0xf]
        %v3170 = vld [vmem:[#allocation8 + $0x204] sm:$0xf]
        %v3171 = vld [vmem:[#allocation8 + $0x208] sm:$0xf]
        %v3172 = vld [vmem:[#allocation8 + $0x20c] sm:$0xf]
        %v3173 = vld [vmem:[#allocation8 + $0x210] sm:$0xf]
        %v3174 = vld [vmem:[#allocation8 + $0x214] sm:$0xf]
        %v3175 = vld [vmem:[#allocation8 + $0x218] sm:$0xf]
        %v3176 = vld [vmem:[#allocation8 + $0x21c] sm:$0xf]
        %v3177 = vld [vmem:[#allocation8 + $0x220] sm:$0xf]
        %v3178 = vld [vmem:[#allocation8 + $0x224] sm:$0xf]
        %v3179 = vld [vmem:[#allocation8 + $0x228] sm:$0xf]
        %v3180 = vld [vmem:[#allocation8 + $0x22c] sm:$0xf]
        %v3181 = vld [vmem:[#allocation8 + $0x230] sm:$0xf]
        %v3182 = vld [vmem:[#allocation8 + $0x234] sm:$0xf]
        %v3183 = vld [vmem:[#allocation8 + $0x238] sm:$0xf]
        %v3184 = vld [vmem:[#allocation8 + $0x23c] sm:$0xf]
        %v3233 = vunpack.c.l.b16 %v3137
        %v3234 = vunpack.c.l.b16 %v3138
        %v3235 = vunpack.c.l.b16 %v3139
        %v3236 = vunpack.c.l.b16 %v3140
        %v3237 = vunpack.c.l.b16 %v3141
        %v3238 = vunpack.c.l.b16 %v3142
        %v3239 = vunpack.c.l.b16 %v3143
        %v3240 = vunpack.c.l.b16 %v3144
        %v3241 = vunpack.c.l.b16 %v3145
        %v3242 = vunpack.c.l.b16 %v3146
        %v3243 = vunpack.c.l.b16 %v3147
        %v3244 = vunpack.c.l.b16 %v3148
        %v3245 = vunpack.c.l.b16 %v3149
        %v3246 = vunpack.c.l.b16 %v3150
        %v3247 = vunpack.c.l.b16 %v3151
        %v3248 = vunpack.c.l.b16 %v3152
        %v3249 = vunpack.c.l.b16 %v3153
        %v3250 = vunpack.c.l.b16 %v3154
        %v3251 = vunpack.c.l.b16 %v3155
        %v3252 = vunpack.c.l.b16 %v3156
        %v3253 = vunpack.c.l.b16 %v3157
        %v3254 = vunpack.c.l.b16 %v3158
        %v3255 = vunpack.c.l.b16 %v3159
        %v3256 = vunpack.c.l.b16 %v3160
        %v3257 = vunpack.c.l.b16 %v3161
        %v3258 = vunpack.c.l.b16 %v3162
        %v3259 = vunpack.c.l.b16 %v3163
        %v3260 = vunpack.c.l.b16 %v3164
        %v3261 = vunpack.c.l.b16 %v3165
        %v3262 = vunpack.c.l.b16 %v3166
        %v3263 = vunpack.c.l.b16 %v3167
        %v3264 = vunpack.c.l.b16 %v3168
        %v3265 = vunpack.c.l.b16 %v3169
        %v3266 = vunpack.c.l.b16 %v3170
        %v3267 = vunpack.c.l.b16 %v3171
        %v3268 = vunpack.c.l.b16 %v3172
        %v3269 = vunpack.c.l.b16 %v3173
        %v3270 = vunpack.c.l.b16 %v3174
        %v3271 = vunpack.c.l.b16 %v3175
        %v3272 = vunpack.c.l.b16 %v3176
        %v3273 = vunpack.c.l.b16 %v3177
        %v3274 = vunpack.c.l.b16 %v3178
        %v3275 = vunpack.c.l.b16 %v3179
        %v3276 = vunpack.c.l.b16 %v3180
        %v3277 = vunpack.c.l.b16 %v3181
        %v3278 = vunpack.c.l.b16 %v3182
        %v3279 = vunpack.c.l.b16 %v3183
        %v3280 = vunpack.c.l.b16 %v3184
        %v3281 = vpack.c.b16 %v3234, %v3233
        %v3282 = vpack.c.b16 %v3236, %v3235
        %v3283 = vpack.c.b16 %v3238, %v3237
        %v3284 = vpack.c.b16 %v3240, %v3239
        %v3285 = vpack.c.b16 %v3242, %v3241
        %v3286 = vpack.c.b16 %v3244, %v3243
        %v3287 = vpack.c.b16 %v3246, %v3245
        %v3288 = vpack.c.b16 %v3248, %v3247
        %v3289 = vpack.c.b16 %v3250, %v3249
        %v3290 = vpack.c.b16 %v3252, %v3251
        %v3291 = vpack.c.b16 %v3254, %v3253
        %v3292 = vpack.c.b16 %v3256, %v3255
        %v3293 = vpack.c.b16 %v3258, %v3257
        %v3294 = vpack.c.b16 %v3260, %v3259
        %v3295 = vpack.c.b16 %v3262, %v3261
        %v3296 = vpack.c.b16 %v3264, %v3263
        %v3297 = vpack.c.b16 %v3266, %v3265
        %v3298 = vpack.c.b16 %v3268, %v3267
        %v3299 = vpack.c.b16 %v3270, %v3269
        %v3300 = vpack.c.b16 %v3272, %v3271
        %v3301 = vpack.c.b16 %v3274, %v3273
        %v3302 = vpack.c.b16 %v3276, %v3275
        %v3303 = vpack.c.b16 %v3278, %v3277
        %v3304 = vpack.c.b16 %v3280, %v3279
        %3329 = vmatprep.subr.bf16.mxu0 0
        %3330 = vmatpush1.bf16.msra.mxu0 %v3281
        %3331 = vmatprep.subr.bf16.mxu0 0
        %3332 = vmatpush1.bf16.msra.mxu0 %v3282
        %3333 = vmatprep.subr.bf16.mxu0 0
        %3334 = vmatpush1.bf16.msra.mxu0 %v3283
        %3335 = vmatprep.subr.bf16.mxu0 0
        %3336 = vmatpush1.bf16.msra.mxu0 %v3284
        %3337 = vmatprep.subr.bf16.mxu0 0
        %3338 = vmatpush1.bf16.msra.mxu0 %v3285
        %3339 = vmatprep.subr.bf16.mxu0 0
        %3340 = vmatpush1.bf16.msra.mxu0 %v3286
        %3341 = vmatprep.subr.bf16.mxu0 0
        %3342 = vmatpush1.bf16.msra.mxu0 %v3287
        %3343 = vmatprep.subr.bf16.mxu0 0
        %3344 = vmatpush1.bf16.msra.mxu0 %v3288
        %3345 = vmatprep.subr.bf16.mxu0 0
        %3346 = vmatpush1.bf16.msra.mxu0 %v3289
        %3347 = vmatprep.subr.bf16.mxu0 0
        %3348 = vmatpush1.bf16.msra.mxu0 %v3290
        %3349 = vmatprep.subr.bf16.mxu0 0
        %3350 = vmatpush1.bf16.msra.mxu0 %v3291
        %3351 = vmatprep.subr.bf16.mxu0 0
        %3352 = vmatpush1.bf16.msra.mxu0 %v3292
        %3353 = vmatprep.subr.bf16.mxu0 0
        %3354 = vmatpush1.bf16.msra.mxu0 %v3293
        %3355 = vmatprep.subr.bf16.mxu0 0
        %3356 = vmatpush1.bf16.msra.mxu0 %v3294
        %3357 = vmatprep.subr.bf16.mxu0 0
        %3358 = vmatpush1.bf16.msra.mxu0 %v3295
        %3359 = vmatprep.subr.bf16.mxu0 0
        %3360 = vmatpush1.bf16.msra.mxu0 %v3296
        %3361 = vmatprep.mubr.bf16.mxu0 %v3012
        %3362 = vmatmul.mubr.bf16.gmra.mrb[0].mxu0 %v2961
        %v3363 = vpop.f32.mrb[0].mxu0
        %v3364 = vadd.f32 0.0, %v3363
        %v3365 = vpop.f32.mrb[0].mxu0
        %v3366 = vpop.f32.mrb[0].mxu0
        %v3367 = vadd.f32 0.0, %v3366
        %v3368 = vpop.f32.mrb[0].mxu0
        %3369 = vmatprep.mubr.bf16.mxu0 %v3024
        %3370 = vmatmul.mubr.bf16.gmra.mrb[0].mxu0 %v2962
        %v3371 = vpop.f32.mrb[0].mxu0
        %v3372 = vadd.f32 0.0, %v3371
        %v3373 = vpop.f32.mrb[0].mxu0
        %v3374 = vpop.f32.mrb[0].mxu0
        %v3375 = vadd.f32 0.0, %v3374
        %v3376 = vpop.f32.mrb[0].mxu0
        %3377 = vmatprep.mubr.bf16.mxu0 %v3036
        %3378 = vmatmul.mubr.bf16.gmra.mrb[0].mxu0 %v2963
        %v3379 = vpop.f32.mrb[0].mxu0
        %v3380 = vadd.f32 0.0, %v3379
        %v3381 = vpop.f32.mrb[0].mxu0
        %v3382 = vpop.f32.mrb[0].mxu0
        %v3383 = vadd.f32 0.0, %v3382
        %v3384 = vpop.f32.mrb[0].mxu0
        %3385 = vmatprep.mubr.bf16.mxu0 %v3048
        %3386 = vmatmul.mubr.bf16.gmra.mrb[0].mxu0 %v2964
        %v3387 = vpop.f32.mrb[0].mxu0
        %v3388 = vadd.f32 0.0, %v3387
        %v3389 = vpop.f32.mrb[0].mxu0
        %v3390 = vpop.f32.mrb[0].mxu0
        %v3391 = vadd.f32 0.0, %v3390
        %v3392 = vpop.f32.mrb[0].mxu0
        %3393 = vmatprep.mubr.bf16.mxu0 %v3060
        %3394 = vmatmul.mubr.bf16.gmra.mrb[0].mxu0 %v2965
        %v3395 = vpop.f32.mrb[0].mxu0
        %v3396 = vadd.f32 0.0, %v3395
        %v3397 = vpop.f32.mrb[0].mxu0
        %v3398 = vpop.f32.mrb[0].mxu0
        %v3399 = vadd.f32 0.0, %v3398
        %v3400 = vpop.f32.mrb[0].mxu0
        %3401 = vmatprep.mubr.bf16.mxu0 %v3072
        %3402 = vmatmul.mubr.bf16.gmra.mrb[0].mxu0 %v2966
        %v3403 = vpop.f32.mrb[0].mxu0
        %v3404 = vadd.f32 0.0, %v3403
        %v3405 = vpop.f32.mrb[0].mxu0
        %v3406 = vpop.f32.mrb[0].mxu0
        %v3407 = vadd.f32 0.0, %v3406
        %v3408 = vpop.f32.mrb[0].mxu0
        %3409 = vmatprep.mubr.bf16.mxu0 %v3084
        %3410 = vmatmul.mubr.bf16.gmra.mrb[0].mxu0 %v2967
        %v3411 = vpop.f32.mrb[0].mxu0
        %v3412 = vadd.f32 0.0, %v3411
        %v3413 = vpop.f32.mrb[0].mxu0
        %v3414 = vpop.f32.mrb[0].mxu0
        %v3415 = vadd.f32 0.0, %v3414
        %v3416 = vpop.f32.mrb[0].mxu0
        %3417 = vmatprep.mubr.bf16.mxu0 %v3096
        %3418 = vmatmul.mubr.bf16.gmra.mrb[0].mxu0 %v2968
        %v3419 = vpop.f32.mrb[0].mxu0
        %v3420 = vadd.f32 0.0, %v3419
        %v3421 = vpop.f32.mrb[0].mxu0
        %v3422 = vpop.f32.mrb[0].mxu0
        %v3423 = vadd.f32 0.0, %v3422
        %v3424 = vpop.f32.mrb[0].mxu0
        %3425 = vdwg.mxu0
        %3426 = vmatprep.subr.bf16.mxu0 0
        %3427 = vmatpush1.bf16.msra.mxu0 %v3297
        %3428 = vmatprep.subr.bf16.mxu0 0
        %3429 = vmatpush1.bf16.msra.mxu0 %v3298
        %3430 = vmatprep.subr.bf16.mxu0 0
        %3431 = vmatpush1.bf16.msra.mxu0 %v3299
        %3432 = vmatprep.subr.bf16.mxu0 0
        %3433 = vmatpush1.bf16.msra.mxu0 %v3300
        %3434 = vmatprep.subr.bf16.mxu0 0
        %3435 = vmatpush1.bf16.msra.mxu0 %v3301
        %3436 = vmatprep.subr.bf16.mxu0 0
        %3437 = vmatpush1.bf16.msra.mxu0 %v3302
        %3438 = vmatprep.subr.bf16.mxu0 0
        %3439 = vmatpush1.bf16.msra.mxu0 %v3303
        %3440 = vmatprep.subr.bf16.mxu0 0
        %3441 = vmatpush1.bf16.msra.mxu0 %v3304
        %3442 = vmatprep.subr.bf16.mxu0 0
        %3443 = vmatpush1.bf16.msra.mxu0 0
        %3444 = vmatprep.subr.bf16.mxu0 0
        %3445 = vmatpush1.bf16.msra.mxu0 0
        %3446 = vmatprep.subr.bf16.mxu0 0
        %3447 = vmatpush1.bf16.msra.mxu0 0
        %3448 = vmatprep.subr.bf16.mxu0 0
        %3449 = vmatpush1.bf16.msra.mxu0 0
        %3450 = vmatprep.subr.bf16.mxu0 0
        %3451 = vmatpush1.bf16.msra.mxu0 0
        %3452 = vmatprep.subr.bf16.mxu0 0
        %3453 = vmatpush1.bf16.msra.mxu0 0
        %3454 = vmatprep.subr.bf16.mxu0 0
        %3455 = vmatpush1.bf16.msra.mxu0 0
        %3456 = vmatprep.subr.bf16.mxu0 0
        %3457 = vmatpush1.bf16.msra.mxu0 0
        %3458 = vmatprep.mubr.bf16.mxu0 0
        %3459 = vmatmul.mubr.bf16.gmra.mrb[0].mxu0 %v3107
        %v3460 = vpop.f32.mrb[0].mxu0
        %v3461 = vadd.f32 %v3364, %v3460
        %v3462 = vpop.f32.mrb[0].mxu0
        %v3463 = vpop.f32.mrb[0].mxu0
        %v3464 = vadd.f32 %v3367, %v3463
        %v3465 = vpop.f32.mrb[0].mxu0
        %3466 = vmatprep.mubr.bf16.mxu0 0
        %3467 = vmatmul.mubr.bf16.gmra.mrb[0].mxu0 %v3110
        %v3468 = vpop.f32.mrb[0].mxu0
        %v3469 = vadd.f32 %v3372, %v3468
        %v3470 = vpop.f32.mrb[0].mxu0
        %v3471 = vpop.f32.mrb[0].mxu0
        %v3472 = vadd.f32 %v3375, %v3471
        %v3473 = vpop.f32.mrb[0].mxu0
        %3474 = vmatprep.mubr.bf16.mxu0 0
        %3475 = vmatmul.mubr.bf16.gmra.mrb[0].mxu0 %v3113
        %v3476 = vpop.f32.mrb[0].mxu0
        %v3477 = vadd.f32 %v3380, %v3476
        %v3478 = vpop.f32.mrb[0].mxu0
        %v3479 = vpop.f32.mrb[0].mxu0
        %v3480 = vadd.f32 %v3383, %v3479
        %v3481 = vpop.f32.mrb[0].mxu0
        %3482 = vmatprep.mubr.bf16.mxu0 0
        %3483 = vmatmul.mubr.bf16.gmra.mrb[0].mxu0 %v3116
        %v3484 = vpop.f32.mrb[0].mxu0
        %v3485 = vadd.f32 %v3388, %v3484
        %v3486 = vpop.f32.mrb[0].mxu0
        %v3487 = vpop.f32.mrb[0].mxu0
        %v3488 = vadd.f32 %v3391, %v3487
        %v3489 = vpop.f32.mrb[0].mxu0
        %3490 = vmatprep.mubr.bf16.mxu0 0
        %3491 = vmatmul.mubr.bf16.gmra.mrb[0].mxu0 %v3119
        %v3492 = vpop.f32.mrb[0].mxu0
        %v3493 = vadd.f32 %v3396, %v3492
        %v3494 = vpop.f32.mrb[0].mxu0
        %v3495 = vpop.f32.mrb[0].mxu0
        %v3496 = vadd.f32 %v3399, %v3495
        %v3497 = vpop.f32.mrb[0].mxu0
        %3498 = vmatprep.mubr.bf16.mxu0 0
        %3499 = vmatmul.mubr.bf16.gmra.mrb[0].mxu0 %v3122
        %v3500 = vpop.f32.mrb[0].mxu0
        %v3501 = vadd.f32 %v3404, %v3500
        %v3502 = vpop.f32.mrb[0].mxu0
        %v3503 = vpop.f32.mrb[0].mxu0
        %v3504 = vadd.f32 %v3407, %v3503
        %v3505 = vpop.f32.mrb[0].mxu0
        %3506 = vmatprep.mubr.bf16.mxu0 0
        %3507 = vmatmul.mubr.bf16.gmra.mrb[0].mxu0 %v3125
        %v3508 = vpop.f32.mrb[0].mxu0
        %v3509 = vadd.f32 %v3412, %v3508
        %v3510 = vpop.f32.mrb[0].mxu0
        %v3511 = vpop.f32.mrb[0].mxu0
        %v3512 = vadd.f32 %v3415, %v3511
        %v3513 = vpop.f32.mrb[0].mxu0
        %3514 = vmatprep.mubr.bf16.mxu0 0
        %3515 = vmatmul.mubr.bf16.gmra.mrb[0].mxu0 %v3128
        %v3516 = vpop.f32.mrb[0].mxu0
        %v3517 = vadd.f32 %v3420, %v3516
        %v3518 = vpop.f32.mrb[0].mxu0
        %v3519 = vpop.f32.mrb[0].mxu0
        %v3520 = vadd.f32 %v3423, %v3519
        %v3521 = vpop.f32.mrb[0].mxu0
        %3522 = vdwg.mxu0
        %v3523 = vadd.f32 %v2842, %v3461
        %v3524 = vadd.f32 %v2845, %v3464
        %v3525 = vadd.f32 %v2850, %v3469
        %v3526 = vadd.f32 %v2853, %v3472
        %v3527 = vadd.f32 %v2858, %v3477
        %v3528 = vadd.f32 %v2861, %v3480
        %v3529 = vadd.f32 %v2866, %v3485
        %v3530 = vadd.f32 %v2869, %v3488
        %v3531 = vadd.f32 %v2874, %v3493
        %v3532 = vadd.f32 %v2877, %v3496
        %v3533 = vadd.f32 %v2882, %v3501
        %v3534 = vadd.f32 %v2885, %v3504
        %v3535 = vadd.f32 %v2890, %v3509
        %v3536 = vadd.f32 %v2893, %v3512
        %v3537 = vadd.f32 %v2898, %v3517
        %v3538 = vadd.f32 %v2901, %v3520
        %v3540 = vlaneseq
        %v3541 = vshrl.u32 %v3540, 7
        %v3542 = vsub.s32 0, %v3541
        %v3543 = vrot.slane %v423, %v3542
        %v3545 = vadd.f32 %v3523, %v3543
        %v3546 = vadd.f32 %v3524, %v3543
        %v3547 = vadd.f32 %v3525, %v3543
        %v3548 = vadd.f32 %v3526, %v3543
        %v3549 = vadd.f32 %v3527, %v3543
        %v3550 = vadd.f32 %v3528, %v3543
        %v3551 = vadd.f32 %v3529, %v3543
        %v3552 = vadd.f32 %v3530, %v3543
        %v3553 = vadd.f32 %v3531, %v3543
        %v3554 = vadd.f32 %v3532, %v3543
        %v3555 = vadd.f32 %v3533, %v3543
        %v3556 = vadd.f32 %v3534, %v3543
        %v3557 = vadd.f32 %v3535, %v3543
        %v3558 = vadd.f32 %v3536, %v3543
        %v3559 = vadd.f32 %v3537, %v3543
        %v3560 = vadd.f32 %v3538, %v3543
        %v3561 = vmax.f32 %v3545, 0.0
        %v3562 = vmax.f32 %v3546, 0.0
        %v3563 = vmax.f32 %v3547, 0.0
        %v3564 = vmax.f32 %v3548, 0.0
        %v3565 = vmax.f32 %v3549, 0.0
        %v3566 = vmax.f32 %v3550, 0.0
        %v3567 = vmax.f32 %v3551, 0.0
        %v3568 = vmax.f32 %v3552, 0.0
        %v3569 = vmax.f32 %v3553, 0.0
        %v3570 = vmax.f32 %v3554, 0.0
        %v3571 = vmax.f32 %v3555, 0.0
        %v3572 = vmax.f32 %v3556, 0.0
        %v3573 = vmax.f32 %v3557, 0.0
        %v3574 = vmax.f32 %v3558, 0.0
        %v3575 = vmax.f32 %v3559, 0.0
        %v3576 = vmax.f32 %v3560, 0.0
        %v3577 = vpack.c.bf16 %v3562, %v3561
        %v3578 = vpack.c.bf16 %v3564, %v3563
        %v3579 = vpack.c.bf16 %v3566, %v3565
        %v3580 = vpack.c.bf16 %v3568, %v3567
        %v3581 = vpack.c.bf16 %v3570, %v3569
        %v3582 = vpack.c.bf16 %v3572, %v3571
        %v3583 = vpack.c.bf16 %v3574, %v3573
        %v3584 = vpack.c.bf16 %v3576, %v3575
        %v3585 = vld [vmem:[#allocation9] sm:$0xf]
        %v3586 = vld [vmem:[#allocation9 + $0x10] sm:$0xf]
        %v3587 = vld [vmem:[#allocation9 + $0x20] sm:$0xf]
        %v3588 = vld [vmem:[#allocation9 + $0x30] sm:$0xf]
        %v3589 = vld [vmem:[#allocation9 + $0x40] sm:$0xf]
        %v3590 = vld [vmem:[#allocation9 + $0x50] sm:$0xf]
        %v3591 = vld [vmem:[#allocation9 + $0x60] sm:$0xf]
        %v3592 = vld [vmem:[#allocation9 + $0x70] sm:$0xf]
        %v3593 = vld [vmem:[#allocation9 + $0x80] sm:$0xf]
        %v3594 = vld [vmem:[#allocation9 + $0x90] sm:$0xf]
        %v3595 = vld [vmem:[#allocation9 + $0xa0] sm:$0xf]
        %v3596 = vld [vmem:[#allocation9 + $0xb0] sm:$0xf]
        %v3597 = vld [vmem:[#allocation9 + $0xc0] sm:$0xf]
        %v3598 = vld [vmem:[#allocation9 + $0xd0] sm:$0xf]
        %v3599 = vld [vmem:[#allocation9 + $0xe0] sm:$0xf]
        %v3600 = vld [vmem:[#allocation9 + $0xf0] sm:$0xf]
        %v3601 = vld [vmem:[%s498] sm:$0xf]
        %v3602 = vld [vmem:[%s498 + $0x10] sm:$0xf]
        %v3603 = vld [vmem:[%s498 + $0x20] sm:$0xf]
        %v3604 = vld [vmem:[%s498 + $0x30] sm:$0xf]
        %v3605 = vld [vmem:[%s498 + $0x40] sm:$0xf]
        %v3606 = vld [vmem:[%s498 + $0x50] sm:$0xf]
        %v3607 = vld [vmem:[%s498 + $0x60] sm:$0xf]
        %v3608 = vld [vmem:[%s498 + $0x70] sm:$0xf]
        %v3609 = vld [vmem:[%s498 + $0x80] sm:$0xf]
        %v3610 = vld [vmem:[%s498 + $0x90] sm:$0xf]
        %v3611 = vld [vmem:[%s498 + $0xa0] sm:$0xf]
        %v3612 = vld [vmem:[%s498 + $0xb0] sm:$0xf]
        %v3613 = vld [vmem:[%s498 + $0xc0] sm:$0xf]
        %v3614 = vld [vmem:[%s498 + $0xd0] sm:$0xf]
        %v3615 = vld [vmem:[%s498 + $0xe0] sm:$0xf]
        %v3616 = vld [vmem:[%s498 + $0xf0] sm:$0xf]
        %v3617 = vld [vmem:[%s6] sm:$0x1]
        %v3619 = vlaneseq
        %v3620 = vshrl.u32 %v3619, 7
        %v3621 = vsub.s32 0, %v3620
        %v3622 = vrot.slane %v3617, %v3621
        %v3640 = vunpack.c.l.b16 %v3585
        %v3641 = vunpack.c.l.b16 %v3586
        %v3642 = vunpack.c.l.b16 %v3587
        %v3643 = vunpack.c.l.b16 %v3588
        %v3644 = vunpack.c.l.b16 %v3589
        %v3645 = vunpack.c.l.b16 %v3590
        %v3646 = vunpack.c.l.b16 %v3591
        %v3647 = vunpack.c.l.b16 %v3592
        %v3648 = vunpack.c.l.b16 %v3593
        %v3649 = vunpack.c.l.b16 %v3594
        %v3650 = vunpack.c.l.b16 %v3595
        %v3651 = vunpack.c.l.b16 %v3596
        %v3652 = vunpack.c.l.b16 %v3597
        %v3653 = vunpack.c.l.b16 %v3598
        %v3654 = vunpack.c.l.b16 %v3599
        %v3655 = vunpack.c.l.b16 %v3600
        %v3656 = vpack.c.b16 %v3641, %v3640
        %v3657 = vpack.c.b16 %v3643, %v3642
        %v3658 = vpack.c.b16 %v3645, %v3644
        %v3659 = vpack.c.b16 %v3647, %v3646
        %v3660 = vpack.c.b16 %v3649, %v3648
        %v3661 = vpack.c.b16 %v3651, %v3650
        %v3662 = vpack.c.b16 %v3653, %v3652
        %v3663 = vpack.c.b16 %v3655, %v3654
        %3672 = vmatprep.subr.bf16.mxu0 0
        %3673 = vmatpush1.bf16.msra.mxu0 %v3656
        %3674 = vmatprep.subr.bf16.mxu0 0
        %3675 = vmatpush1.bf16.msra.mxu0 %v3657
        %3676 = vmatprep.subr.bf16.mxu0 0
        %3677 = vmatpush1.bf16.msra.mxu0 %v3658
        %3678 = vmatprep.subr.bf16.mxu0 0
        %3679 = vmatpush1.bf16.msra.mxu0 %v3659
        %3680 = vmatprep.subr.bf16.mxu0 0
        %3681 = vmatpush1.bf16.msra.mxu0 %v3660
        %3682 = vmatprep.subr.bf16.mxu0 0
        %3683 = vmatpush1.bf16.msra.mxu0 %v3661
        %3684 = vmatprep.subr.bf16.mxu0 0
        %3685 = vmatpush1.bf16.msra.mxu0 %v3662
        %3686 = vmatprep.subr.bf16.mxu0 0
        %3687 = vmatpush1.bf16.msra.mxu0 %v3663
        %3688 = vmatprep.subr.bf16.mxu0 0
        %3689 = vmatpush1.bf16.msra.mxu0 0
        %3690 = vmatprep.subr.bf16.mxu0 0
        %3691 = vmatpush1.bf16.msra.mxu0 0
        %3692 = vmatprep.subr.bf16.mxu0 0
        %3693 = vmatpush1.bf16.msra.mxu0 0
        %3694 = vmatprep.subr.bf16.mxu0 0
        %3695 = vmatpush1.bf16.msra.mxu0 0
        %3696 = vmatprep.subr.bf16.mxu0 0
        %3697 = vmatpush1.bf16.msra.mxu0 0
        %3698 = vmatprep.subr.bf16.mxu0 0
        %3699 = vmatpush1.bf16.msra.mxu0 0
        %3700 = vmatprep.subr.bf16.mxu0 0
        %3701 = vmatpush1.bf16.msra.mxu0 0
        %3702 = vmatprep.subr.bf16.mxu0 0
        %3703 = vmatpush1.bf16.msra.mxu0 0
        %3704 = vmatprep.mubr.bf16.mxu0 0
        %3705 = vmatmul.mubr.bf16.gmra.mrb[0].mxu0 %v3577
        %v3706 = vpop.f32.mrb[0].mxu0
        %v3707 = vadd.f32 %v3622, %v3706
        %v3708 = vpop.f32.mrb[0].mxu0
        %v3709 = vpop.f32.mrb[0].mxu0
        %v3710 = vadd.f32 %v3622, %v3709
        %v3711 = vpop.f32.mrb[0].mxu0
        %3712 = vmatprep.mubr.bf16.mxu0 0
        %3713 = vmatmul.mubr.bf16.gmra.mrb[0].mxu0 %v3578
        %v3714 = vpop.f32.mrb[0].mxu0
        %v3715 = vadd.f32 %v3622, %v3714
        %v3716 = vpop.f32.mrb[0].mxu0
        %v3717 = vpop.f32.mrb[0].mxu0
        %v3718 = vadd.f32 %v3622, %v3717
        %v3719 = vpop.f32.mrb[0].mxu0
        %3720 = vmatprep.mubr.bf16.mxu0 0
        %3721 = vmatmul.mubr.bf16.gmra.mrb[0].mxu0 %v3579
        %v3722 = vpop.f32.mrb[0].mxu0
        %v3723 = vadd.f32 %v3622, %v3722
        %v3724 = vpop.f32.mrb[0].mxu0
        %v3725 = vpop.f32.mrb[0].mxu0
        %v3726 = vadd.f32 %v3622, %v3725
        %v3727 = vpop.f32.mrb[0].mxu0
        %3728 = vmatprep.mubr.bf16.mxu0 0
        %3729 = vmatmul.mubr.bf16.gmra.mrb[0].mxu0 %v3580
        %v3730 = vpop.f32.mrb[0].mxu0
        %v3731 = vadd.f32 %v3622, %v3730
        %v3732 = vpop.f32.mrb[0].mxu0
        %v3733 = vpop.f32.mrb[0].mxu0
        %v3734 = vadd.f32 %v3622, %v3733
        %v3735 = vpop.f32.mrb[0].mxu0
        %3736 = vmatprep.mubr.bf16.mxu0 0
        %3737 = vmatmul.mubr.bf16.gmra.mrb[0].mxu0 %v3581
        %v3738 = vpop.f32.mrb[0].mxu0
        %v3739 = vadd.f32 %v3622, %v3738
        %v3740 = vpop.f32.mrb[0].mxu0
        %v3741 = vpop.f32.mrb[0].mxu0
        %v3742 = vadd.f32 %v3622, %v3741
        %v3743 = vpop.f32.mrb[0].mxu0
        %3744 = vmatprep.mubr.bf16.mxu0 0
        %3745 = vmatmul.mubr.bf16.gmra.mrb[0].mxu0 %v3582
        %v3746 = vpop.f32.mrb[0].mxu0
        %v3747 = vadd.f32 %v3622, %v3746
        %v3748 = vpop.f32.mrb[0].mxu0
        %v3749 = vpop.f32.mrb[0].mxu0
        %v3750 = vadd.f32 %v3622, %v3749
        %v3751 = vpop.f32.mrb[0].mxu0
        %3752 = vmatprep.mubr.bf16.mxu0 0
        %3753 = vmatmul.mubr.bf16.gmra.mrb[0].mxu0 %v3583
        %v3754 = vpop.f32.mrb[0].mxu0
        %v3755 = vadd.f32 %v3622, %v3754
        %v3756 = vpop.f32.mrb[0].mxu0
        %v3757 = vpop.f32.mrb[0].mxu0
        %v3758 = vadd.f32 %v3622, %v3757
        %v3759 = vpop.f32.mrb[0].mxu0
        %3760 = vmatprep.mubr.bf16.mxu0 0
        %3761 = vmatmul.mubr.bf16.gmra.mrb[0].mxu0 %v3584
        %v3762 = vpop.f32.mrb[0].mxu0
        %v3763 = vadd.f32 %v3622, %v3762
        %v3764 = vpop.f32.mrb[0].mxu0
        %v3765 = vpop.f32.mrb[0].mxu0
        %v3766 = vadd.f32 %v3622, %v3765
        %v3767 = vpop.f32.mrb[0].mxu0
        %3768 = vdwg.mxu0
        %v3769 = vunpack.c.l.bf16 %v3601
        %v3770 = vunpack.c.l.bf16 %v3602
        %v3771 = vunpack.c.l.bf16 %v3603
        %v3772 = vunpack.c.l.bf16 %v3604
        %v3773 = vunpack.c.l.bf16 %v3605
        %v3774 = vunpack.c.l.bf16 %v3606
        %v3775 = vunpack.c.l.bf16 %v3607
        %v3776 = vunpack.c.l.bf16 %v3608
        %v3777 = vunpack.c.l.bf16 %v3609
        %v3778 = vunpack.c.l.bf16 %v3610
        %v3779 = vunpack.c.l.bf16 %v3611
        %v3780 = vunpack.c.l.bf16 %v3612
        %v3781 = vunpack.c.l.bf16 %v3613
        %v3782 = vunpack.c.l.bf16 %v3614
        %v3783 = vunpack.c.l.bf16 %v3615
        %v3784 = vunpack.c.l.bf16 %v3616
        %v3785 = vadd.f32 %v3707, %v3769
        %v3786 = vadd.f32 %v3710, %v3770
        %v3787 = vadd.f32 %v3715, %v3771
        %v3788 = vadd.f32 %v3718, %v3772
        %v3789 = vadd.f32 %v3723, %v3773
        %v3790 = vadd.f32 %v3726, %v3774
        %v3791 = vadd.f32 %v3731, %v3775
        %v3792 = vadd.f32 %v3734, %v3776
        %v3793 = vadd.f32 %v3739, %v3777
        %v3794 = vadd.f32 %v3742, %v3778
        %v3795 = vadd.f32 %v3747, %v3779
        %v3796 = vadd.f32 %v3750, %v3780
        %v3797 = vadd.f32 %v3755, %v3781
        %v3798 = vadd.f32 %v3758, %v3782
        %v3799 = vadd.f32 %v3763, %v3783
        %v3800 = vadd.f32 %v3766, %v3784
        %v3801 = vmax.f32 %v3785, 0.0
        %v3802 = vmax.f32 %v3786, 0.0
        %v3803 = vmax.f32 %v3787, 0.0
        %v3804 = vmax.f32 %v3788, 0.0
        %v3805 = vmax.f32 %v3789, 0.0
        %v3806 = vmax.f32 %v3790, 0.0
        %v3807 = vmax.f32 %v3791, 0.0
        %v3808 = vmax.f32 %v3792, 0.0
        %v3809 = vmax.f32 %v3793, 0.0
        %v3810 = vmax.f32 %v3794, 0.0
        %v3811 = vmax.f32 %v3795, 0.0
        %v3812 = vmax.f32 %v3796, 0.0
        %v3813 = vmax.f32 %v3797, 0.0
        %v3814 = vmax.f32 %v3798, 0.0
        %v3815 = vmax.f32 %v3799, 0.0
        %v3816 = vmax.f32 %v3800, 0.0
        %v3817 = vpack.c.bf16 %v3802, %v3801
        %v3818 = vpack.c.bf16 %v3804, %v3803
        %v3819 = vpack.c.bf16 %v3806, %v3805
        %v3820 = vpack.c.bf16 %v3808, %v3807
        %v3821 = vpack.c.bf16 %v3810, %v3809
        %v3822 = vpack.c.bf16 %v3812, %v3811
        %v3823 = vpack.c.bf16 %v3814, %v3813
        %v3824 = vpack.c.bf16 %v3816, %v3815
        %v3833 = vunpack.c.l.b16 %v3817
        %v3834 = vunpack.c.h.b16 %v3817
        %v3835 = vunpack.c.l.b16 %v3818
        %v3836 = vunpack.c.h.b16 %v3818
        %v3837 = vunpack.c.l.b16 %v3819
        %v3838 = vunpack.c.h.b16 %v3819
        %v3839 = vunpack.c.l.b16 %v3820
        %v3840 = vunpack.c.h.b16 %v3820
        %v3841 = vunpack.c.l.b16 %v3821
        %v3842 = vunpack.c.h.b16 %v3821
        %v3843 = vunpack.c.l.b16 %v3822
        %v3844 = vunpack.c.h.b16 %v3822
        %v3845 = vunpack.c.l.b16 %v3823
        %v3846 = vunpack.c.h.b16 %v3823
        %v3847 = vunpack.c.l.b16 %v3824
        %v3848 = vunpack.c.h.b16 %v3824
        %v3849 = vpack.c.b16 %v3833, %v3833
        %v3850 = vpack.c.b16 %v3834, %v3834
        %v3851 = vpack.c.b16 %v3835, %v3835
        %v3852 = vpack.c.b16 %v3836, %v3836
        %v3853 = vpack.c.b16 %v3837, %v3837
        %v3854 = vpack.c.b16 %v3838, %v3838
        %v3855 = vpack.c.b16 %v3839, %v3839
        %v3856 = vpack.c.b16 %v3840, %v3840
        %v3857 = vpack.c.b16 %v3841, %v3841
        %v3858 = vpack.c.b16 %v3842, %v3842
        %v3859 = vpack.c.b16 %v3843, %v3843
        %v3860 = vpack.c.b16 %v3844, %v3844
        %v3861 = vpack.c.b16 %v3845, %v3845
        %v3862 = vpack.c.b16 %v3846, %v3846
        %v3863 = vpack.c.b16 %v3847, %v3847
        %v3864 = vpack.c.b16 %v3848, %v3848
        %3881 = vst [vmem:[%s354] sm:$0xf] %v3849
        %3882 = vst [vmem:[%s354 + $0x10] sm:$0xf] %v3850
        %3883 = vst [vmem:[%s354 + $0x20] sm:$0xf] %v3851
        %3884 = vst [vmem:[%s354 + $0x30] sm:$0xf] %v3852
        %3885 = vst [vmem:[%s354 + $0x40] sm:$0xf] %v3853
        %3886 = vst [vmem:[%s354 + $0x50] sm:$0xf] %v3854
        %3887 = vst [vmem:[%s354 + $0x60] sm:$0xf] %v3855
        %3888 = vst [vmem:[%s354 + $0x70] sm:$0xf] %v3856
        %3889 = vst [vmem:[%s354 + $0x80] sm:$0xf] %v3857
        %3890 = vst [vmem:[%s354 + $0x90] sm:$0xf] %v3858
        %3891 = vst [vmem:[%s354 + $0xa0] sm:$0xf] %v3859
        %3892 = vst [vmem:[%s354 + $0xb0] sm:$0xf] %v3860
        %3893 = vst [vmem:[%s354 + $0xc0] sm:$0xf] %v3861
        %3894 = vst [vmem:[%s354 + $0xd0] sm:$0xf] %v3862
        %3895 = vst [vmem:[%s354 + $0xe0] sm:$0xf] %v3863
        %3896 = vst [vmem:[%s354 + $0xf0] sm:$0xf] %v3864
        %v3897 = vld [vmem:[#allocation9 + $0x4] sm:$0xf]
        %v3898 = vld [vmem:[#allocation9 + $0x14] sm:$0xf]
        %v3899 = vld [vmem:[#allocation9 + $0x24] sm:$0xf]
        %v3900 = vld [vmem:[#allocation9 + $0x34] sm:$0xf]
        %v3901 = vld [vmem:[#allocation9 + $0x44] sm:$0xf]
        %v3902 = vld [vmem:[#allocation9 + $0x54] sm:$0xf]
        %v3903 = vld [vmem:[#allocation9 + $0x64] sm:$0xf]
        %v3904 = vld [vmem:[#allocation9 + $0x74] sm:$0xf]
        %v3905 = vld [vmem:[#allocation9 + $0x84] sm:$0xf]
        %v3906 = vld [vmem:[#allocation9 + $0x94] sm:$0xf]
        %v3907 = vld [vmem:[#allocation9 + $0xa4] sm:$0xf]
        %v3908 = vld [vmem:[#allocation9 + $0xb4] sm:$0xf]
        %v3909 = vld [vmem:[#allocation9 + $0xc4] sm:$0xf]
        %v3910 = vld [vmem:[#allocation9 + $0xd4] sm:$0xf]
        %v3911 = vld [vmem:[#allocation9 + $0xe4] sm:$0xf]
        %v3912 = vld [vmem:[#allocation9 + $0xf4] sm:$0xf]
        %v3913 = vld [vmem:[%s498 + $0x4] sm:$0xf]
        %v3914 = vld [vmem:[%s498 + $0x14] sm:$0xf]
        %v3915 = vld [vmem:[%s498 + $0x24] sm:$0xf]
        %v3916 = vld [vmem:[%s498 + $0x34] sm:$0xf]
        %v3917 = vld [vmem:[%s498 + $0x44] sm:$0xf]
        %v3918 = vld [vmem:[%s498 + $0x54] sm:$0xf]
        %v3919 = vld [vmem:[%s498 + $0x64] sm:$0xf]
        %v3920 = vld [vmem:[%s498 + $0x74] sm:$0xf]
        %v3921 = vld [vmem:[%s498 + $0x84] sm:$0xf]
        %v3922 = vld [vmem:[%s498 + $0x94] sm:$0xf]
        %v3923 = vld [vmem:[%s498 + $0xa4] sm:$0xf]
        %v3924 = vld [vmem:[%s498 + $0xb4] sm:$0xf]
        %v3925 = vld [vmem:[%s498 + $0xc4] sm:$0xf]
        %v3926 = vld [vmem:[%s498 + $0xd4] sm:$0xf]
        %v3927 = vld [vmem:[%s498 + $0xe4] sm:$0xf]
        %v3928 = vld [vmem:[%s498 + $0xf4] sm:$0xf]
        %v3929 = vld [vmem:[%s6 + $0x1] sm:$0x1]
        %v3931 = vlaneseq
        %v3932 = vshrl.u32 %v3931, 7
        %v3933 = vsub.s32 0, %v3932
        %v3934 = vrot.slane %v3929, %v3933
        %v3952 = vunpack.c.l.b16 %v3897
        %v3953 = vunpack.c.l.b16 %v3898
        %v3954 = vunpack.c.l.b16 %v3899
        %v3955 = vunpack.c.l.b16 %v3900
        %v3956 = vunpack.c.l.b16 %v3901
        %v3957 = vunpack.c.l.b16 %v3902
        %v3958 = vunpack.c.l.b16 %v3903
        %v3959 = vunpack.c.l.b16 %v3904
        %v3960 = vunpack.c.l.b16 %v3905
        %v3961 = vunpack.c.l.b16 %v3906
        %v3962 = vunpack.c.l.b16 %v3907
        %v3963 = vunpack.c.l.b16 %v3908
        %v3964 = vunpack.c.l.b16 %v3909
        %v3965 = vunpack.c.l.b16 %v3910
        %v3966 = vunpack.c.l.b16 %v3911
        %v3967 = vunpack.c.l.b16 %v3912
        %v3968 = vpack.c.b16 %v3953, %v3952
        %v3969 = vpack.c.b16 %v3955, %v3954
        %v3970 = vpack.c.b16 %v3957, %v3956
        %v3971 = vpack.c.b16 %v3959, %v3958
        %v3972 = vpack.c.b16 %v3961, %v3960
        %v3973 = vpack.c.b16 %v3963, %v3962
        %v3974 = vpack.c.b16 %v3965, %v3964
        %v3975 = vpack.c.b16 %v3967, %v3966
        %3984 = vmatprep.subr.bf16.mxu0 0
        %3985 = vmatpush1.bf16.msra.mxu0 %v3968
        %3986 = vmatprep.subr.bf16.mxu0 0
        %3987 = vmatpush1.bf16.msra.mxu0 %v3969
        %3988 = vmatprep.subr.bf16.mxu0 0
        %3989 = vmatpush1.bf16.msra.mxu0 %v3970
        %3990 = vmatprep.subr.bf16.mxu0 0
        %3991 = vmatpush1.bf16.msra.mxu0 %v3971
        %3992 = vmatprep.subr.bf16.mxu0 0
        %3993 = vmatpush1.bf16.msra.mxu0 %v3972
        %3994 = vmatprep.subr.bf16.mxu0 0
        %3995 = vmatpush1.bf16.msra.mxu0 %v3973
        %3996 = vmatprep.subr.bf16.mxu0 0
        %3997 = vmatpush1.bf16.msra.mxu0 %v3974
        %3998 = vmatprep.subr.bf16.mxu0 0
        %3999 = vmatpush1.bf16.msra.mxu0 %v3975
        %4000 = vmatprep.subr.bf16.mxu0 0
        %4001 = vmatpush1.bf16.msra.mxu0 0
        %4002 = vmatprep.subr.bf16.mxu0 0
        %4003 = vmatpush1.bf16.msra.mxu0 0
        %4004 = vmatprep.subr.bf16.mxu0 0
        %4005 = vmatpush1.bf16.msra.mxu0 0
        %4006 = vmatprep.subr.bf16.mxu0 0
        %4007 = vmatpush1.bf16.msra.mxu0 0
        %4008 = vmatprep.subr.bf16.mxu0 0
        %4009 = vmatpush1.bf16.msra.mxu0 0
        %4010 = vmatprep.subr.bf16.mxu0 0
        %4011 = vmatpush1.bf16.msra.mxu0 0
        %4012 = vmatprep.subr.bf16.mxu0 0
        %4013 = vmatpush1.bf16.msra.mxu0 0
        %4014 = vmatprep.subr.bf16.mxu0 0
        %4015 = vmatpush1.bf16.msra.mxu0 0
        %4016 = vmatprep.mubr.bf16.mxu0 0
        %4017 = vmatmul.mubr.bf16.gmra.mrb[0].mxu0 %v3577
        %v4018 = vpop.f32.mrb[0].mxu0
        %v4019 = vadd.f32 %v3934, %v4018
        %v4020 = vpop.f32.mrb[0].mxu0
        %v4021 = vpop.f32.mrb[0].mxu0
        %v4022 = vadd.f32 %v3934, %v4021
        %v4023 = vpop.f32.mrb[0].mxu0
        %4024 = vmatprep.mubr.bf16.mxu0 0
        %4025 = vmatmul.mubr.bf16.gmra.mrb[0].mxu0 %v3578
        %v4026 = vpop.f32.mrb[0].mxu0
        %v4027 = vadd.f32 %v3934, %v4026
        %v4028 = vpop.f32.mrb[0].mxu0
        %v4029 = vpop.f32.mrb[0].mxu0
        %v4030 = vadd.f32 %v3934, %v4029
        %v4031 = vpop.f32.mrb[0].mxu0
        %4032 = vmatprep.mubr.bf16.mxu0 0
        %4033 = vmatmul.mubr.bf16.gmra.mrb[0].mxu0 %v3579
        %v4034 = vpop.f32.mrb[0].mxu0
        %v4035 = vadd.f32 %v3934, %v4034
        %v4036 = vpop.f32.mrb[0].mxu0
        %v4037 = vpop.f32.mrb[0].mxu0
        %v4038 = vadd.f32 %v3934, %v4037
        %v4039 = vpop.f32.mrb[0].mxu0
        %4040 = vmatprep.mubr.bf16.mxu0 0
        %4041 = vmatmul.mubr.bf16.gmra.mrb[0].mxu0 %v3580
        %v4042 = vpop.f32.mrb[0].mxu0
        %v4043 = vadd.f32 %v3934, %v4042
        %v4044 = vpop.f32.mrb[0].mxu0
        %v4045 = vpop.f32.mrb[0].mxu0
        %v4046 = vadd.f32 %v3934, %v4045
        %v4047 = vpop.f32.mrb[0].mxu0
        %4048 = vmatprep.mubr.bf16.mxu0 0
        %4049 = vmatmul.mubr.bf16.gmra.mrb[0].mxu0 %v3581
        %v4050 = vpop.f32.mrb[0].mxu0
        %v4051 = vadd.f32 %v3934, %v4050
        %v4052 = vpop.f32.mrb[0].mxu0
        %v4053 = vpop.f32.mrb[0].mxu0
        %v4054 = vadd.f32 %v3934, %v4053
        %v4055 = vpop.f32.mrb[0].mxu0
        %4056 = vmatprep.mubr.bf16.mxu0 0
        %4057 = vmatmul.mubr.bf16.gmra.mrb[0].mxu0 %v3582
        %v4058 = vpop.f32.mrb[0].mxu0
        %v4059 = vadd.f32 %v3934, %v4058
        %v4060 = vpop.f32.mrb[0].mxu0
        %v4061 = vpop.f32.mrb[0].mxu0
        %v4062 = vadd.f32 %v3934, %v4061
        %v4063 = vpop.f32.mrb[0].mxu0
        %4064 = vmatprep.mubr.bf16.mxu0 0
        %4065 = vmatmul.mubr.bf16.gmra.mrb[0].mxu0 %v3583
        %v4066 = vpop.f32.mrb[0].mxu0
        %v4067 = vadd.f32 %v3934, %v4066
        %v4068 = vpop.f32.mrb[0].mxu0
        %v4069 = vpop.f32.mrb[0].mxu0
        %v4070 = vadd.f32 %v3934, %v4069
        %v4071 = vpop.f32.mrb[0].mxu0
        %4072 = vmatprep.mubr.bf16.mxu0 0
        %4073 = vmatmul.mubr.bf16.gmra.mrb[0].mxu0 %v3584
        %v4074 = vpop.f32.mrb[0].mxu0
        %v4075 = vadd.f32 %v3934, %v4074
        %v4076 = vpop.f32.mrb[0].mxu0
        %v4077 = vpop.f32.mrb[0].mxu0
        %v4078 = vadd.f32 %v3934, %v4077
        %v4079 = vpop.f32.mrb[0].mxu0
        %4080 = vdwg.mxu0
        %v4081 = vunpack.c.l.bf16 %v3913
        %v4082 = vunpack.c.l.bf16 %v3914
        %v4083 = vunpack.c.l.bf16 %v3915
        %v4084 = vunpack.c.l.bf16 %v3916
        %v4085 = vunpack.c.l.bf16 %v3917
        %v4086 = vunpack.c.l.bf16 %v3918
        %v4087 = vunpack.c.l.bf16 %v3919
        %v4088 = vunpack.c.l.bf16 %v3920
        %v4089 = vunpack.c.l.bf16 %v3921
        %v4090 = vunpack.c.l.bf16 %v3922
        %v4091 = vunpack.c.l.bf16 %v3923
        %v4092 = vunpack.c.l.bf16 %v3924
        %v4093 = vunpack.c.l.bf16 %v3925
        %v4094 = vunpack.c.l.bf16 %v3926
        %v4095 = vunpack.c.l.bf16 %v3927
        %v4096 = vunpack.c.l.bf16 %v3928
        %v4097 = vadd.f32 %v4019, %v4081
        %v4098 = vadd.f32 %v4022, %v4082
        %v4099 = vadd.f32 %v4027, %v4083
        %v4100 = vadd.f32 %v4030, %v4084
        %v4101 = vadd.f32 %v4035, %v4085
        %v4102 = vadd.f32 %v4038, %v4086
        %v4103 = vadd.f32 %v4043, %v4087
        %v4104 = vadd.f32 %v4046, %v4088
        %v4105 = vadd.f32 %v4051, %v4089
        %v4106 = vadd.f32 %v4054, %v4090
        %v4107 = vadd.f32 %v4059, %v4091
        %v4108 = vadd.f32 %v4062, %v4092
        %v4109 = vadd.f32 %v4067, %v4093
        %v4110 = vadd.f32 %v4070, %v4094
        %v4111 = vadd.f32 %v4075, %v4095
        %v4112 = vadd.f32 %v4078, %v4096
        %v4113 = vmax.f32 %v4097, 0.0
        %v4114 = vmax.f32 %v4098, 0.0
        %v4115 = vmax.f32 %v4099, 0.0
        %v4116 = vmax.f32 %v4100, 0.0
        %v4117 = vmax.f32 %v4101, 0.0
        %v4118 = vmax.f32 %v4102, 0.0
        %v4119 = vmax.f32 %v4103, 0.0
        %v4120 = vmax.f32 %v4104, 0.0
        %v4121 = vmax.f32 %v4105, 0.0
        %v4122 = vmax.f32 %v4106, 0.0
        %v4123 = vmax.f32 %v4107, 0.0
        %v4124 = vmax.f32 %v4108, 0.0
        %v4125 = vmax.f32 %v4109, 0.0
        %v4126 = vmax.f32 %v4110, 0.0
        %v4127 = vmax.f32 %v4111, 0.0
        %v4128 = vmax.f32 %v4112, 0.0
        %v4129 = vpack.c.bf16 %v4114, %v4113
        %v4130 = vpack.c.bf16 %v4116, %v4115
        %v4131 = vpack.c.bf16 %v4118, %v4117
        %v4132 = vpack.c.bf16 %v4120, %v4119
        %v4133 = vpack.c.bf16 %v4122, %v4121
        %v4134 = vpack.c.bf16 %v4124, %v4123
        %v4135 = vpack.c.bf16 %v4126, %v4125
        %v4136 = vpack.c.bf16 %v4128, %v4127
        %v4145 = vunpack.c.l.b16 %v4129
        %v4146 = vunpack.c.h.b16 %v4129
        %v4147 = vunpack.c.l.b16 %v4130
        %v4148 = vunpack.c.h.b16 %v4130
        %v4149 = vunpack.c.l.b16 %v4131
        %v4150 = vunpack.c.h.b16 %v4131
        %v4151 = vunpack.c.l.b16 %v4132
        %v4152 = vunpack.c.h.b16 %v4132
        %v4153 = vunpack.c.l.b16 %v4133
        %v4154 = vunpack.c.h.b16 %v4133
        %v4155 = vunpack.c.l.b16 %v4134
        %v4156 = vunpack.c.h.b16 %v4134
        %v4157 = vunpack.c.l.b16 %v4135
        %v4158 = vunpack.c.h.b16 %v4135
        %v4159 = vunpack.c.l.b16 %v4136
        %v4160 = vunpack.c.h.b16 %v4136
        %v4161 = vpack.c.b16 %v4145, %v4145
        %v4162 = vpack.c.b16 %v4146, %v4146
        %v4163 = vpack.c.b16 %v4147, %v4147
        %v4164 = vpack.c.b16 %v4148, %v4148
        %v4165 = vpack.c.b16 %v4149, %v4149
        %v4166 = vpack.c.b16 %v4150, %v4150
        %v4167 = vpack.c.b16 %v4151, %v4151
        %v4168 = vpack.c.b16 %v4152, %v4152
        %v4169 = vpack.c.b16 %v4153, %v4153
        %v4170 = vpack.c.b16 %v4154, %v4154
        %v4171 = vpack.c.b16 %v4155, %v4155
        %v4172 = vpack.c.b16 %v4156, %v4156
        %v4173 = vpack.c.b16 %v4157, %v4157
        %v4174 = vpack.c.b16 %v4158, %v4158
        %v4175 = vpack.c.b16 %v4159, %v4159
        %v4176 = vpack.c.b16 %v4160, %v4160
        %4193 = vst [vmem:[%s354 + $0x4] sm:$0xf] %v4161
        %4194 = vst [vmem:[%s354 + $0x14] sm:$0xf] %v4162
        %4195 = vst [vmem:[%s354 + $0x24] sm:$0xf] %v4163
        %4196 = vst [vmem:[%s354 + $0x34] sm:$0xf] %v4164
        %4197 = vst [vmem:[%s354 + $0x44] sm:$0xf] %v4165
        %4198 = vst [vmem:[%s354 + $0x54] sm:$0xf] %v4166
        %4199 = vst [vmem:[%s354 + $0x64] sm:$0xf] %v4167
        %4200 = vst [vmem:[%s354 + $0x74] sm:$0xf] %v4168
        %4201 = vst [vmem:[%s354 + $0x84] sm:$0xf] %v4169
        %4202 = vst [vmem:[%s354 + $0x94] sm:$0xf] %v4170
        %4203 = vst [vmem:[%s354 + $0xa4] sm:$0xf] %v4171
        %4204 = vst [vmem:[%s354 + $0xb4] sm:$0xf] %v4172
        %4205 = vst [vmem:[%s354 + $0xc4] sm:$0xf] %v4173
        %4206 = vst [vmem:[%s354 + $0xd4] sm:$0xf] %v4174
        %4207 = vst [vmem:[%s354 + $0xe4] sm:$0xf] %v4175
        %4208 = vst [vmem:[%s354 + $0xf4] sm:$0xf] %v4176
        %v4209 = vld [vmem:[#allocation9 + $0x8] sm:$0xf]
        %v4210 = vld [vmem:[#allocation9 + $0x18] sm:$0xf]
        %v4211 = vld [vmem:[#allocation9 + $0x28] sm:$0xf]
        %v4212 = vld [vmem:[#allocation9 + $0x38] sm:$0xf]
        %v4213 = vld [vmem:[#allocation9 + $0x48] sm:$0xf]
        %v4214 = vld [vmem:[#allocation9 + $0x58] sm:$0xf]
        %v4215 = vld [vmem:[#allocation9 + $0x68] sm:$0xf]
        %v4216 = vld [vmem:[#allocation9 + $0x78] sm:$0xf]
        %v4217 = vld [vmem:[#allocation9 + $0x88] sm:$0xf]
        %v4218 = vld [vmem:[#allocation9 + $0x98] sm:$0xf]
        %v4219 = vld [vmem:[#allocation9 + $0xa8] sm:$0xf]
        %v4220 = vld [vmem:[#allocation9 + $0xb8] sm:$0xf]
        %v4221 = vld [vmem:[#allocation9 + $0xc8] sm:$0xf]
        %v4222 = vld [vmem:[#allocation9 + $0xd8] sm:$0xf]
        %v4223 = vld [vmem:[#allocation9 + $0xe8] sm:$0xf]
        %v4224 = vld [vmem:[#allocation9 + $0xf8] sm:$0xf]
        %v4225 = vld [vmem:[%s498 + $0x8] sm:$0xf]
        %v4226 = vld [vmem:[%s498 + $0x18] sm:$0xf]
        %v4227 = vld [vmem:[%s498 + $0x28] sm:$0xf]
        %v4228 = vld [vmem:[%s498 + $0x38] sm:$0xf]
        %v4229 = vld [vmem:[%s498 + $0x48] sm:$0xf]
        %v4230 = vld [vmem:[%s498 + $0x58] sm:$0xf]
        %v4231 = vld [vmem:[%s498 + $0x68] sm:$0xf]
        %v4232 = vld [vmem:[%s498 + $0x78] sm:$0xf]
        %v4233 = vld [vmem:[%s498 + $0x88] sm:$0xf]
        %v4234 = vld [vmem:[%s498 + $0x98] sm:$0xf]
        %v4235 = vld [vmem:[%s498 + $0xa8] sm:$0xf]
        %v4236 = vld [vmem:[%s498 + $0xb8] sm:$0xf]
        %v4237 = vld [vmem:[%s498 + $0xc8] sm:$0xf]
        %v4238 = vld [vmem:[%s498 + $0xd8] sm:$0xf]
        %v4239 = vld [vmem:[%s498 + $0xe8] sm:$0xf]
        %v4240 = vld [vmem:[%s498 + $0xf8] sm:$0xf]
        %v4241 = vld [vmem:[%s6 + $0x2] sm:$0x1]
        %v4243 = vlaneseq
        %v4244 = vshrl.u32 %v4243, 7
        %v4245 = vsub.s32 0, %v4244
        %v4246 = vrot.slane %v4241, %v4245
        %v4264 = vunpack.c.l.b16 %v4209
        %v4265 = vunpack.c.l.b16 %v4210
        %v4266 = vunpack.c.l.b16 %v4211
        %v4267 = vunpack.c.l.b16 %v4212
        %v4268 = vunpack.c.l.b16 %v4213
        %v4269 = vunpack.c.l.b16 %v4214
        %v4270 = vunpack.c.l.b16 %v4215
        %v4271 = vunpack.c.l.b16 %v4216
        %v4272 = vunpack.c.l.b16 %v4217
        %v4273 = vunpack.c.l.b16 %v4218
        %v4274 = vunpack.c.l.b16 %v4219
        %v4275 = vunpack.c.l.b16 %v4220
        %v4276 = vunpack.c.l.b16 %v4221
        %v4277 = vunpack.c.l.b16 %v4222
        %v4278 = vunpack.c.l.b16 %v4223
        %v4279 = vunpack.c.l.b16 %v4224
        %v4280 = vpack.c.b16 %v4265, %v4264
        %v4281 = vpack.c.b16 %v4267, %v4266
        %v4282 = vpack.c.b16 %v4269, %v4268
        %v4283 = vpack.c.b16 %v4271, %v4270
        %v4284 = vpack.c.b16 %v4273, %v4272
        %v4285 = vpack.c.b16 %v4275, %v4274
        %v4286 = vpack.c.b16 %v4277, %v4276
        %v4287 = vpack.c.b16 %v4279, %v4278
        %4296 = vmatprep.subr.bf16.mxu0 0
        %4297 = vmatpush1.bf16.msra.mxu0 %v4280
        %4298 = vmatprep.subr.bf16.mxu0 0
        %4299 = vmatpush1.bf16.msra.mxu0 %v4281
        %4300 = vmatprep.subr.bf16.mxu0 0
        %4301 = vmatpush1.bf16.msra.mxu0 %v4282
        %4302 = vmatprep.subr.bf16.mxu0 0
        %4303 = vmatpush1.bf16.msra.mxu0 %v4283
        %4304 = vmatprep.subr.bf16.mxu0 0
        %4305 = vmatpush1.bf16.msra.mxu0 %v4284
        %4306 = vmatprep.subr.bf16.mxu0 0
        %4307 = vmatpush1.bf16.msra.mxu0 %v4285
        %4308 = vmatprep.subr.bf16.mxu0 0
        %4309 = vmatpush1.bf16.msra.mxu0 %v4286
        %4310 = vmatprep.subr.bf16.mxu0 0
        %4311 = vmatpush1.bf16.msra.mxu0 %v4287
        %4312 = vmatprep.subr.bf16.mxu0 0
        %4313 = vmatpush1.bf16.msra.mxu0 0
        %4314 = vmatprep.subr.bf16.mxu0 0
        %4315 = vmatpush1.bf16.msra.mxu0 0
        %4316 = vmatprep.subr.bf16.mxu0 0
        %4317 = vmatpush1.bf16.msra.mxu0 0
        %4318 = vmatprep.subr.bf16.mxu0 0
        %4319 = vmatpush1.bf16.msra.mxu0 0
        %4320 = vmatprep.subr.bf16.mxu0 0
        %4321 = vmatpush1.bf16.msra.mxu0 0
        %4322 = vmatprep.subr.bf16.mxu0 0
        %4323 = vmatpush1.bf16.msra.mxu0 0
        %4324 = vmatprep.subr.bf16.mxu0 0
        %4325 = vmatpush1.bf16.msra.mxu0 0
        %4326 = vmatprep.subr.bf16.mxu0 0
        %4327 = vmatpush1.bf16.msra.mxu0 0
        %4328 = vmatprep.mubr.bf16.mxu0 0
        %4329 = vmatmul.mubr.bf16.gmra.mrb[0].mxu0 %v3577
        %v4330 = vpop.f32.mrb[0].mxu0
        %v4331 = vadd.f32 %v4246, %v4330
        %v4332 = vpop.f32.mrb[0].mxu0
        %v4333 = vpop.f32.mrb[0].mxu0
        %v4334 = vadd.f32 %v4246, %v4333
        %v4335 = vpop.f32.mrb[0].mxu0
        %4336 = vmatprep.mubr.bf16.mxu0 0
        %4337 = vmatmul.mubr.bf16.gmra.mrb[0].mxu0 %v3578
        %v4338 = vpop.f32.mrb[0].mxu0
        %v4339 = vadd.f32 %v4246, %v4338
        %v4340 = vpop.f32.mrb[0].mxu0
        %v4341 = vpop.f32.mrb[0].mxu0
        %v4342 = vadd.f32 %v4246, %v4341
        %v4343 = vpop.f32.mrb[0].mxu0
        %4344 = vmatprep.mubr.bf16.mxu0 0
        %4345 = vmatmul.mubr.bf16.gmra.mrb[0].mxu0 %v3579
        %v4346 = vpop.f32.mrb[0].mxu0
        %v4347 = vadd.f32 %v4246, %v4346
        %v4348 = vpop.f32.mrb[0].mxu0
        %v4349 = vpop.f32.mrb[0].mxu0
        %v4350 = vadd.f32 %v4246, %v4349
        %v4351 = vpop.f32.mrb[0].mxu0
        %4352 = vmatprep.mubr.bf16.mxu0 0
        %4353 = vmatmul.mubr.bf16.gmra.mrb[0].mxu0 %v3580
        %v4354 = vpop.f32.mrb[0].mxu0
        %v4355 = vadd.f32 %v4246, %v4354
        %v4356 = vpop.f32.mrb[0].mxu0
        %v4357 = vpop.f32.mrb[0].mxu0
        %v4358 = vadd.f32 %v4246, %v4357
        %v4359 = vpop.f32.mrb[0].mxu0
        %4360 = vmatprep.mubr.bf16.mxu0 0
        %4361 = vmatmul.mubr.bf16.gmra.mrb[0].mxu0 %v3581
        %v4362 = vpop.f32.mrb[0].mxu0
        %v4363 = vadd.f32 %v4246, %v4362
        %v4364 = vpop.f32.mrb[0].mxu0
        %v4365 = vpop.f32.mrb[0].mxu0
        %v4366 = vadd.f32 %v4246, %v4365
        %v4367 = vpop.f32.mrb[0].mxu0
        %4368 = vmatprep.mubr.bf16.mxu0 0
        %4369 = vmatmul.mubr.bf16.gmra.mrb[0].mxu0 %v3582
        %v4370 = vpop.f32.mrb[0].mxu0
        %v4371 = vadd.f32 %v4246, %v4370
        %v4372 = vpop.f32.mrb[0].mxu0
        %v4373 = vpop.f32.mrb[0].mxu0
        %v4374 = vadd.f32 %v4246, %v4373
        %v4375 = vpop.f32.mrb[0].mxu0
        %4376 = vmatprep.mubr.bf16.mxu0 0
        %4377 = vmatmul.mubr.bf16.gmra.mrb[0].mxu0 %v3583
        %v4378 = vpop.f32.mrb[0].mxu0
        %v4379 = vadd.f32 %v4246, %v4378
        %v4380 = vpop.f32.mrb[0].mxu0
        %v4381 = vpop.f32.mrb[0].mxu0
        %v4382 = vadd.f32 %v4246, %v4381
        %v4383 = vpop.f32.mrb[0].mxu0
        %4384 = vmatprep.mubr.bf16.mxu0 0
        %4385 = vmatmul.mubr.bf16.gmra.mrb[0].mxu0 %v3584
        %v4386 = vpop.f32.mrb[0].mxu0
        %v4387 = vadd.f32 %v4246, %v4386
        %v4388 = vpop.f32.mrb[0].mxu0
        %v4389 = vpop.f32.mrb[0].mxu0
        %v4390 = vadd.f32 %v4246, %v4389
        %v4391 = vpop.f32.mrb[0].mxu0
        %4392 = vdwg.mxu0
        %v4393 = vunpack.c.l.bf16 %v4225
        %v4394 = vunpack.c.l.bf16 %v4226
        %v4395 = vunpack.c.l.bf16 %v4227
        %v4396 = vunpack.c.l.bf16 %v4228
        %v4397 = vunpack.c.l.bf16 %v4229
        %v4398 = vunpack.c.l.bf16 %v4230
        %v4399 = vunpack.c.l.bf16 %v4231
        %v4400 = vunpack.c.l.bf16 %v4232
        %v4401 = vunpack.c.l.bf16 %v4233
        %v4402 = vunpack.c.l.bf16 %v4234
        %v4403 = vunpack.c.l.bf16 %v4235
        %v4404 = vunpack.c.l.bf16 %v4236
        %v4405 = vunpack.c.l.bf16 %v4237
        %v4406 = vunpack.c.l.bf16 %v4238
        %v4407 = vunpack.c.l.bf16 %v4239
        %v4408 = vunpack.c.l.bf16 %v4240
        %v4409 = vadd.f32 %v4331, %v4393
        %v4410 = vadd.f32 %v4334, %v4394
        %v4411 = vadd.f32 %v4339, %v4395
        %v4412 = vadd.f32 %v4342, %v4396
        %v4413 = vadd.f32 %v4347, %v4397
        %v4414 = vadd.f32 %v4350, %v4398
        %v4415 = vadd.f32 %v4355, %v4399
        %v4416 = vadd.f32 %v4358, %v4400
        %v4417 = vadd.f32 %v4363, %v4401
        %v4418 = vadd.f32 %v4366, %v4402
        %v4419 = vadd.f32 %v4371, %v4403
        %v4420 = vadd.f32 %v4374, %v4404
        %v4421 = vadd.f32 %v4379, %v4405
        %v4422 = vadd.f32 %v4382, %v4406
        %v4423 = vadd.f32 %v4387, %v4407
        %v4424 = vadd.f32 %v4390, %v4408
        %v4425 = vmax.f32 %v4409, 0.0
        %v4426 = vmax.f32 %v4410, 0.0
        %v4427 = vmax.f32 %v4411, 0.0
        %v4428 = vmax.f32 %v4412, 0.0
        %v4429 = vmax.f32 %v4413, 0.0
        %v4430 = vmax.f32 %v4414, 0.0
        %v4431 = vmax.f32 %v4415, 0.0
        %v4432 = vmax.f32 %v4416, 0.0
        %v4433 = vmax.f32 %v4417, 0.0
        %v4434 = vmax.f32 %v4418, 0.0
        %v4435 = vmax.f32 %v4419, 0.0
        %v4436 = vmax.f32 %v4420, 0.0
        %v4437 = vmax.f32 %v4421, 0.0
        %v4438 = vmax.f32 %v4422, 0.0
        %v4439 = vmax.f32 %v4423, 0.0
        %v4440 = vmax.f32 %v4424, 0.0
        %v4441 = vpack.c.bf16 %v4426, %v4425
        %v4442 = vpack.c.bf16 %v4428, %v4427
        %v4443 = vpack.c.bf16 %v4430, %v4429
        %v4444 = vpack.c.bf16 %v4432, %v4431
        %v4445 = vpack.c.bf16 %v4434, %v4433
        %v4446 = vpack.c.bf16 %v4436, %v4435
        %v4447 = vpack.c.bf16 %v4438, %v4437
        %v4448 = vpack.c.bf16 %v4440, %v4439
        %v4457 = vunpack.c.l.b16 %v4441
        %v4458 = vunpack.c.h.b16 %v4441
        %v4459 = vunpack.c.l.b16 %v4442
        %v4460 = vunpack.c.h.b16 %v4442
        %v4461 = vunpack.c.l.b16 %v4443
        %v4462 = vunpack.c.h.b16 %v4443
        %v4463 = vunpack.c.l.b16 %v4444
        %v4464 = vunpack.c.h.b16 %v4444
        %v4465 = vunpack.c.l.b16 %v4445
        %v4466 = vunpack.c.h.b16 %v4445
        %v4467 = vunpack.c.l.b16 %v4446
        %v4468 = vunpack.c.h.b16 %v4446
        %v4469 = vunpack.c.l.b16 %v4447
        %v4470 = vunpack.c.h.b16 %v4447
        %v4471 = vunpack.c.l.b16 %v4448
        %v4472 = vunpack.c.h.b16 %v4448
        %v4473 = vpack.c.b16 %v4457, %v4457
        %v4474 = vpack.c.b16 %v4458, %v4458
        %v4475 = vpack.c.b16 %v4459, %v4459
        %v4476 = vpack.c.b16 %v4460, %v4460
        %v4477 = vpack.c.b16 %v4461, %v4461
        %v4478 = vpack.c.b16 %v4462, %v4462
        %v4479 = vpack.c.b16 %v4463, %v4463
        %v4480 = vpack.c.b16 %v4464, %v4464
        %v4481 = vpack.c.b16 %v4465, %v4465
        %v4482 = vpack.c.b16 %v4466, %v4466
        %v4483 = vpack.c.b16 %v4467, %v4467
        %v4484 = vpack.c.b16 %v4468, %v4468
        %v4485 = vpack.c.b16 %v4469, %v4469
        %v4486 = vpack.c.b16 %v4470, %v4470
        %v4487 = vpack.c.b16 %v4471, %v4471
        %v4488 = vpack.c.b16 %v4472, %v4472
        %4505 = vst [vmem:[%s354 + $0x8] sm:$0xf] %v4473
        %4506 = vst [vmem:[%s354 + $0x18] sm:$0xf] %v4474
        %4507 = vst [vmem:[%s354 + $0x28] sm:$0xf] %v4475
        %4508 = vst [vmem:[%s354 + $0x38] sm:$0xf] %v4476
        %4509 = vst [vmem:[%s354 + $0x48] sm:$0xf] %v4477
        %4510 = vst [vmem:[%s354 + $0x58] sm:$0xf] %v4478
        %4511 = vst [vmem:[%s354 + $0x68] sm:$0xf] %v4479
        %4512 = vst [vmem:[%s354 + $0x78] sm:$0xf] %v4480
        %4513 = vst [vmem:[%s354 + $0x88] sm:$0xf] %v4481
        %4514 = vst [vmem:[%s354 + $0x98] sm:$0xf] %v4482
        %4515 = vst [vmem:[%s354 + $0xa8] sm:$0xf] %v4483
        %4516 = vst [vmem:[%s354 + $0xb8] sm:$0xf] %v4484
        %4517 = vst [vmem:[%s354 + $0xc8] sm:$0xf] %v4485
        %4518 = vst [vmem:[%s354 + $0xd8] sm:$0xf] %v4486
        %4519 = vst [vmem:[%s354 + $0xe8] sm:$0xf] %v4487
        %4520 = vst [vmem:[%s354 + $0xf8] sm:$0xf] %v4488
        %v4521 = vld [vmem:[#allocation9 + $0xc] sm:$0xf]
        %v4522 = vld [vmem:[#allocation9 + $0x1c] sm:$0xf]
        %v4523 = vld [vmem:[#allocation9 + $0x2c] sm:$0xf]
        %v4524 = vld [vmem:[#allocation9 + $0x3c] sm:$0xf]
        %v4525 = vld [vmem:[#allocation9 + $0x4c] sm:$0xf]
        %v4526 = vld [vmem:[#allocation9 + $0x5c] sm:$0xf]
        %v4527 = vld [vmem:[#allocation9 + $0x6c] sm:$0xf]
        %v4528 = vld [vmem:[#allocation9 + $0x7c] sm:$0xf]
        %v4529 = vld [vmem:[#allocation9 + $0x8c] sm:$0xf]
        %v4530 = vld [vmem:[#allocation9 + $0x9c] sm:$0xf]
        %v4531 = vld [vmem:[#allocation9 + $0xac] sm:$0xf]
        %v4532 = vld [vmem:[#allocation9 + $0xbc] sm:$0xf]
        %v4533 = vld [vmem:[#allocation9 + $0xcc] sm:$0xf]
        %v4534 = vld [vmem:[#allocation9 + $0xdc] sm:$0xf]
        %v4535 = vld [vmem:[#allocation9 + $0xec] sm:$0xf]
        %v4536 = vld [vmem:[#allocation9 + $0xfc] sm:$0xf]
        %v4537 = vld [vmem:[%s498 + $0xc] sm:$0xf]
        %v4538 = vld [vmem:[%s498 + $0x1c] sm:$0xf]
        %v4539 = vld [vmem:[%s498 + $0x2c] sm:$0xf]
        %v4540 = vld [vmem:[%s498 + $0x3c] sm:$0xf]
        %v4541 = vld [vmem:[%s498 + $0x4c] sm:$0xf]
        %v4542 = vld [vmem:[%s498 + $0x5c] sm:$0xf]
        %v4543 = vld [vmem:[%s498 + $0x6c] sm:$0xf]
        %v4544 = vld [vmem:[%s498 + $0x7c] sm:$0xf]
        %v4545 = vld [vmem:[%s498 + $0x8c] sm:$0xf]
        %v4546 = vld [vmem:[%s498 + $0x9c] sm:$0xf]
        %v4547 = vld [vmem:[%s498 + $0xac] sm:$0xf]
        %v4548 = vld [vmem:[%s498 + $0xbc] sm:$0xf]
        %v4549 = vld [vmem:[%s498 + $0xcc] sm:$0xf]
        %v4550 = vld [vmem:[%s498 + $0xdc] sm:$0xf]
        %v4551 = vld [vmem:[%s498 + $0xec] sm:$0xf]
        %v4552 = vld [vmem:[%s498 + $0xfc] sm:$0xf]
        %v4553 = vld [vmem:[%s6 + $0x3] sm:$0x1]
        %v4555 = vlaneseq
        %v4556 = vshrl.u32 %v4555, 7
        %v4557 = vsub.s32 0, %v4556
        %v4558 = vrot.slane %v4553, %v4557
        %v4576 = vunpack.c.l.b16 %v4521
        %v4577 = vunpack.c.l.b16 %v4522
        %v4578 = vunpack.c.l.b16 %v4523
        %v4579 = vunpack.c.l.b16 %v4524
        %v4580 = vunpack.c.l.b16 %v4525
        %v4581 = vunpack.c.l.b16 %v4526
        %v4582 = vunpack.c.l.b16 %v4527
        %v4583 = vunpack.c.l.b16 %v4528
        %v4584 = vunpack.c.l.b16 %v4529
        %v4585 = vunpack.c.l.b16 %v4530
        %v4586 = vunpack.c.l.b16 %v4531
        %v4587 = vunpack.c.l.b16 %v4532
        %v4588 = vunpack.c.l.b16 %v4533
        %v4589 = vunpack.c.l.b16 %v4534
        %v4590 = vunpack.c.l.b16 %v4535
        %v4591 = vunpack.c.l.b16 %v4536
        %v4592 = vpack.c.b16 %v4577, %v4576
        %v4593 = vpack.c.b16 %v4579, %v4578
        %v4594 = vpack.c.b16 %v4581, %v4580
        %v4595 = vpack.c.b16 %v4583, %v4582
        %v4596 = vpack.c.b16 %v4585, %v4584
        %v4597 = vpack.c.b16 %v4587, %v4586
        %v4598 = vpack.c.b16 %v4589, %v4588
        %v4599 = vpack.c.b16 %v4591, %v4590
        %4608 = vmatprep.subr.bf16.mxu0 0
        %4609 = vmatpush1.bf16.msra.mxu0 %v4592
        %4610 = vmatprep.subr.bf16.mxu0 0
        %4611 = vmatpush1.bf16.msra.mxu0 %v4593
        %4612 = vmatprep.subr.bf16.mxu0 0
        %4613 = vmatpush1.bf16.msra.mxu0 %v4594
        %4614 = vmatprep.subr.bf16.mxu0 0
        %4615 = vmatpush1.bf16.msra.mxu0 %v4595
        %4616 = vmatprep.subr.bf16.mxu0 0
        %4617 = vmatpush1.bf16.msra.mxu0 %v4596
        %4618 = vmatprep.subr.bf16.mxu0 0
        %4619 = vmatpush1.bf16.msra.mxu0 %v4597
        %4620 = vmatprep.subr.bf16.mxu0 0
        %4621 = vmatpush1.bf16.msra.mxu0 %v4598
        %4622 = vmatprep.subr.bf16.mxu0 0
        %4623 = vmatpush1.bf16.msra.mxu0 %v4599
        %4624 = vmatprep.subr.bf16.mxu0 0
        %4625 = vmatpush1.bf16.msra.mxu0 0
        %4626 = vmatprep.subr.bf16.mxu0 0
        %4627 = vmatpush1.bf16.msra.mxu0 0
        %4628 = vmatprep.subr.bf16.mxu0 0
        %4629 = vmatpush1.bf16.msra.mxu0 0
        %4630 = vmatprep.subr.bf16.mxu0 0
        %4631 = vmatpush1.bf16.msra.mxu0 0
        %4632 = vmatprep.subr.bf16.mxu0 0
        %4633 = vmatpush1.bf16.msra.mxu0 0
        %4634 = vmatprep.subr.bf16.mxu0 0
        %4635 = vmatpush1.bf16.msra.mxu0 0
        %4636 = vmatprep.subr.bf16.mxu0 0
        %4637 = vmatpush1.bf16.msra.mxu0 0
        %4638 = vmatprep.subr.bf16.mxu0 0
        %4639 = vmatpush1.bf16.msra.mxu0 0
        %4640 = vmatprep.mubr.bf16.mxu0 0
        %4641 = vmatmul.mubr.bf16.gmra.mrb[0].mxu0 %v3577
        %v4642 = vpop.f32.mrb[0].mxu0
        %v4643 = vadd.f32 %v4558, %v4642
        %v4644 = vpop.f32.mrb[0].mxu0
        %v4645 = vpop.f32.mrb[0].mxu0
        %v4646 = vadd.f32 %v4558, %v4645
        %v4647 = vpop.f32.mrb[0].mxu0
        %4648 = vmatprep.mubr.bf16.mxu0 0
        %4649 = vmatmul.mubr.bf16.gmra.mrb[0].mxu0 %v3578
        %v4650 = vpop.f32.mrb[0].mxu0
        %v4651 = vadd.f32 %v4558, %v4650
        %v4652 = vpop.f32.mrb[0].mxu0
        %v4653 = vpop.f32.mrb[0].mxu0
        %v4654 = vadd.f32 %v4558, %v4653
        %v4655 = vpop.f32.mrb[0].mxu0
        %4656 = vmatprep.mubr.bf16.mxu0 0
        %4657 = vmatmul.mubr.bf16.gmra.mrb[0].mxu0 %v3579
        %v4658 = vpop.f32.mrb[0].mxu0
        %v4659 = vadd.f32 %v4558, %v4658
        %v4660 = vpop.f32.mrb[0].mxu0
        %v4661 = vpop.f32.mrb[0].mxu0
        %v4662 = vadd.f32 %v4558, %v4661
        %v4663 = vpop.f32.mrb[0].mxu0
        %4664 = vmatprep.mubr.bf16.mxu0 0
        %4665 = vmatmul.mubr.bf16.gmra.mrb[0].mxu0 %v3580
        %v4666 = vpop.f32.mrb[0].mxu0
        %v4667 = vadd.f32 %v4558, %v4666
        %v4668 = vpop.f32.mrb[0].mxu0
        %v4669 = vpop.f32.mrb[0].mxu0
        %v4670 = vadd.f32 %v4558, %v4669
        %v4671 = vpop.f32.mrb[0].mxu0
        %4672 = vmatprep.mubr.bf16.mxu0 0
        %4673 = vmatmul.mubr.bf16.gmra.mrb[0].mxu0 %v3581
        %v4674 = vpop.f32.mrb[0].mxu0
        %v4675 = vadd.f32 %v4558, %v4674
        %v4676 = vpop.f32.mrb[0].mxu0
        %v4677 = vpop.f32.mrb[0].mxu0
        %v4678 = vadd.f32 %v4558, %v4677
        %v4679 = vpop.f32.mrb[0].mxu0
        %4680 = vmatprep.mubr.bf16.mxu0 0
        %4681 = vmatmul.mubr.bf16.gmra.mrb[0].mxu0 %v3582
        %v4682 = vpop.f32.mrb[0].mxu0
        %v4683 = vadd.f32 %v4558, %v4682
        %v4684 = vpop.f32.mrb[0].mxu0
        %v4685 = vpop.f32.mrb[0].mxu0
        %v4686 = vadd.f32 %v4558, %v4685
        %v4687 = vpop.f32.mrb[0].mxu0
        %4688 = vmatprep.mubr.bf16.mxu0 0
        %4689 = vmatmul.mubr.bf16.gmra.mrb[0].mxu0 %v3583
        %v4690 = vpop.f32.mrb[0].mxu0
        %v4691 = vadd.f32 %v4558, %v4690
        %v4692 = vpop.f32.mrb[0].mxu0
        %v4693 = vpop.f32.mrb[0].mxu0
        %v4694 = vadd.f32 %v4558, %v4693
        %v4695 = vpop.f32.mrb[0].mxu0
        %4696 = vmatprep.mubr.bf16.mxu0 0
        %4697 = vmatmul.mubr.bf16.gmra.mrb[0].mxu0 %v3584
        %v4698 = vpop.f32.mrb[0].mxu0
        %v4699 = vadd.f32 %v4558, %v4698
        %v4700 = vpop.f32.mrb[0].mxu0
        %v4701 = vpop.f32.mrb[0].mxu0
        %v4702 = vadd.f32 %v4558, %v4701
        %v4703 = vpop.f32.mrb[0].mxu0
        %4704 = vdwg.mxu0
        %v4705 = vunpack.c.l.bf16 %v4537
        %v4706 = vunpack.c.l.bf16 %v4538
        %v4707 = vunpack.c.l.bf16 %v4539
        %v4708 = vunpack.c.l.bf16 %v4540
        %v4709 = vunpack.c.l.bf16 %v4541
        %v4710 = vunpack.c.l.bf16 %v4542
        %v4711 = vunpack.c.l.bf16 %v4543
        %v4712 = vunpack.c.l.bf16 %v4544
        %v4713 = vunpack.c.l.bf16 %v4545
        %v4714 = vunpack.c.l.bf16 %v4546
        %v4715 = vunpack.c.l.bf16 %v4547
        %v4716 = vunpack.c.l.bf16 %v4548
        %v4717 = vunpack.c.l.bf16 %v4549
        %v4718 = vunpack.c.l.bf16 %v4550
        %v4719 = vunpack.c.l.bf16 %v4551
        %v4720 = vunpack.c.l.bf16 %v4552
        %v4721 = vadd.f32 %v4643, %v4705
        %v4722 = vadd.f32 %v4646, %v4706
        %v4723 = vadd.f32 %v4651, %v4707
        %v4724 = vadd.f32 %v4654, %v4708
        %v4725 = vadd.f32 %v4659, %v4709
        %v4726 = vadd.f32 %v4662, %v4710
        %v4727 = vadd.f32 %v4667, %v4711
        %v4728 = vadd.f32 %v4670, %v4712
        %v4729 = vadd.f32 %v4675, %v4713
        %v4730 = vadd.f32 %v4678, %v4714
        %v4731 = vadd.f32 %v4683, %v4715
        %v4732 = vadd.f32 %v4686, %v4716
        %v4733 = vadd.f32 %v4691, %v4717
        %v4734 = vadd.f32 %v4694, %v4718
        %v4735 = vadd.f32 %v4699, %v4719
        %v4736 = vadd.f32 %v4702, %v4720
        %v4737 = vmax.f32 %v4721, 0.0
        %v4738 = vmax.f32 %v4722, 0.0
        %v4739 = vmax.f32 %v4723, 0.0
        %v4740 = vmax.f32 %v4724, 0.0
        %v4741 = vmax.f32 %v4725, 0.0
        %v4742 = vmax.f32 %v4726, 0.0
        %v4743 = vmax.f32 %v4727, 0.0
        %v4744 = vmax.f32 %v4728, 0.0
        %v4745 = vmax.f32 %v4729, 0.0
        %v4746 = vmax.f32 %v4730, 0.0
        %v4747 = vmax.f32 %v4731, 0.0
        %v4748 = vmax.f32 %v4732, 0.0
        %v4749 = vmax.f32 %v4733, 0.0
        %v4750 = vmax.f32 %v4734, 0.0
        %v4751 = vmax.f32 %v4735, 0.0
        %v4752 = vmax.f32 %v4736, 0.0
        %v4753 = vpack.c.bf16 %v4738, %v4737
        %v4754 = vpack.c.bf16 %v4740, %v4739
        %v4755 = vpack.c.bf16 %v4742, %v4741
        %v4756 = vpack.c.bf16 %v4744, %v4743
        %v4757 = vpack.c.bf16 %v4746, %v4745
        %v4758 = vpack.c.bf16 %v4748, %v4747
        %v4759 = vpack.c.bf16 %v4750, %v4749
        %v4760 = vpack.c.bf16 %v4752, %v4751
        %v4769 = vunpack.c.l.b16 %v4753
        %v4770 = vunpack.c.h.b16 %v4753
        %v4771 = vunpack.c.l.b16 %v4754
        %v4772 = vunpack.c.h.b16 %v4754
        %v4773 = vunpack.c.l.b16 %v4755
        %v4774 = vunpack.c.h.b16 %v4755
        %v4775 = vunpack.c.l.b16 %v4756
        %v4776 = vunpack.c.h.b16 %v4756
        %v4777 = vunpack.c.l.b16 %v4757
        %v4778 = vunpack.c.h.b16 %v4757
        %v4779 = vunpack.c.l.b16 %v4758
        %v4780 = vunpack.c.h.b16 %v4758
        %v4781 = vunpack.c.l.b16 %v4759
        %v4782 = vunpack.c.h.b16 %v4759
        %v4783 = vunpack.c.l.b16 %v4760
        %v4784 = vunpack.c.h.b16 %v4760
        %v4785 = vpack.c.b16 %v4769, %v4769
        %v4786 = vpack.c.b16 %v4770, %v4770
        %v4787 = vpack.c.b16 %v4771, %v4771
        %v4788 = vpack.c.b16 %v4772, %v4772
        %v4789 = vpack.c.b16 %v4773, %v4773
        %v4790 = vpack.c.b16 %v4774, %v4774
        %v4791 = vpack.c.b16 %v4775, %v4775
        %v4792 = vpack.c.b16 %v4776, %v4776
        %v4793 = vpack.c.b16 %v4777, %v4777
        %v4794 = vpack.c.b16 %v4778, %v4778
        %v4795 = vpack.c.b16 %v4779, %v4779
        %v4796 = vpack.c.b16 %v4780, %v4780
        %v4797 = vpack.c.b16 %v4781, %v4781
        %v4798 = vpack.c.b16 %v4782, %v4782
        %v4799 = vpack.c.b16 %v4783, %v4783
        %v4800 = vpack.c.b16 %v4784, %v4784
        %4817 = vst [vmem:[%s354 + $0xc] sm:$0xf] %v4785
        %4818 = vst [vmem:[%s354 + $0x1c] sm:$0xf] %v4786
        %4819 = vst [vmem:[%s354 + $0x2c] sm:$0xf] %v4787
        %4820 = vst [vmem:[%s354 + $0x3c] sm:$0xf] %v4788
        %4821 = vst [vmem:[%s354 + $0x4c] sm:$0xf] %v4789
        %4822 = vst [vmem:[%s354 + $0x5c] sm:$0xf] %v4790
        %4823 = vst [vmem:[%s354 + $0x6c] sm:$0xf] %v4791
        %4824 = vst [vmem:[%s354 + $0x7c] sm:$0xf] %v4792
        %4825 = vst [vmem:[%s354 + $0x8c] sm:$0xf] %v4793
        %4826 = vst [vmem:[%s354 + $0x9c] sm:$0xf] %v4794
        %4827 = vst [vmem:[%s354 + $0xac] sm:$0xf] %v4795
        %4828 = vst [vmem:[%s354 + $0xbc] sm:$0xf] %v4796
        %4829 = vst [vmem:[%s354 + $0xcc] sm:$0xf] %v4797
        %4830 = vst [vmem:[%s354 + $0xdc] sm:$0xf] %v4798
        %4831 = vst [vmem:[%s354 + $0xec] sm:$0xf] %v4799
        %4832 = vst [vmem:[%s354 + $0xfc] sm:$0xf] %v4800
        %s4833 = sand.u32 %s200, 1
        %s4834 = scalar_lea.sflag [#allocation5], %s4833
        %s4835 = sand.u32 %s200, 1
        %s4836 = smul.addr %s4835, 256
        %s4837 = scalar_lea.vmem [#allocation11], %s4836
        // Predicated region
        $region73: #{tpu_custom_call.1} parent=47 // pred_check
          %p4838 = pneg %p210
        $region74: #{tpu_custom_call.1} parent=47 // pred_check_branch
          %4840 = sbr.rel (%p4838) target = $region76
        $region75: #{tpu_custom_call.1} parent=47 // pred_region
          %s4841 = smul.u32 8, %s31
          %s4843 = ssub.s32 4096, 4096
          %4844 = vsyncadd %s4834, %s4843
          %s4845 = smul.addr %s4841, 8
          %s4846 = smul.addr %s30, 128
          %s4847 = sadd.s32 %s4845, %s4846
          %s4848 = smul.addr %s4847, 64
          %s4849 = scalar_lea.hbm %s7, %s4848
          %s4850 = sshll.u32 %s4837, 4
          %s4851 = int_to_ptr.vmem [resolvable:$true] %s4850
          %4856 = dma.vmem_to_hbm [thread:$0]  %s4851, 4096, %s4849, %s4834, 256, 256, 16
        $region76: #{tpu_custom_call.1} parent=47 // pred_fallthru
          _
      $region48: #{tpu_custom_call.1} parent=5 // pred_fallthru
        _
      %p4857 = scmp.le.s32.totalorder 2, %s21
      // Predicated region
      $region77: #{tpu_custom_call.1} parent=5 // pred_check
        %p4858 = pneg %p4857
      $region78: #{tpu_custom_call.1} parent=5 // pred_check_branch
        %4860 = sbr.rel (%p4858) target = $region80
      $region79: #{tpu_custom_call.1} parent=5 // pred_region
        %s4861 = ssub.s32 %s21, 2
        // Predicated region
        $region81: #{tpu_custom_call.1} parent=79 // pred_check
          %p4862 = pneg %p216
        $region82: #{tpu_custom_call.1} parent=79 // pred_check_branch
          %4864 = sbr.rel (%p4862) target = $region84
        $region83: #{tpu_custom_call.1} parent=79 // pred_region
          %s4865 = sand.u32 %s201, 1
          %s4866 = scalar_lea.sflag [#allocation5], %s4865
          %s4867 = sand.u32 %s201, 1
          %s4868 = smul.addr %s4867, 256
          %s4869 = scalar_lea.vmem [#allocation11], %s4868
          %4870 = dma.done %s4866, 4096
        $region84: #{tpu_custom_call.1} parent=79 // pred_fallthru
          _
      $region80: #{tpu_custom_call.1} parent=5 // pred_fallthru
        _
    $region6: #{tpu_custom_call.1} parent=1 // loop_footer
      %s25 = sadd.s32 1, %s21
    $region7: #{tpu_custom_call.1} parent=1 // loop_footer_branch
      %20 = sbr.rel target = $region3
    $region8: #{tpu_custom_call.1} parent=1 // loop_exit
      _
    %4871 = vsyncpa [#allocation4], 1
    %s4872 = scalar_lea.sflag [#allocation4], 1
    %4873 = vsyncpa %s4872, 1
    %4874 = vsyncpa [#allocation7], 1
    %4875 = vsyncpa [#allocation10], 1
    %4876 = vsyncpa [#allocation5], 1
    %s4877 = scalar_lea.sflag [#allocation5], 1
    %4878 = vsyncpa %s4877, 1

</llo_original>
